<compile_context>
chip_gen: v5e
topology: v5e:2x2
jax: 0.10.0
libtpu: 0.0.40
codegen_flags: <defaults>
</compile_context>

<pallas_src>
import functools

import jax
import jax.numpy as jnp
from jax.experimental import pallas as pl
from jax.experimental.pallas import tpu as pltpu


# ----------------------------------------------------------------------------
# Pallas kernel: full VAE forward for one batch tile
#   inputs : rna (TB,Rp) bf16, met (TB,Mp) bf16, eps (TB,Lp) f32,
#            11 resident bf16 weight blocks, one stacked (10,W_max) f32 bias block
#   outputs: rna_recon (TB,Rp) bf16, met_recon (TB,Mp) bf16, mu|logvar (TB,2Lp) f32
# ----------------------------------------------------------------------------
def _vae_forward_kernel(
    rna_ref, met_ref, eps_ref,
    w_re1, w_re2, w_me1, w_me2,
    w_mulv_r, w_mulv_m, w_d1,
    w_rd2, w_md2, w_rd3, w_md3,
    b_ref,
    rna_recon_ref, met_recon_ref, mulv_ref,
):
    f32 = jnp.float32
    bf16 = jnp.bfloat16

    # bias row layout (matches pack_params):
    # 0:re1 1:re2 2:me1 3:me2 4:mu|lv 5:rd1|md1 6:rd2 7:md2 8:rd3 9:md3
    def bias(row, width):
        return b_ref[row:row + 1, :width]            # (1, width) f32

    def lin(x_bf16, w_ref, brow):
        # bf16 MXU operands, f32 accumulate, f32 bias add
        y = jnp.dot(x_bf16, w_ref[...], preferred_element_type=f32)
        return y + bias(brow, w_ref.shape[1])

    def relu_bf16(x_f32):
        # ReLU (and the preceding bias add) stay f32 (v5e VPU has no bf16);
        # the activation handed to the next MXU dot is bf16, so intermediates
        # never persist as f32 vregs and no per-consumer re-cast is needed.
        return jnp.maximum(x_f32, 0.0).astype(bf16)

    # ---- encoders: Linear -> BN(folded) -> ReLU -> Dropout(id) -> Linear -> BN -> ReLU
    h_r = relu_bf16(lin(rna_ref[...], w_re1, 0))
    h_r = relu_bf16(lin(h_r, w_re2, 1))               # (TB, Hh_pad) bf16
    h_m = relu_bf16(lin(met_ref[...], w_me1, 2))
    h_m = relu_bf16(lin(h_m, w_me2, 3))               # (TB, Hh_pad) bf16

    # ---- fused fc_mu|fc_logvar over combined = [h_r | h_m]
    L2 = w_mulv_r.shape[1]                            # 2 * L_pad
    Lp = L2 // 2
    mulv = (jnp.dot(h_r, w_mulv_r[...], preferred_element_type=f32)
            + jnp.dot(h_m, w_mulv_m[...], preferred_element_type=f32)
            + bias(4, L2))                            # (TB, 2*L_pad) f32
    mu = mulv[:, :Lp]
    logvar = mulv[:, Lp:]

    # ---- reparameterize (f32 on VPU/EUP), then bf16 for the decoder matmuls
    z = (mu + eps_ref[...] * jnp.exp(0.5 * logvar)).astype(jnp.bfloat16)

    # ---- decoders; first layers fused (both consume z)
    d = relu_bf16(lin(z, w_d1, 5))                    # (TB, 2*Hh_pad) bf16
    Hhp = w_d1.shape[1] // 2
    d_r = d[:, :Hhp]
    d_m = d[:, Hhp:]

    d_r = relu_bf16(lin(d_r, w_rd2, 6))
    rna_recon_ref[...] = lin(d_r, w_rd3, 8).astype(rna_recon_ref.dtype)

    d_m = relu_bf16(lin(d_m, w_md2, 7))
    met_recon_ref[...] = lin(d_m, w_md3, 9).astype(met_recon_ref.dtype)

    mulv_ref[...] = mulv.astype(mulv_ref.dtype)


# ----------------------------------------------------------------------------
# Host-side: parameter construction, BN folding, padding/fusing, pallas_call
# ----------------------------------------------------------------------------
_BN_EPS = 1e-5
_MATMUL_DTYPE = jnp.bfloat16    # MXU operand dtype (f32 accumulate)


def _round_up(x, m):
    return ((x + m - 1) // m) * m


def _tpu_vmem_capacity_bytes():
    try:
        return int(pltpu.get_tpu_info().vmem_capacity_bytes)
    except Exception:
        return 64 << 20           # conservative (v7x per-TensorCore VMEM)


def _vmem_limit_bytes():
    cap = _tpu_vmem_capacity_bytes()
    # ~48 MiB on v7x (64 MiB physical), ~96 MiB on v5e/v6e (128 MiB physical)
    return max(32 << 20, min((cap * 3) // 4, 100 << 20))


def _pick_batch_tile(B):
    """Batch tile: multiple of 16 (bf16 sublane tile), minimal padding for
    tiny batches, >=2 grid steps for mid batches (v7x two-TC sharding), and
    big MXU-filling tiles for large batches on 128-MiB-VMEM parts."""
    B16 = _round_up(B, 16)
    if B16 <= 32:
        return B16
    if B16 <= 256:
        return _round_up((B16 + 1) // 2, 16)
    return 256 if _tpu_vmem_capacity_bytes() >= (96 << 20) else 128


def _fold_bn(w, b, gamma, beta, running_mean, running_var):
    """Fold eval-mode BatchNorm1d into the preceding Linear (exact)."""
    scale = gamma / jnp.sqrt(running_var + _BN_EPS)
    shift = beta - running_mean * scale
    return w * scale[None, :], b * scale + shift


def _make_linear(key, fan_in, fan_out):
    """PyTorch nn.Linear default init, deterministic. W stored (in, out)."""
    kw, kb = jax.random.split(key)
    bound = 1.0 / jnp.sqrt(float(fan_in))
    w = jax.random.uniform(kw, (fan_in, fan_out), jnp.float32, -bound, bound)
    b = jax.random.uniform(kb, (fan_out,), jnp.float32, -bound, bound)
    return w, b


def _default_bn(dim):
    return (jnp.ones((dim,), jnp.float32),
            jnp.zeros((dim,), jnp.float32),
            jnp.zeros((dim,), jnp.float32),
            jnp.ones((dim,), jnp.float32))


def init_params(key, rnaseq_dim, metag_dim, hidden_dim, latent_dim):
    """Unpadded, BN-folded parameter set (matches PyTorch module layer-for-layer)."""
    keys = jax.random.split(key, 12)
    H, Hh, L = hidden_dim, hidden_dim // 2, latent_dim
    p = {}
    for name, in_dim, k0, k1 in (("re", rnaseq_dim, 0, 1), ("me", metag_dim, 2, 3)):
        w1, b1 = _make_linear(keys[k0], in_dim, H)
        w1, b1 = _fold_bn(w1, b1, *_default_bn(H))
        w2, b2 = _make_linear(keys[k1], H, Hh)
        w2, b2 = _fold_bn(w2, b2, *_default_bn(Hh))
        p[f"w_{name}1"], p[f"b_{name}1"] = w1, b1
        p[f"w_{name}2"], p[f"b_{name}2"] = w2, b2
    p["w_mu"], p["b_mu"] = _make_linear(keys[4], H, L)
    p["w_lv"], p["b_lv"] = _make_linear(keys[5], H, L)
    for name, out_dim, k0, k1, k2 in (("rd", rnaseq_dim, 6, 7, 8),
                                      ("md", metag_dim, 9, 10, 11)):
        w1, b1 = _make_linear(keys[k0], L, Hh)
        w1, b1 = _fold_bn(w1, b1, *_default_bn(Hh))
        w2, b2 = _make_linear(keys[k1], Hh, H)
        w2, b2 = _fold_bn(w2, b2, *_default_bn(H))
        w3, b3 = _make_linear(keys[k2], H, out_dim)
        p[f"w_{name}1"], p[f"b_{name}1"] = w1, b1
        p[f"w_{name}2"], p[f"b_{name}2"] = w2, b2
        p[f"w_{name}3"], p[f"b_{name}3"] = w3, b3
    return p


_WEIGHT_ORDER = ("w_re1", "w_re2", "w_me1", "w_me2",
                 "w_mulv_r", "w_mulv_m", "w_d1",
                 "w_rd2", "w_md2", "w_rd3", "w_md3")


def pack_params(p):
    """Zero-pad to 128-lane multiples, fuse mu|logvar and rd1|md1, cast weights
    to bf16, and stack all biases into one (10, W_max) f32 array."""
    R, H = p["w_re1"].shape
    M = p["w_me1"].shape[0]
    Hh = p["w_re2"].shape[1]
    L = p["b_mu"].shape[-1]

    R_pad, M_pad, H_pad, Hh_pad, L_pad = (_round_up(d, 128) for d in (R, M, H, Hh, L))

    def padw(w, rows, cols):
        w = jnp.pad(w, ((0, rows - w.shape[0]), (0, cols - w.shape[1])))
        return w.astype(_MATMUL_DTYPE)

    def padb(b, cols):
        b = b.reshape(-1)
        return jnp.pad(b, (0, cols - b.shape[0]))

    packed = {
        "w_re1": padw(p["w_re1"], R_pad, H_pad),
        "w_re2": padw(p["w_re2"], H_pad, Hh_pad),
        "w_me1": padw(p["w_me1"], M_pad, H_pad),
        "w_me2": padw(p["w_me2"], H_pad, Hh_pad),
        # fc_mu | fc_logvar fused along N, split by encoder half along K
        "w_mulv_r": jnp.concatenate(
            [padw(p["w_mu"][:Hh], Hh_pad, L_pad), padw(p["w_lv"][:Hh], Hh_pad, L_pad)], axis=1),
        "w_mulv_m": jnp.concatenate(
            [padw(p["w_mu"][Hh:], Hh_pad, L_pad), padw(p["w_lv"][Hh:], Hh_pad, L_pad)], axis=1),
        # rnaseq_decoder[0] | metag_decoder[0] fused along N (both consume z)
        "w_d1": jnp.concatenate(
            [padw(p["w_rd1"], L_pad, Hh_pad), padw(p["w_md1"], L_pad, Hh_pad)], axis=1),
        "w_rd2": padw(p["w_rd2"], Hh_pad, H_pad),
        "w_md2": padw(p["w_md2"], Hh_pad, H_pad),
        "w_rd3": padw(p["w_rd3"], H_pad, R_pad),
        "w_md3": padw(p["w_md3"], H_pad, M_pad),
    }

    W_max = max(H_pad, Hh_pad, 2 * L_pad, 2 * Hh_pad, R_pad, M_pad)
    b_mulv = jnp.concatenate([padb(p["b_mu"], L_pad), padb(p["b_lv"], L_pad)])
    b_d1 = jnp.concatenate([padb(p["b_rd1"], Hh_pad), padb(p["b_md1"], Hh_pad)])
    rows = [
        padb(p["b_re1"], H_pad), padb(p["b_re2"], Hh_pad),
        padb(p["b_me1"], H_pad), padb(p["b_me2"], Hh_pad),
        b_mulv, b_d1,
        padb(p["b_rd2"], H_pad), padb(p["b_md2"], H_pad),
        padb(p["b_rd3"], R_pad), padb(p["b_md3"], M_pad),
    ]
    rows = [jnp.pad(r, (0, W_max - r.shape[0])) for r in rows]
    packed["biases"] = jnp.stack(rows).astype(jnp.float32)    # (10, W_max)
    return packed


def _forward_pallas(rnaseq_data, metag_data, eps, packed, single_buffer_weights):
    B, R = rnaseq_data.shape
    M = metag_data.shape[1]
    L = eps.shape[1]

    R_pad, H_pad = packed["w_re1"].shape
    M_pad = packed["w_me1"].shape[0]
    L_pad = packed["w_mulv_r"].shape[1] // 2

    TB = _pick_batch_tile(B)
    B_pad = _round_up(B, TB)

    def pad2(x, rows, cols, dtype):
        x = x.astype(dtype)
        pr, pc = rows - x.shape[0], cols - x.shape[1]
        if pr or pc:                       # skip the pad when already aligned
            x = jnp.pad(x, ((0, pr), (0, pc)))
        return x

    rna_p = pad2(rnaseq_data, B_pad, R_pad, _MATMUL_DTYPE)
    met_p = pad2(metag_data, B_pad, M_pad, _MATMUL_DTYPE)
    eps_p = pad2(eps, B_pad, L_pad, jnp.float32)

    weights = [packed[n] for n in _WEIGHT_ORDER]
    biases = packed["biases"]

    # Resident blocks (constant index_map -> DMA'd once): single-buffer them so
    # they don't cost 2x VMEM; streaming activation/output tiles keep default
    # double-buffering from the Pallas pipeliner.
    resident_kwargs = {"pipeline_mode": pl.Buffered(1)} if single_buffer_weights else {}

    def resident_spec(shape):
        return pl.BlockSpec(shape, lambda i: (0, 0), **resident_kwargs)

    in_specs = (
        [pl.BlockSpec((TB, R_pad), lambda i: (i, 0)),
         pl.BlockSpec((TB, M_pad), lambda i: (i, 0)),
         pl.BlockSpec((TB, L_pad), lambda i: (i, 0))]
        + [resident_spec(w.shape) for w in weights]
        + [resident_spec(biases.shape)]
    )
    out_specs = (
        pl.BlockSpec((TB, R_pad), lambda i: (i, 0)),
        pl.BlockSpec((TB, M_pad), lambda i: (i, 0)),
        pl.BlockSpec((TB, 2 * L_pad), lambda i: (i, 0)),
    )
    out_shapes = (
        # recon outputs in bf16: halves HBM writeback + output double-buffer VMEM
        jax.ShapeDtypeStruct((B_pad, R_pad), jnp.bfloat16),
        jax.ShapeDtypeStruct((B_pad, M_pad), jnp.bfloat16),
        jax.ShapeDtypeStruct((B_pad, 2 * L_pad), jnp.float32),
    )

    rna_rec_p, met_rec_p, mulv_p = pl.pallas_call(
        _vae_forward_kernel,
        out_shape=out_shapes,
        grid=(B_pad // TB,),
        in_specs=in_specs,
        out_specs=out_specs,
        compiler_params=pltpu.CompilerParams(
            dimension_semantics=("parallel",),       # shard batch tiles across TCs (v7x)
            vmem_limit_bytes=_vmem_limit_bytes()),   # generation-aware VMEM budget
    )(rna_p, met_p, eps_p, *weights, biases)

    rna_recon = rna_rec_p[:B, :R].astype(jnp.float32)
    met_recon = met_rec_p[:B, :M].astype(jnp.float32)
    mu = mulv_p[:B, :L]
    logvar = mulv_p[:B, L_pad:L_pad + L]
    return rna_recon, met_recon, mu, logvar


@functools.partial(jax.jit, static_argnames=("single_buffer_weights",))
def _forward_jit(rnaseq_data, metag_data, eps, packed, single_buffer_weights):
    return _forward_pallas(rnaseq_data, metag_data, eps, packed, single_buffer_weights)


_SINGLE_BUFFER_OK = None


def multi_omics_vae_forward(rnaseq_data, metag_data, eps, packed):
    """Pallas-backed forward: returns (rnaseq_recon, metag_recon, mu, logvar)."""
    global _SINGLE_BUFFER_OK
    if _SINGLE_BUFFER_OK is None:
        try:
            out = _forward_jit(rnaseq_data, metag_data, eps, packed,
                               single_buffer_weights=True)
            jax.block_until_ready(out)
            _SINGLE_BUFFER_OK = True
            return out
        except Exception:
            # Fallback if this jax build rejects Buffered(1) for resident blocks.
            _SINGLE_BUFFER_OK = False
    return _forward_jit(rnaseq_data, metag_data, eps, packed,
                        single_buffer_weights=_SINGLE_BUFFER_OK)


# ----------------------------------------------------------------------------
# Pure-JAX reference (unpadded params, same bf16 matmul operands / f32 accum)
# ----------------------------------------------------------------------------
def _reference_forward(rna, met, eps, p):
    bf16, f32 = _MATMUL_DTYPE, jnp.float32
    relu = lambda x: jnp.maximum(x, 0.0)

    def lin(x, w, b):
        return jnp.dot(x.astype(bf16), w.astype(bf16), preferred_element_type=f32) + b

    h_r = relu(lin(rna, p["w_re1"], p["b_re1"]))
    h_r = relu(lin(h_r, p["w_re2"], p["b_re2"]))
    h_m = relu(lin(met, p["w_me1"], p["b_me1"]))
    h_m = relu(lin(h_m, p["w_me2"], p["b_me2"]))
    comb = jnp.concatenate([h_r, h_m], axis=1)
    mu = lin(comb, p["w_mu"], p["b_mu"])
    lv = lin(comb, p["w_lv"], p["b_lv"])
    z = mu + eps * jnp.exp(0.5 * lv)
    d_r = relu(lin(z, p["w_rd1"], p["b_rd1"]))
    d_r = relu(lin(d_r, p["w_rd2"], p["b_rd2"]))
    rna_rec = lin(d_r, p["w_rd3"], p["b_rd3"])
    d_m = relu(lin(z, p["w_md1"], p["b_md1"]))
    d_m = relu(lin(d_m, p["w_md2"], p["b_md2"]))
    met_rec = lin(d_m, p["w_md3"], p["b_md3"])
    return rna_rec, met_rec, mu, lv


if __name__ == "__main__":
    # Small shapes consistent with the module (hidden/latent use module defaults).
    B = 8
    RNASEQ_DIM = 64
    METAG_DIM = 48
    HIDDEN_DIM = 128
    LATENT_DIM = 32

    key = jax.random.PRNGKey(0)
    k_params, k_rna, k_met, k_eps = jax.random.split(key, 4)

    raw_params = init_params(k_params, RNASEQ_DIM, METAG_DIM, HIDDEN_DIM, LATENT_DIM)
    packed_params = pack_params(raw_params)

    rnaseq_data = jax.random.normal(k_rna, (B, RNASEQ_DIM), jnp.float32)
    metag_data = jax.random.normal(k_met, (B, METAG_DIM), jnp.float32)
    eps = jax.random.normal(k_eps, (B, LATENT_DIM), jnp.float32)

    outs = multi_omics_vae_forward(rnaseq_data, metag_data, eps, packed_params)
    outs = jax.block_until_ready(outs)

    refs = _reference_forward(rnaseq_data, metag_data, eps, raw_params)
    # Tolerance covers bf16 MXU operands, split f32 accumulation of the fused
    # mu|logvar matmul, and bf16 quantization of the recon outputs.
    for o, r in zip(outs, refs):
        assert o.shape == r.shape, (o.shape, r.shape)
        err = float(jnp.max(jnp.abs(o - r)))
        assert err < 3e-2, err

    print("KERNEL_OK")
</pallas_src>

<mosaic_0001>
module attributes {stable_mosaic.version = 11 : i64} {
  func.func @_vae_forward_kernel(%arg0: i32, %arg1: memref<16x128xbf16, #tpu.memory_space<vmem>>, %arg2: memref<16x128xbf16, #tpu.memory_space<vmem>>, %arg3: memref<16x128xf32, #tpu.memory_space<vmem>>, %arg4: memref<128x128xbf16, #tpu.memory_space<vmem>>, %arg5: memref<128x128xbf16, #tpu.memory_space<vmem>>, %arg6: memref<128x128xbf16, #tpu.memory_space<vmem>>, %arg7: memref<128x128xbf16, #tpu.memory_space<vmem>>, %arg8: memref<128x256xbf16, #tpu.memory_space<vmem>>, %arg9: memref<128x256xbf16, #tpu.memory_space<vmem>>, %arg10: memref<128x256xbf16, #tpu.memory_space<vmem>>, %arg11: memref<128x128xbf16, #tpu.memory_space<vmem>>, %arg12: memref<128x128xbf16, #tpu.memory_space<vmem>>, %arg13: memref<128x128xbf16, #tpu.memory_space<vmem>>, %arg14: memref<128x128xbf16, #tpu.memory_space<vmem>>, %arg15: memref<10x256xf32, #tpu.memory_space<vmem>>, %arg16: memref<16x128xbf16, #tpu.memory_space<vmem>>, %arg17: memref<16x128xbf16, #tpu.memory_space<vmem>>, %arg18: memref<16x256xf32, #tpu.memory_space<vmem>>) attributes {dimension_semantics = [#tpu.dimension_semantics<parallel>], iteration_bounds = array<i64: 1>, scalar_prefetch = 0 : i64, scratch_operands = 0 : i64, tpu.core_type = #tpu.core_type<tc>, window_params = [{transform_indices = @transform_0, window_bounds = array<i64: 16, 128>}, {transform_indices = @transform_1, window_bounds = array<i64: 16, 128>}, {transform_indices = @transform_2, window_bounds = array<i64: 16, 128>}, {pipeline_mode = #tpu.pipeline_mode<synchronous>, transform_indices = @transform_3, window_bounds = array<i64: 128, 128>}, {pipeline_mode = #tpu.pipeline_mode<synchronous>, transform_indices = @transform_4, window_bounds = array<i64: 128, 128>}, {pipeline_mode = #tpu.pipeline_mode<synchronous>, transform_indices = @transform_5, window_bounds = array<i64: 128, 128>}, {pipeline_mode = #tpu.pipeline_mode<synchronous>, transform_indices = @transform_6, window_bounds = array<i64: 128, 128>}, {pipeline_mode = #tpu.pipeline_mode<synchronous>, transform_indices = @transform_7, window_bounds = array<i64: 128, 256>}, {pipeline_mode = #tpu.pipeline_mode<synchronous>, transform_indices = @transform_8, window_bounds = array<i64: 128, 256>}, {pipeline_mode = #tpu.pipeline_mode<synchronous>, transform_indices = @transform_9, window_bounds = array<i64: 128, 256>}, {pipeline_mode = #tpu.pipeline_mode<synchronous>, transform_indices = @transform_10, window_bounds = array<i64: 128, 128>}, {pipeline_mode = #tpu.pipeline_mode<synchronous>, transform_indices = @transform_11, window_bounds = array<i64: 128, 128>}, {pipeline_mode = #tpu.pipeline_mode<synchronous>, transform_indices = @transform_12, window_bounds = array<i64: 128, 128>}, {pipeline_mode = #tpu.pipeline_mode<synchronous>, transform_indices = @transform_13, window_bounds = array<i64: 128, 128>}, {pipeline_mode = #tpu.pipeline_mode<synchronous>, transform_indices = @transform_14, window_bounds = array<i64: 10, 256>}, {transform_indices = @transform_15, window_bounds = array<i64: 16, 128>}, {transform_indices = @transform_16, window_bounds = array<i64: 16, 128>}, {transform_indices = @transform_17, window_bounds = array<i64: 16, 256>}]} {
    %c0 = arith.constant 0 : index
    %c0_0 = arith.constant 0 : index
    %0 = vector.load %arg1[%c0, %c0_0] : memref<16x128xbf16, #tpu.memory_space<vmem>>, vector<16x128xbf16>
    %c0_1 = arith.constant 0 : index
    %c0_2 = arith.constant 0 : index
    %1 = vector.load %arg4[%c0_1, %c0_2] : memref<128x128xbf16, #tpu.memory_space<vmem>>, vector<128x128xbf16>
    %cst = arith.constant dense<0.000000e+00> : vector<16x128xf32>
    %2 = tpu.matmul %0, %1, %cst {dimension_numbers = #tpu.dot_dimension_numbers<[1], [0], [0], [1], [0, 0, 1, 1], [], []>} : vector<16x128xbf16>, vector<128x128xbf16>, vector<16x128xf32> -> vector<16x128xf32>
    %c0_3 = arith.constant 0 : index
    %c0_4 = arith.constant 0 : index
    %3 = vector.load %arg15[%c0_3, %c0_4] : memref<10x256xf32, #tpu.memory_space<vmem>>, vector<1x128xf32>
    %4 = vector.broadcast %3 : vector<1x128xf32> to vector<16x128xf32>
    %5 = arith.addf %2, %4 : vector<16x128xf32>
    %cst_5 = arith.constant 0.000000e+00 : f32
    %6 = vector.broadcast %cst_5 : f32 to vector<16x128xf32>
    %7 = arith.maximumf %5, %6 : vector<16x128xf32>
    %8 = arith.truncf %7 : vector<16x128xf32> to vector<16x128xbf16>
    %c0_6 = arith.constant 0 : index
    %c0_7 = arith.constant 0 : index
    %9 = vector.load %arg5[%c0_6, %c0_7] : memref<128x128xbf16, #tpu.memory_space<vmem>>, vector<128x128xbf16>
    %cst_8 = arith.constant dense<0.000000e+00> : vector<16x128xf32>
    %10 = tpu.matmul %8, %9, %cst_8 {dimension_numbers = #tpu.dot_dimension_numbers<[1], [0], [0], [1], [0, 0, 1, 1], [], []>} : vector<16x128xbf16>, vector<128x128xbf16>, vector<16x128xf32> -> vector<16x128xf32>
    %c1 = arith.constant 1 : index
    %c0_9 = arith.constant 0 : index
    %11 = vector.load %arg15[%c1, %c0_9] : memref<10x256xf32, #tpu.memory_space<vmem>>, vector<1x128xf32>
    %12 = vector.broadcast %11 : vector<1x128xf32> to vector<16x128xf32>
    %13 = arith.addf %10, %12 : vector<16x128xf32>
    %cst_10 = arith.constant 0.000000e+00 : f32
    %14 = vector.broadcast %cst_10 : f32 to vector<16x128xf32>
    %15 = arith.maximumf %13, %14 : vector<16x128xf32>
    %16 = arith.truncf %15 : vector<16x128xf32> to vector<16x128xbf16>
    %c0_11 = arith.constant 0 : index
    %c0_12 = arith.constant 0 : index
    %17 = vector.load %arg2[%c0_11, %c0_12] : memref<16x128xbf16, #tpu.memory_space<vmem>>, vector<16x128xbf16>
    %c0_13 = arith.constant 0 : index
    %c0_14 = arith.constant 0 : index
    %18 = vector.load %arg6[%c0_13, %c0_14] : memref<128x128xbf16, #tpu.memory_space<vmem>>, vector<128x128xbf16>
    %cst_15 = arith.constant dense<0.000000e+00> : vector<16x128xf32>
    %19 = tpu.matmul %17, %18, %cst_15 {dimension_numbers = #tpu.dot_dimension_numbers<[1], [0], [0], [1], [0, 0, 1, 1], [], []>} : vector<16x128xbf16>, vector<128x128xbf16>, vector<16x128xf32> -> vector<16x128xf32>
    %c2 = arith.constant 2 : index
    %c0_16 = arith.constant 0 : index
    %20 = vector.load %arg15[%c2, %c0_16] : memref<10x256xf32, #tpu.memory_space<vmem>>, vector<1x128xf32>
    %21 = vector.broadcast %20 : vector<1x128xf32> to vector<16x128xf32>
    %22 = arith.addf %19, %21 : vector<16x128xf32>
    %cst_17 = arith.constant 0.000000e+00 : f32
    %23 = vector.broadcast %cst_17 : f32 to vector<16x128xf32>
    %24 = arith.maximumf %22, %23 : vector<16x128xf32>
    %25 = arith.truncf %24 : vector<16x128xf32> to vector<16x128xbf16>
    %c0_18 = arith.constant 0 : index
    %c0_19 = arith.constant 0 : index
    %26 = vector.load %arg7[%c0_18, %c0_19] : memref<128x128xbf16, #tpu.memory_space<vmem>>, vector<128x128xbf16>
    %cst_20 = arith.constant dense<0.000000e+00> : vector<16x128xf32>
    %27 = tpu.matmul %25, %26, %cst_20 {dimension_numbers = #tpu.dot_dimension_numbers<[1], [0], [0], [1], [0, 0, 1, 1], [], []>} : vector<16x128xbf16>, vector<128x128xbf16>, vector<16x128xf32> -> vector<16x128xf32>
    %c3 = arith.constant 3 : index
    %c0_21 = arith.constant 0 : index
    %28 = vector.load %arg15[%c3, %c0_21] : memref<10x256xf32, #tpu.memory_space<vmem>>, vector<1x128xf32>
    %29 = vector.broadcast %28 : vector<1x128xf32> to vector<16x128xf32>
    %30 = arith.addf %27, %29 : vector<16x128xf32>
    %cst_22 = arith.constant 0.000000e+00 : f32
    %31 = vector.broadcast %cst_22 : f32 to vector<16x128xf32>
    %32 = arith.maximumf %30, %31 : vector<16x128xf32>
    %33 = arith.truncf %32 : vector<16x128xf32> to vector<16x128xbf16>
    %c0_23 = arith.constant 0 : index
    %c0_24 = arith.constant 0 : index
    %34 = vector.load %arg8[%c0_23, %c0_24] : memref<128x256xbf16, #tpu.memory_space<vmem>>, vector<128x256xbf16>
    %cst_25 = arith.constant dense<0.000000e+00> : vector<16x256xf32>
    %35 = tpu.matmul %16, %34, %cst_25 {dimension_numbers = #tpu.dot_dimension_numbers<[1], [0], [0], [1], [0, 0, 1, 1], [], []>} : vector<16x128xbf16>, vector<128x256xbf16>, vector<16x256xf32> -> vector<16x256xf32>
    %c0_26 = arith.constant 0 : index
    %c0_27 = arith.constant 0 : index
    %36 = vector.load %arg9[%c0_26, %c0_27] : memref<128x256xbf16, #tpu.memory_space<vmem>>, vector<128x256xbf16>
    %cst_28 = arith.constant dense<0.000000e+00> : vector<16x256xf32>
    %37 = tpu.matmul %33, %36, %cst_28 {dimension_numbers = #tpu.dot_dimension_numbers<[1], [0], [0], [1], [0, 0, 1, 1], [], []>} : vector<16x128xbf16>, vector<128x256xbf16>, vector<16x256xf32> -> vector<16x256xf32>
    %38 = arith.addf %35, %37 : vector<16x256xf32>
    %c4 = arith.constant 4 : index
    %c0_29 = arith.constant 0 : index
    %39 = vector.load %arg15[%c4, %c0_29] : memref<10x256xf32, #tpu.memory_space<vmem>>, vector<1x256xf32>
    %40 = vector.broadcast %39 : vector<1x256xf32> to vector<16x256xf32>
    %41 = arith.addf %38, %40 : vector<16x256xf32>
    %42 = vector.extract_strided_slice %41 {offsets = [0, 0], sizes = [16, 128], strides = [1, 1]} : vector<16x256xf32> to vector<16x128xf32>
    %43 = vector.extract_strided_slice %41 {offsets = [0, 128], sizes = [16, 128], strides = [1, 1]} : vector<16x256xf32> to vector<16x128xf32>
    %c0_30 = arith.constant 0 : index
    %c0_31 = arith.constant 0 : index
    %44 = vector.load %arg3[%c0_30, %c0_31] : memref<16x128xf32, #tpu.memory_space<vmem>>, vector<16x128xf32>
    %cst_32 = arith.constant 5.000000e-01 : f32
    %45 = vector.broadcast %cst_32 : f32 to vector<16x128xf32>
    %46 = arith.mulf %45, %43 : vector<16x128xf32>
    %47 = math.exp %46 : vector<16x128xf32>
    %48 = arith.mulf %44, %47 : vector<16x128xf32>
    %49 = arith.addf %42, %48 : vector<16x128xf32>
    %50 = arith.truncf %49 : vector<16x128xf32> to vector<16x128xbf16>
    %c0_33 = arith.constant 0 : index
    %c0_34 = arith.constant 0 : index
    %51 = vector.load %arg10[%c0_33, %c0_34] : memref<128x256xbf16, #tpu.memory_space<vmem>>, vector<128x256xbf16>
    %cst_35 = arith.constant dense<0.000000e+00> : vector<16x256xf32>
    %52 = tpu.matmul %50, %51, %cst_35 {dimension_numbers = #tpu.dot_dimension_numbers<[1], [0], [0], [1], [0, 0, 1, 1], [], []>} : vector<16x128xbf16>, vector<128x256xbf16>, vector<16x256xf32> -> vector<16x256xf32>
    %c5 = arith.constant 5 : index
    %c0_36 = arith.constant 0 : index
    %53 = vector.load %arg15[%c5, %c0_36] : memref<10x256xf32, #tpu.memory_space<vmem>>, vector<1x256xf32>
    %54 = vector.broadcast %53 : vector<1x256xf32> to vector<16x256xf32>
    %55 = arith.addf %52, %54 : vector<16x256xf32>
    %cst_37 = arith.constant 0.000000e+00 : f32
    %56 = vector.broadcast %cst_37 : f32 to vector<16x256xf32>
    %57 = arith.maximumf %55, %56 : vector<16x256xf32>
    %58 = arith.truncf %57 : vector<16x256xf32> to vector<16x256xbf16>
    %59 = vector.extract_strided_slice %58 {offsets = [0, 0], sizes = [16, 128], strides = [1, 1]} : vector<16x256xbf16> to vector<16x128xbf16>
    %60 = vector.extract_strided_slice %58 {offsets = [0, 128], sizes = [16, 128], strides = [1, 1]} : vector<16x256xbf16> to vector<16x128xbf16>
    %c0_38 = arith.constant 0 : index
    %c0_39 = arith.constant 0 : index
    %61 = vector.load %arg11[%c0_38, %c0_39] : memref<128x128xbf16, #tpu.memory_space<vmem>>, vector<128x128xbf16>
    %cst_40 = arith.constant dense<0.000000e+00> : vector<16x128xf32>
    %62 = tpu.matmul %59, %61, %cst_40 {dimension_numbers = #tpu.dot_dimension_numbers<[1], [0], [0], [1], [0, 0, 1, 1], [], []>} : vector<16x128xbf16>, vector<128x128xbf16>, vector<16x128xf32> -> vector<16x128xf32>
    %c6 = arith.constant 6 : index
    %c0_41 = arith.constant 0 : index
    %63 = vector.load %arg15[%c6, %c0_41] : memref<10x256xf32, #tpu.memory_space<vmem>>, vector<1x128xf32>
    %64 = vector.broadcast %63 : vector<1x128xf32> to vector<16x128xf32>
    %65 = arith.addf %62, %64 : vector<16x128xf32>
    %cst_42 = arith.constant 0.000000e+00 : f32
    %66 = vector.broadcast %cst_42 : f32 to vector<16x128xf32>
    %67 = arith.maximumf %65, %66 : vector<16x128xf32>
    %68 = arith.truncf %67 : vector<16x128xf32> to vector<16x128xbf16>
    %c0_43 = arith.constant 0 : index
    %c0_44 = arith.constant 0 : index
    %69 = vector.load %arg13[%c0_43, %c0_44] : memref<128x128xbf16, #tpu.memory_space<vmem>>, vector<128x128xbf16>
    %cst_45 = arith.constant dense<0.000000e+00> : vector<16x128xf32>
    %70 = tpu.matmul %68, %69, %cst_45 {dimension_numbers = #tpu.dot_dimension_numbers<[1], [0], [0], [1], [0, 0, 1, 1], [], []>} : vector<16x128xbf16>, vector<128x128xbf16>, vector<16x128xf32> -> vector<16x128xf32>
    %c8 = arith.constant 8 : index
    %c0_46 = arith.constant 0 : index
    %71 = vector.load %arg15[%c8, %c0_46] : memref<10x256xf32, #tpu.memory_space<vmem>>, vector<1x128xf32>
    %72 = vector.broadcast %71 : vector<1x128xf32> to vector<16x128xf32>
    %73 = arith.addf %70, %72 : vector<16x128xf32>
    %74 = arith.truncf %73 : vector<16x128xf32> to vector<16x128xbf16>
    %c0_47 = arith.constant 0 : index
    %c0_48 = arith.constant 0 : index
    %75 = vector.load %arg16[%c0_47, %c0_48] : memref<16x128xbf16, #tpu.memory_space<vmem>>, vector<16x128xbf16>
    tpu.vector_store %arg16[%c0_47, %c0_48], %74 {strides = array<i32>} : memref<16x128xbf16, #tpu.memory_space<vmem>>, vector<16x128xbf16>,
    %c0_49 = arith.constant 0 : index
    %c0_50 = arith.constant 0 : index
    %76 = vector.load %arg12[%c0_49, %c0_50] : memref<128x128xbf16, #tpu.memory_space<vmem>>, vector<128x128xbf16>
    %cst_51 = arith.constant dense<0.000000e+00> : vector<16x128xf32>
    %77 = tpu.matmul %60, %76, %cst_51 {dimension_numbers = #tpu.dot_dimension_numbers<[1], [0], [0], [1], [0, 0, 1, 1], [], []>} : vector<16x128xbf16>, vector<128x128xbf16>, vector<16x128xf32> -> vector<16x128xf32>
    %c7 = arith.constant 7 : index
    %c0_52 = arith.constant 0 : index
    %78 = vector.load %arg15[%c7, %c0_52] : memref<10x256xf32, #tpu.memory_space<vmem>>, vector<1x128xf32>
    %79 = vector.broadcast %78 : vector<1x128xf32> to vector<16x128xf32>
    %80 = arith.addf %77, %79 : vector<16x128xf32>
    %cst_53 = arith.constant 0.000000e+00 : f32
    %81 = vector.broadcast %cst_53 : f32 to vector<16x128xf32>
    %82 = arith.maximumf %80, %81 : vector<16x128xf32>
    %83 = arith.truncf %82 : vector<16x128xf32> to vector<16x128xbf16>
    %c0_54 = arith.constant 0 : index
    %c0_55 = arith.constant 0 : index
    %84 = vector.load %arg14[%c0_54, %c0_55] : memref<128x128xbf16, #tpu.memory_space<vmem>>, vector<128x128xbf16>
    %cst_56 = arith.constant dense<0.000000e+00> : vector<16x128xf32>
    %85 = tpu.matmul %83, %84, %cst_56 {dimension_numbers = #tpu.dot_dimension_numbers<[1], [0], [0], [1], [0, 0, 1, 1], [], []>} : vector<16x128xbf16>, vector<128x128xbf16>, vector<16x128xf32> -> vector<16x128xf32>
    %c9 = arith.constant 9 : index
    %c0_57 = arith.constant 0 : index
    %86 = vector.load %arg15[%c9, %c0_57] : memref<10x256xf32, #tpu.memory_space<vmem>>, vector<1x128xf32>
    %87 = vector.broadcast %86 : vector<1x128xf32> to vector<16x128xf32>
    %88 = arith.addf %85, %87 : vector<16x128xf32>
    %89 = arith.truncf %88 : vector<16x128xf32> to vector<16x128xbf16>
    %c0_58 = arith.constant 0 : index
    %c0_59 = arith.constant 0 : index
    %90 = vector.load %arg17[%c0_58, %c0_59] : memref<16x128xbf16, #tpu.memory_space<vmem>>, vector<16x128xbf16>
    tpu.vector_store %arg17[%c0_58, %c0_59], %89 {strides = array<i32>} : memref<16x128xbf16, #tpu.memory_space<vmem>>, vector<16x128xbf16>,
    %c0_60 = arith.constant 0 : index
    %c0_61 = arith.constant 0 : index
    %91 = vector.load %arg18[%c0_60, %c0_61] : memref<16x256xf32, #tpu.memory_space<vmem>>, vector<16x256xf32>
    tpu.vector_store %arg18[%c0_60, %c0_61], %41 {strides = array<i32>} : memref<16x256xf32, #tpu.memory_space<vmem>>, vector<16x256xf32>,
    return
  }
  func.func @transform_0(%arg0: i32) -> (i32, i32) {
    %c0_i32 = arith.constant 0 : i32
    %c0_i32_0 = arith.constant 0 : i32
    return %arg0, %c0_i32 : i32, i32
  }
  func.func @transform_1(%arg0: i32) -> (i32, i32) {
    %c0_i32 = arith.constant 0 : i32
    %c0_i32_0 = arith.constant 0 : i32
    return %arg0, %c0_i32 : i32, i32
  }
  func.func @transform_2(%arg0: i32) -> (i32, i32) {
    %c0_i32 = arith.constant 0 : i32
    %c0_i32_0 = arith.constant 0 : i32
    return %arg0, %c0_i32 : i32, i32
  }
  func.func @transform_3(%arg0: i32) -> (i32, i32) {
    %c0_i32 = arith.constant 0 : i32
    %c0_i32_0 = arith.constant 0 : i32
    %c0_i32_1 = arith.constant 0 : i32
    return %c0_i32, %c0_i32_0 : i32, i32
  }
  func.func @transform_4(%arg0: i32) -> (i32, i32) {
    %c0_i32 = arith.constant 0 : i32
    %c0_i32_0 = arith.constant 0 : i32
    %c0_i32_1 = arith.constant 0 : i32
    return %c0_i32, %c0_i32_0 : i32, i32
  }
  func.func @transform_5(%arg0: i32) -> (i32, i32) {
    %c0_i32 = arith.constant 0 : i32
    %c0_i32_0 = arith.constant 0 : i32
    %c0_i32_1 = arith.constant 0 : i32
    return %c0_i32, %c0_i32_0 : i32, i32
  }
  func.func @transform_6(%arg0: i32) -> (i32, i32) {
    %c0_i32 = arith.constant 0 : i32
    %c0_i32_0 = arith.constant 0 : i32
    %c0_i32_1 = arith.constant 0 : i32
    return %c0_i32, %c0_i32_0 : i32, i32
  }
  func.func @transform_7(%arg0: i32) -> (i32, i32) {
    %c0_i32 = arith.constant 0 : i32
    %c0_i32_0 = arith.constant 0 : i32
    %c0_i32_1 = arith.constant 0 : i32
    return %c0_i32, %c0_i32_0 : i32, i32
  }
  func.func @transform_8(%arg0: i32) -> (i32, i32) {
    %c0_i32 = arith.constant 0 : i32
    %c0_i32_0 = arith.constant 0 : i32
    %c0_i32_1 = arith.constant 0 : i32
    return %c0_i32, %c0_i32_0 : i32, i32
  }
  func.func @transform_9(%arg0: i32) -> (i32, i32) {
    %c0_i32 = arith.constant 0 : i32
    %c0_i32_0 = arith.constant 0 : i32
    %c0_i32_1 = arith.constant 0 : i32
    return %c0_i32, %c0_i32_0 : i32, i32
  }
  func.func @transform_10(%arg0: i32) -> (i32, i32) {
    %c0_i32 = arith.constant 0 : i32
    %c0_i32_0 = arith.constant 0 : i32
    %c0_i32_1 = arith.constant 0 : i32
    return %c0_i32, %c0_i32_0 : i32, i32
  }
  func.func @transform_11(%arg0: i32) -> (i32, i32) {
    %c0_i32 = arith.constant 0 : i32
    %c0_i32_0 = arith.constant 0 : i32
    %c0_i32_1 = arith.constant 0 : i32
    return %c0_i32, %c0_i32_0 : i32, i32
  }
  func.func @transform_12(%arg0: i32) -> (i32, i32) {
    %c0_i32 = arith.constant 0 : i32
    %c0_i32_0 = arith.constant 0 : i32
    %c0_i32_1 = arith.constant 0 : i32
    return %c0_i32, %c0_i32_0 : i32, i32
  }
  func.func @transform_13(%arg0: i32) -> (i32, i32) {
    %c0_i32 = arith.constant 0 : i32
    %c0_i32_0 = arith.constant 0 : i32
    %c0_i32_1 = arith.constant 0 : i32
    return %c0_i32, %c0_i32_0 : i32, i32
  }
  func.func @transform_14(%arg0: i32) -> (i32, i32) {
    %c0_i32 = arith.constant 0 : i32
    %c0_i32_0 = arith.constant 0 : i32
    %c0_i32_1 = arith.constant 0 : i32
    return %c0_i32, %c0_i32_0 : i32, i32
  }
  func.func @transform_15(%arg0: i32) -> (i32, i32) {
    %c0_i32 = arith.constant 0 : i32
    %c0_i32_0 = arith.constant 0 : i32
    return %arg0, %c0_i32 : i32, i32
  }
  func.func @transform_16(%arg0: i32) -> (i32, i32) {
    %c0_i32 = arith.constant 0 : i32
    %c0_i32_0 = arith.constant 0 : i32
    return %arg0, %c0_i32 : i32, i32
  }
  func.func @transform_17(%arg0: i32) -> (i32, i32) {
    %c0_i32 = arith.constant 0 : i32
    %c0_i32_0 = arith.constant 0 : i32
    return %arg0, %c0_i32 : i32, i32
  }
}

module attributes {stable_mosaic.version = 11 : i64} {
  func.func @_vae_forward_kernel(%arg0: i32, %arg1: memref<16x128xbf16, #tpu.memory_space<vmem>>, %arg2: memref<16x128xbf16, #tpu.memory_space<vmem>>, %arg3: memref<16x128xf32, #tpu.memory_space<vmem>>, %arg4: memref<128x128xbf16, #tpu.memory_space<vmem>>, %arg5: memref<128x128xbf16, #tpu.memory_space<vmem>>, %arg6: memref<128x128xbf16, #tpu.memory_space<vmem>>, %arg7: memref<128x128xbf16, #tpu.memory_space<vmem>>, %arg8: memref<128x256xbf16, #tpu.memory_space<vmem>>, %arg9: memref<128x256xbf16, #tpu.memory_space<vmem>>, %arg10: memref<128x256xbf16, #tpu.memory_space<vmem>>, %arg11: memref<128x128xbf16, #tpu.memory_space<vmem>>, %arg12: memref<128x128xbf16, #tpu.memory_space<vmem>>, %arg13: memref<128x128xbf16, #tpu.memory_space<vmem>>, %arg14: memref<128x128xbf16, #tpu.memory_space<vmem>>, %arg15: memref<10x256xf32, #tpu.memory_space<vmem>>, %arg16: memref<16x128xbf16, #tpu.memory_space<vmem>>, %arg17: memref<16x128xbf16, #tpu.memory_space<vmem>>, %arg18: memref<16x256xf32, #tpu.memory_space<vmem>>) attributes {dimension_semantics = [#tpu.dimension_semantics<parallel>], iteration_bounds = array<i64: 1>, scalar_prefetch = 0 : i64, scratch_operands = 0 : i64, tpu.core_type = #tpu.core_type<tc>, window_params = [{transform_indices = @transform_0, window_bounds = array<i64: 16, 128>}, {transform_indices = @transform_1, window_bounds = array<i64: 16, 128>}, {transform_indices = @transform_2, window_bounds = array<i64: 16, 128>}, {pipeline_mode = #tpu.pipeline_mode<synchronous>, transform_indices = @transform_3, window_bounds = array<i64: 128, 128>}, {pipeline_mode = #tpu.pipeline_mode<synchronous>, transform_indices = @transform_4, window_bounds = array<i64: 128, 128>}, {pipeline_mode = #tpu.pipeline_mode<synchronous>, transform_indices = @transform_5, window_bounds = array<i64: 128, 128>}, {pipeline_mode = #tpu.pipeline_mode<synchronous>, transform_indices = @transform_6, window_bounds = array<i64: 128, 128>}, {pipeline_mode = #tpu.pipeline_mode<synchronous>, transform_indices = @transform_7, window_bounds = array<i64: 128, 256>}, {pipeline_mode = #tpu.pipeline_mode<synchronous>, transform_indices = @transform_8, window_bounds = array<i64: 128, 256>}, {pipeline_mode = #tpu.pipeline_mode<synchronous>, transform_indices = @transform_9, window_bounds = array<i64: 128, 256>}, {pipeline_mode = #tpu.pipeline_mode<synchronous>, transform_indices = @transform_10, window_bounds = array<i64: 128, 128>}, {pipeline_mode = #tpu.pipeline_mode<synchronous>, transform_indices = @transform_11, window_bounds = array<i64: 128, 128>}, {pipeline_mode = #tpu.pipeline_mode<synchronous>, transform_indices = @transform_12, window_bounds = array<i64: 128, 128>}, {pipeline_mode = #tpu.pipeline_mode<synchronous>, transform_indices = @transform_13, window_bounds = array<i64: 128, 128>}, {pipeline_mode = #tpu.pipeline_mode<synchronous>, transform_indices = @transform_14, window_bounds = array<i64: 10, 256>}, {transform_indices = @transform_15, window_bounds = array<i64: 16, 128>}, {transform_indices = @transform_16, window_bounds = array<i64: 16, 128>}, {transform_indices = @transform_17, window_bounds = array<i64: 16, 256>}]} {
    %c0 = arith.constant 0 : index
    %c0_0 = arith.constant 0 : index
    %0 = vector.load %arg1[%c0, %c0_0] : memref<16x128xbf16, #tpu.memory_space<vmem>>, vector<16x128xbf16>
    %c0_1 = arith.constant 0 : index
    %c0_2 = arith.constant 0 : index
    %1 = vector.load %arg4[%c0_1, %c0_2] : memref<128x128xbf16, #tpu.memory_space<vmem>>, vector<128x128xbf16>
    %cst = arith.constant dense<0.000000e+00> : vector<16x128xf32>
    %2 = tpu.matmul %0, %1, %cst {dimension_numbers = #tpu.dot_dimension_numbers<[1], [0], [0], [1], [0, 0, 1, 1], [], []>} : vector<16x128xbf16>, vector<128x128xbf16>, vector<16x128xf32> -> vector<16x128xf32>
    %c0_3 = arith.constant 0 : index
    %c0_4 = arith.constant 0 : index
    %3 = vector.load %arg15[%c0_3, %c0_4] : memref<10x256xf32, #tpu.memory_space<vmem>>, vector<1x128xf32>
    %4 = vector.broadcast %3 : vector<1x128xf32> to vector<16x128xf32>
    %5 = arith.addf %2, %4 : vector<16x128xf32>
    %cst_5 = arith.constant 0.000000e+00 : f32
    %6 = vector.broadcast %cst_5 : f32 to vector<16x128xf32>
    %7 = arith.maximumf %5, %6 : vector<16x128xf32>
    %8 = arith.truncf %7 : vector<16x128xf32> to vector<16x128xbf16>
    %c0_6 = arith.constant 0 : index
    %c0_7 = arith.constant 0 : index
    %9 = vector.load %arg5[%c0_6, %c0_7] : memref<128x128xbf16, #tpu.memory_space<vmem>>, vector<128x128xbf16>
    %cst_8 = arith.constant dense<0.000000e+00> : vector<16x128xf32>
    %10 = tpu.matmul %8, %9, %cst_8 {dimension_numbers = #tpu.dot_dimension_numbers<[1], [0], [0], [1], [0, 0, 1, 1], [], []>} : vector<16x128xbf16>, vector<128x128xbf16>, vector<16x128xf32> -> vector<16x128xf32>
    %c1 = arith.constant 1 : index
    %c0_9 = arith.constant 0 : index
    %11 = vector.load %arg15[%c1, %c0_9] : memref<10x256xf32, #tpu.memory_space<vmem>>, vector<1x128xf32>
    %12 = vector.broadcast %11 : vector<1x128xf32> to vector<16x128xf32>
    %13 = arith.addf %10, %12 : vector<16x128xf32>
    %cst_10 = arith.constant 0.000000e+00 : f32
    %14 = vector.broadcast %cst_10 : f32 to vector<16x128xf32>
    %15 = arith.maximumf %13, %14 : vector<16x128xf32>
    %16 = arith.truncf %15 : vector<16x128xf32> to vector<16x128xbf16>
    %c0_11 = arith.constant 0 : index
    %c0_12 = arith.constant 0 : index
    %17 = vector.load %arg2[%c0_11, %c0_12] : memref<16x128xbf16, #tpu.memory_space<vmem>>, vector<16x128xbf16>
    %c0_13 = arith.constant 0 : index
    %c0_14 = arith.constant 0 : index
    %18 = vector.load %arg6[%c0_13, %c0_14] : memref<128x128xbf16, #tpu.memory_space<vmem>>, vector<128x128xbf16>
    %cst_15 = arith.constant dense<0.000000e+00> : vector<16x128xf32>
    %19 = tpu.matmul %17, %18, %cst_15 {dimension_numbers = #tpu.dot_dimension_numbers<[1], [0], [0], [1], [0, 0, 1, 1], [], []>} : vector<16x128xbf16>, vector<128x128xbf16>, vector<16x128xf32> -> vector<16x128xf32>
    %c2 = arith.constant 2 : index
    %c0_16 = arith.constant 0 : index
    %20 = vector.load %arg15[%c2, %c0_16] : memref<10x256xf32, #tpu.memory_space<vmem>>, vector<1x128xf32>
    %21 = vector.broadcast %20 : vector<1x128xf32> to vector<16x128xf32>
    %22 = arith.addf %19, %21 : vector<16x128xf32>
    %cst_17 = arith.constant 0.000000e+00 : f32
    %23 = vector.broadcast %cst_17 : f32 to vector<16x128xf32>
    %24 = arith.maximumf %22, %23 : vector<16x128xf32>
    %25 = arith.truncf %24 : vector<16x128xf32> to vector<16x128xbf16>
    %c0_18 = arith.constant 0 : index
    %c0_19 = arith.constant 0 : index
    %26 = vector.load %arg7[%c0_18, %c0_19] : memref<128x128xbf16, #tpu.memory_space<vmem>>, vector<128x128xbf16>
    %cst_20 = arith.constant dense<0.000000e+00> : vector<16x128xf32>
    %27 = tpu.matmul %25, %26, %cst_20 {dimension_numbers = #tpu.dot_dimension_numbers<[1], [0], [0], [1], [0, 0, 1, 1], [], []>} : vector<16x128xbf16>, vector<128x128xbf16>, vector<16x128xf32> -> vector<16x128xf32>
    %c3 = arith.constant 3 : index
    %c0_21 = arith.constant 0 : index
    %28 = vector.load %arg15[%c3, %c0_21] : memref<10x256xf32, #tpu.memory_space<vmem>>, vector<1x128xf32>
    %29 = vector.broadcast %28 : vector<1x128xf32> to vector<16x128xf32>
    %30 = arith.addf %27, %29 : vector<16x128xf32>
    %cst_22 = arith.constant 0.000000e+00 : f32
    %31 = vector.broadcast %cst_22 : f32 to vector<16x128xf32>
    %32 = arith.maximumf %30, %31 : vector<16x128xf32>
    %33 = arith.truncf %32 : vector<16x128xf32> to vector<16x128xbf16>
    %c0_23 = arith.constant 0 : index
    %c0_24 = arith.constant 0 : index
    %34 = vector.load %arg8[%c0_23, %c0_24] : memref<128x256xbf16, #tpu.memory_space<vmem>>, vector<128x256xbf16>
    %cst_25 = arith.constant dense<0.000000e+00> : vector<16x256xf32>
    %35 = tpu.matmul %16, %34, %cst_25 {dimension_numbers = #tpu.dot_dimension_numbers<[1], [0], [0], [1], [0, 0, 1, 1], [], []>} : vector<16x128xbf16>, vector<128x256xbf16>, vector<16x256xf32> -> vector<16x256xf32>
    %c0_26 = arith.constant 0 : index
    %c0_27 = arith.constant 0 : index
    %36 = vector.load %arg9[%c0_26, %c0_27] : memref<128x256xbf16, #tpu.memory_space<vmem>>, vector<128x256xbf16>
    %cst_28 = arith.constant dense<0.000000e+00> : vector<16x256xf32>
    %37 = tpu.matmul %33, %36, %cst_28 {dimension_numbers = #tpu.dot_dimension_numbers<[1], [0], [0], [1], [0, 0, 1, 1], [], []>} : vector<16x128xbf16>, vector<128x256xbf16>, vector<16x256xf32> -> vector<16x256xf32>
    %38 = arith.addf %35, %37 : vector<16x256xf32>
    %c4 = arith.constant 4 : index
    %c0_29 = arith.constant 0 : index
    %39 = vector.load %arg15[%c4, %c0_29] : memref<10x256xf32, #tpu.memory_space<vmem>>, vector<1x256xf32>
    %40 = vector.broadcast %39 : vector<1x256xf32> to vector<16x256xf32>
    %41 = arith.addf %38, %40 : vector<16x256xf32>
    %42 = vector.extract_strided_slice %41 {offsets = [0, 0], sizes = [16, 128], strides = [1, 1]} : vector<16x256xf32> to vector<16x128xf32>
    %43 = vector.extract_strided_slice %41 {offsets = [0, 128], sizes = [16, 128], strides = [1, 1]} : vector<16x256xf32> to vector<16x128xf32>
    %c0_30 = arith.constant 0 : index
    %c0_31 = arith.constant 0 : index
    %44 = vector.load %arg3[%c0_30, %c0_31] : memref<16x128xf32, #tpu.memory_space<vmem>>, vector<16x128xf32>
    %cst_32 = arith.constant 5.000000e-01 : f32
    %45 = vector.broadcast %cst_32 : f32 to vector<16x128xf32>
    %46 = arith.mulf %45, %43 : vector<16x128xf32>
    %47 = math.exp %46 : vector<16x128xf32>
    %48 = arith.mulf %44, %47 : vector<16x128xf32>
    %49 = arith.addf %42, %48 : vector<16x128xf32>
    %50 = arith.truncf %49 : vector<16x128xf32> to vector<16x128xbf16>
    %c0_33 = arith.constant 0 : index
    %c0_34 = arith.constant 0 : index
    %51 = vector.load %arg10[%c0_33, %c0_34] : memref<128x256xbf16, #tpu.memory_space<vmem>>, vector<128x256xbf16>
    %cst_35 = arith.constant dense<0.000000e+00> : vector<16x256xf32>
    %52 = tpu.matmul %50, %51, %cst_35 {dimension_numbers = #tpu.dot_dimension_numbers<[1], [0], [0], [1], [0, 0, 1, 1], [], []>} : vector<16x128xbf16>, vector<128x256xbf16>, vector<16x256xf32> -> vector<16x256xf32>
    %c5 = arith.constant 5 : index
    %c0_36 = arith.constant 0 : index
    %53 = vector.load %arg15[%c5, %c0_36] : memref<10x256xf32, #tpu.memory_space<vmem>>, vector<1x256xf32>
    %54 = vector.broadcast %53 : vector<1x256xf32> to vector<16x256xf32>
    %55 = arith.addf %52, %54 : vector<16x256xf32>
    %cst_37 = arith.constant 0.000000e+00 : f32
    %56 = vector.broadcast %cst_37 : f32 to vector<16x256xf32>
    %57 = arith.maximumf %55, %56 : vector<16x256xf32>
    %58 = arith.truncf %57 : vector<16x256xf32> to vector<16x256xbf16>
    %59 = vector.extract_strided_slice %58 {offsets = [0, 0], sizes = [16, 128], strides = [1, 1]} : vector<16x256xbf16> to vector<16x128xbf16>
    %60 = vector.extract_strided_slice %58 {offsets = [0, 128], sizes = [16, 128], strides = [1, 1]} : vector<16x256xbf16> to vector<16x128xbf16>
    %c0_38 = arith.constant 0 : index
    %c0_39 = arith.constant 0 : index
    %61 = vector.load %arg11[%c0_38, %c0_39] : memref<128x128xbf16, #tpu.memory_space<vmem>>, vector<128x128xbf16>
    %cst_40 = arith.constant dense<0.000000e+00> : vector<16x128xf32>
    %62 = tpu.matmul %59, %61, %cst_40 {dimension_numbers = #tpu.dot_dimension_numbers<[1], [0], [0], [1], [0, 0, 1, 1], [], []>} : vector<16x128xbf16>, vector<128x128xbf16>, vector<16x128xf32> -> vector<16x128xf32>
    %c6 = arith.constant 6 : index
    %c0_41 = arith.constant 0 : index
    %63 = vector.load %arg15[%c6, %c0_41] : memref<10x256xf32, #tpu.memory_space<vmem>>, vector<1x128xf32>
    %64 = vector.broadcast %63 : vector<1x128xf32> to vector<16x128xf32>
    %65 = arith.addf %62, %64 : vector<16x128xf32>
    %cst_42 = arith.constant 0.000000e+00 : f32
    %66 = vector.broadcast %cst_42 : f32 to vector<16x128xf32>
    %67 = arith.maximumf %65, %66 : vector<16x128xf32>
    %68 = arith.truncf %67 : vector<16x128xf32> to vector<16x128xbf16>
    %c0_43 = arith.constant 0 : index
    %c0_44 = arith.constant 0 : index
    %69 = vector.load %arg13[%c0_43, %c0_44] : memref<128x128xbf16, #tpu.memory_space<vmem>>, vector<128x128xbf16>
    %cst_45 = arith.constant dense<0.000000e+00> : vector<16x128xf32>
    %70 = tpu.matmul %68, %69, %cst_45 {dimension_numbers = #tpu.dot_dimension_numbers<[1], [0], [0], [1], [0, 0, 1, 1], [], []>} : vector<16x128xbf16>, vector<128x128xbf16>, vector<16x128xf32> -> vector<16x128xf32>
    %c8 = arith.constant 8 : index
    %c0_46 = arith.constant 0 : index
    %71 = vector.load %arg15[%c8, %c0_46] : memref<10x256xf32, #tpu.memory_space<vmem>>, vector<1x128xf32>
    %72 = vector.broadcast %71 : vector<1x128xf32> to vector<16x128xf32>
    %73 = arith.addf %70, %72 : vector<16x128xf32>
    %74 = arith.truncf %73 : vector<16x128xf32> to vector<16x128xbf16>
    %c0_47 = arith.constant 0 : index
    %c0_48 = arith.constant 0 : index
    %75 = vector.load %arg16[%c0_47, %c0_48] : memref<16x128xbf16, #tpu.memory_space<vmem>>, vector<16x128xbf16>
    tpu.vector_store %arg16[%c0_47, %c0_48], %74 {strides = array<i32>} : memref<16x128xbf16, #tpu.memory_space<vmem>>, vector<16x128xbf16>,
    %c0_49 = arith.constant 0 : index
    %c0_50 = arith.constant 0 : index
    %76 = vector.load %arg12[%c0_49, %c0_50] : memref<128x128xbf16, #tpu.memory_space<vmem>>, vector<128x128xbf16>
    %cst_51 = arith.constant dense<0.000000e+00> : vector<16x128xf32>
    %77 = tpu.matmul %60, %76, %cst_51 {dimension_numbers = #tpu.dot_dimension_numbers<[1], [0], [0], [1], [0, 0, 1, 1], [], []>} : vector<16x128xbf16>, vector<128x128xbf16>, vector<16x128xf32> -> vector<16x128xf32>
    %c7 = arith.constant 7 : index
    %c0_52 = arith.constant 0 : index
    %78 = vector.load %arg15[%c7, %c0_52] : memref<10x256xf32, #tpu.memory_space<vmem>>, vector<1x128xf32>
    %79 = vector.broadcast %78 : vector<1x128xf32> to vector<16x128xf32>
    %80 = arith.addf %77, %79 : vector<16x128xf32>
    %cst_53 = arith.constant 0.000000e+00 : f32
    %81 = vector.broadcast %cst_53 : f32 to vector<16x128xf32>
    %82 = arith.maximumf %80, %81 : vector<16x128xf32>
    %83 = arith.truncf %82 : vector<16x128xf32> to vector<16x128xbf16>
    %c0_54 = arith.constant 0 : index
    %c0_55 = arith.constant 0 : index
    %84 = vector.load %arg14[%c0_54, %c0_55] : memref<128x128xbf16, #tpu.memory_space<vmem>>, vector<128x128xbf16>
    %cst_56 = arith.constant dense<0.000000e+00> : vector<16x128xf32>
    %85 = tpu.matmul %83, %84, %cst_56 {dimension_numbers = #tpu.dot_dimension_numbers<[1], [0], [0], [1], [0, 0, 1, 1], [], []>} : vector<16x128xbf16>, vector<128x128xbf16>, vector<16x128xf32> -> vector<16x128xf32>
    %c9 = arith.constant 9 : index
    %c0_57 = arith.constant 0 : index
    %86 = vector.load %arg15[%c9, %c0_57] : memref<10x256xf32, #tpu.memory_space<vmem>>, vector<1x128xf32>
    %87 = vector.broadcast %86 : vector<1x128xf32> to vector<16x128xf32>
    %88 = arith.addf %85, %87 : vector<16x128xf32>
    %89 = arith.truncf %88 : vector<16x128xf32> to vector<16x128xbf16>
    %c0_58 = arith.constant 0 : index
    %c0_59 = arith.constant 0 : index
    %90 = vector.load %arg17[%c0_58, %c0_59] : memref<16x128xbf16, #tpu.memory_space<vmem>>, vector<16x128xbf16>
    tpu.vector_store %arg17[%c0_58, %c0_59], %89 {strides = array<i32>} : memref<16x128xbf16, #tpu.memory_space<vmem>>, vector<16x128xbf16>,
    %c0_60 = arith.constant 0 : index
    %c0_61 = arith.constant 0 : index
    %91 = vector.load %arg18[%c0_60, %c0_61] : memref<16x256xf32, #tpu.memory_space<vmem>>, vector<16x256xf32>
    tpu.vector_store %arg18[%c0_60, %c0_61], %41 {strides = array<i32>} : memref<16x256xf32, #tpu.memory_space<vmem>>, vector<16x256xf32>,
    return
  }
  func.func @transform_0(%arg0: i32) -> (i32, i32) {
    %c0_i32 = arith.constant 0 : i32
    %c0_i32_0 = arith.constant 0 : i32
    return %arg0, %c0_i32 : i32, i32
  }
  func.func @transform_1(%arg0: i32) -> (i32, i32) {
    %c0_i32 = arith.constant 0 : i32
    %c0_i32_0 = arith.constant 0 : i32
    return %arg0, %c0_i32 : i32, i32
  }
  func.func @transform_2(%arg0: i32) -> (i32, i32) {
    %c0_i32 = arith.constant 0 : i32
    %c0_i32_0 = arith.constant 0 : i32
    return %arg0, %c0_i32 : i32, i32
  }
  func.func @transform_3(%arg0: i32) -> (i32, i32) {
    %c0_i32 = arith.constant 0 : i32
    %c0_i32_0 = arith.constant 0 : i32
    %c0_i32_1 = arith.constant 0 : i32
    return %c0_i32, %c0_i32_0 : i32, i32
  }
  func.func @transform_4(%arg0: i32) -> (i32, i32) {
    %c0_i32 = arith.constant 0 : i32
    %c0_i32_0 = arith.constant 0 : i32
    %c0_i32_1 = arith.constant 0 : i32
    return %c0_i32, %c0_i32_0 : i32, i32
  }
  func.func @transform_5(%arg0: i32) -> (i32, i32) {
    %c0_i32 = arith.constant 0 : i32
    %c0_i32_0 = arith.constant 0 : i32
    %c0_i32_1 = arith.constant 0 : i32
    return %c0_i32, %c0_i32_0 : i32, i32
  }
  func.func @transform_6(%arg0: i32) -> (i32, i32) {
    %c0_i32 = arith.constant 0 : i32
    %c0_i32_0 = arith.constant 0 : i32
    %c0_i32_1 = arith.constant 0 : i32
    return %c0_i32, %c0_i32_0 : i32, i32
  }
  func.func @transform_7(%arg0: i32) -> (i32, i32) {
    %c0_i32 = arith.constant 0 : i32
    %c0_i32_0 = arith.constant 0 : i32
    %c0_i32_1 = arith.constant 0 : i32
    return %c0_i32, %c0_i32_0 : i32, i32
  }
  func.func @transform_8(%arg0: i32) -> (i32, i32) {
    %c0_i32 = arith.constant 0 : i32
    %c0_i32_0 = arith.constant 0 : i32
    %c0_i32_1 = arith.constant 0 : i32
    return %c0_i32, %c0_i32_0 : i32, i32
  }
  func.func @transform_9(%arg0: i32) -> (i32, i32) {
    %c0_i32 = arith.constant 0 : i32
    %c0_i32_0 = arith.constant 0 : i32
    %c0_i32_1 = arith.constant 0 : i32
    return %c0_i32, %c0_i32_0 : i32, i32
  }
  func.func @transform_10(%arg0: i32) -> (i32, i32) {
    %c0_i32 = arith.constant 0 : i32
    %c0_i32_0 = arith.constant 0 : i32
    %c0_i32_1 = arith.constant 0 : i32
    return %c0_i32, %c0_i32_0 : i32, i32
  }
  func.func @transform_11(%arg0: i32) -> (i32, i32) {
    %c0_i32 = arith.constant 0 : i32
    %c0_i32_0 = arith.constant 0 : i32
    %c0_i32_1 = arith.constant 0 : i32
    return %c0_i32, %c0_i32_0 : i32, i32
  }
  func.func @transform_12(%arg0: i32) -> (i32, i32) {
    %c0_i32 = arith.constant 0 : i32
    %c0_i32_0 = arith.constant 0 : i32
    %c0_i32_1 = arith.constant 0 : i32
    return %c0_i32, %c0_i32_0 : i32, i32
  }
  func.func @transform_13(%arg0: i32) -> (i32, i32) {
    %c0_i32 = arith.constant 0 : i32
    %c0_i32_0 = arith.constant 0 : i32
    %c0_i32_1 = arith.constant 0 : i32
    return %c0_i32, %c0_i32_0 : i32, i32
  }
  func.func @transform_14(%arg0: i32) -> (i32, i32) {
    %c0_i32 = arith.constant 0 : i32
    %c0_i32_0 = arith.constant 0 : i32
    %c0_i32_1 = arith.constant 0 : i32
    return %c0_i32, %c0_i32_0 : i32, i32
  }
  func.func @transform_15(%arg0: i32) -> (i32, i32) {
    %c0_i32 = arith.constant 0 : i32
    %c0_i32_0 = arith.constant 0 : i32
    return %arg0, %c0_i32 : i32, i32
  }
  func.func @transform_16(%arg0: i32) -> (i32, i32) {
    %c0_i32 = arith.constant 0 : i32
    %c0_i32_0 = arith.constant 0 : i32
    return %arg0, %c0_i32 : i32, i32
  }
  func.func @transform_17(%arg0: i32) -> (i32, i32) {
    %c0_i32 = arith.constant 0 : i32
    %c0_i32_0 = arith.constant 0 : i32
    return %arg0, %c0_i32 : i32, i32
  }
}

</mosaic_0001>

<llo_original>
// kernel: _forward_jit.1
$region0: #{_forward_jit.1}
  #allocation0 [shape = 'u32[]', space=smem, size = 0x4, offset = 0x4, fixed_abs, tag = 'smem constant byte address 0x4 - core index']
  #allocation1 [shape = 'u32[72,128]{1,0:T(1,128)}', space=vmem, size = 0x9000, scoped, tag = 'internal scratch']
  %s0 = inlined_call_operand.vmem [shape: bf16[16,128], index: 0, kind: input, shape index: {}]
  %s1 = inlined_call_operand.vmem [shape: bf16[16,128], index: 1, kind: input, shape index: {}]
  %s2 = inlined_call_operand.vmem [shape: f32[16,128], index: 2, kind: input, shape index: {}]
  %s3 = inlined_call_operand.hbm [shape: bf16[128,128], index: 3, kind: input, shape index: {}]
  %s4 = inlined_call_operand.hbm [shape: bf16[128,128], index: 4, kind: input, shape index: {}]
  %s5 = inlined_call_operand.hbm [shape: bf16[128,128], index: 5, kind: input, shape index: {}]
  %s6 = inlined_call_operand.hbm [shape: bf16[128,128], index: 6, kind: input, shape index: {}]
  %s7 = inlined_call_operand.hbm [shape: bf16[128,256], index: 7, kind: input, shape index: {}]
  %s8 = inlined_call_operand.hbm [shape: bf16[128,256], index: 8, kind: input, shape index: {}]
  %s9 = inlined_call_operand.hbm [shape: bf16[128,256], index: 9, kind: input, shape index: {}]
  %s10 = inlined_call_operand.hbm [shape: bf16[128,128], index: 10, kind: input, shape index: {}]
  %s11 = inlined_call_operand.hbm [shape: bf16[128,128], index: 11, kind: input, shape index: {}]
  %s12 = inlined_call_operand.hbm [shape: bf16[128,128], index: 12, kind: input, shape index: {}]
  %s13 = inlined_call_operand.hbm [shape: bf16[128,128], index: 13, kind: input, shape index: {}]
  %s14 = inlined_call_operand.hbm [shape: f32[10,256], index: 14, kind: input, shape index: {}]
  %s15 = inlined_call_operand.vmem [shape: bf16[16,128], index: 15, kind: output, shape index: {0}]
  %s16 = inlined_call_operand.vmem [shape: bf16[16,128], index: 16, kind: output, shape index: {1}]
  %s17 = inlined_call_operand.vmem [shape: f32[16,256], index: 17, kind: output, shape index: {2}]
  %18 = xla_tuple %s15, %s16, %s17
  %s19 = sld [smem:[#allocation0]]
  $region134: #{_forward_jit.1} parent=0
    _
  %s21 = ssub.s32 1, %s19
  %s22 = scalar_select 0, %s21, %s19
  $region1: #{_forward_jit.1} parent=0
    #allocation2 [shape = 'u8[32768]{0}', space=vmem, size = 0x8000, scoped, tag = 'input window, operand 3, single buffered']
    #allocation3 [shape = 's32[1]{0}', space=sflag, size = 0x4, scoped, tag = 'scoped memory for _forward_jit.1']
    #allocation4 [shape = 'u8[32768]{0}', space=vmem, size = 0x8000, scoped, tag = 'input window, operand 4, single buffered']
    #allocation5 [shape = 's32[1]{0}', space=sflag, size = 0x4, scoped, tag = 'scoped memory for _forward_jit.1']
    #allocation6 [shape = 'u8[32768]{0}', space=vmem, size = 0x8000, scoped, tag = 'input window, operand 5, single buffered']
    #allocation7 [shape = 'u8[32768]{0}', space=vmem, size = 0x8000, scoped, tag = 'input window, operand 6, single buffered']
    #allocation8 [shape = 's32[1]{0}', space=sflag, size = 0x4, scoped, tag = 'scoped memory for _forward_jit.1']
    #allocation9 [shape = 'u8[65536]{0}', space=vmem, size = 0x10000, scoped, tag = 'input window, operand 7, single buffered']
    #allocation10 [shape = 'u8[65536]{0}', space=vmem, size = 0x10000, scoped, tag = 'input window, operand 8, single buffered']
    #allocation11 [shape = 's32[1]{0}', space=sflag, size = 0x4, scoped, tag = 'scoped memory for _forward_jit.1']
    #allocation12 [shape = 'u8[65536]{0}', space=vmem, size = 0x10000, scoped, tag = 'input window, operand 9, single buffered']
    #allocation13 [shape = 'u8[32768]{0}', space=vmem, size = 0x8000, scoped, tag = 'input window, operand 10, single buffered']
    #allocation14 [shape = 's32[1]{0}', space=sflag, size = 0x4, scoped, tag = 'scoped memory for _forward_jit.1']
    #allocation15 [shape = 'u8[32768]{0}', space=vmem, size = 0x8000, scoped, tag = 'input window, operand 11, single buffered']
    #allocation16 [shape = 'u8[32768]{0}', space=vmem, size = 0x8000, scoped, tag = 'input window, operand 12, single buffered']
    #allocation17 [shape = 's32[1]{0}', space=sflag, size = 0x4, scoped, tag = 'scoped memory for _forward_jit.1']
    #allocation18 [shape = 'u8[32768]{0}', space=vmem, size = 0x8000, scoped, tag = 'input window, operand 13, single buffered']
    #allocation19 [shape = 'u8[16384]{0}', space=vmem, size = 0x4000, scoped, tag = 'input window, operand 14, single buffered']
    #allocation20 [shape = 's32[1]{0}', space=sflag, size = 0x4, scoped, tag = 'scoped memory for _forward_jit.1']
    %23 = vsyncpa [#allocation3], 0
    %24 = vsyncpa [#allocation5], 0
    %25 = vsyncpa [#allocation8], 0
    %26 = vsyncpa [#allocation11], 0
    %27 = vsyncpa [#allocation14], 0
    %28 = vsyncpa [#allocation17], 0
    %29 = vsyncpa [#allocation20], 0
    // Predicated region
    $region2: #{_forward_jit.1} parent=1 // pred_check
      _
    $region3: #{_forward_jit.1} parent=1 // pred_check_branch
      %31 = sbr.rel (0) target = $region5
    $region4: #{_forward_jit.1} parent=1 // pred_region
      _
    $region5: #{_forward_jit.1} parent=1 // pred_fallthru
      _
    // Predicated region
    $region6: #{_forward_jit.1} parent=1 // pred_check
      _
    $region7: #{_forward_jit.1} parent=1 // pred_check_branch
      %33 = sbr.rel (0) target = $region9
    $region8: #{_forward_jit.1} parent=1 // pred_region
      _
    $region9: #{_forward_jit.1} parent=1 // pred_fallthru
      _
    // Predicated region
    $region10: #{_forward_jit.1} parent=1 // pred_check
      _
    $region11: #{_forward_jit.1} parent=1 // pred_check_branch
      %35 = sbr.rel (0) target = $region13
    $region12: #{_forward_jit.1} parent=1 // pred_region
      _
    $region13: #{_forward_jit.1} parent=1 // pred_fallthru
      _
    // Predicated region
    $region14: #{_forward_jit.1} parent=1 // pred_check
      _
    $region15: #{_forward_jit.1} parent=1 // pred_check_branch
      %37 = sbr.rel (0) target = $region17
    $region16: #{_forward_jit.1} parent=1 // pred_region
      %39 = vsyncadd [#allocation3], 0
      %s40 = sshll.u32 %s3, 4
      %s41 = int_to_ptr.hbm [resolvable:$true] %s40
      %s42 = sshll.u32 [#allocation2], 4
      %s43 = int_to_ptr.vmem [resolvable:$true] %s42
      %48 = dma.hbm_to_vmem [thread:$0]  %s41, 1024, %s43, [#allocation3], 64, 64, 4
    $region17: #{_forward_jit.1} parent=1 // pred_fallthru
      _
    // Predicated region
    $region18: #{_forward_jit.1} parent=1 // pred_check
      _
    $region19: #{_forward_jit.1} parent=1 // pred_check_branch
      %50 = sbr.rel (0) target = $region21
    $region20: #{_forward_jit.1} parent=1 // pred_region
      %52 = vsyncadd [#allocation5], 0
      %s53 = sshll.u32 %s4, 4
      %s54 = int_to_ptr.hbm [resolvable:$true] %s53
      %s55 = sshll.u32 [#allocation4], 4
      %s56 = int_to_ptr.vmem [resolvable:$true] %s55
      %61 = dma.hbm_to_vmem [thread:$0]  %s54, 1024, %s56, [#allocation5], 64, 64, 4
    $region21: #{_forward_jit.1} parent=1 // pred_fallthru
      _
    // Predicated region
    $region22: #{_forward_jit.1} parent=1 // pred_check
      _
    $region23: #{_forward_jit.1} parent=1 // pred_check_branch
      %63 = sbr.rel (0) target = $region25
    $region24: #{_forward_jit.1} parent=1 // pred_region
      %65 = vsyncadd [#allocation5], 0
      %s66 = sshll.u32 %s5, 4
      %s67 = int_to_ptr.hbm [resolvable:$true] %s66
      %s68 = sshll.u32 [#allocation6], 4
      %s69 = int_to_ptr.vmem [resolvable:$true] %s68
      %74 = dma.hbm_to_vmem [thread:$0]  %s67, 1024, %s69, [#allocation5], 64, 64, 4
    $region25: #{_forward_jit.1} parent=1 // pred_fallthru
      _
    // Predicated region
    $region26: #{_forward_jit.1} parent=1 // pred_check
      _
    $region27: #{_forward_jit.1} parent=1 // pred_check_branch
      %76 = sbr.rel (0) target = $region29
    $region28: #{_forward_jit.1} parent=1 // pred_region
      %78 = vsyncadd [#allocation8], 0
      %s79 = sshll.u32 %s6, 4
      %s80 = int_to_ptr.hbm [resolvable:$true] %s79
      %s81 = sshll.u32 [#allocation7], 4
      %s82 = int_to_ptr.vmem [resolvable:$true] %s81
      %87 = dma.hbm_to_vmem [thread:$0]  %s80, 1024, %s82, [#allocation8], 64, 64, 4
    $region29: #{_forward_jit.1} parent=1 // pred_fallthru
      _
    // Predicated region
    $region30: #{_forward_jit.1} parent=1 // pred_check
      _
    $region31: #{_forward_jit.1} parent=1 // pred_check_branch
      %89 = sbr.rel (0) target = $region33
    $region32: #{_forward_jit.1} parent=1 // pred_region
      %91 = vsyncadd [#allocation8], 0
      %s92 = sshll.u32 %s7, 4
      %s93 = int_to_ptr.hbm [resolvable:$true] %s92
      %s94 = sshll.u32 [#allocation9], 4
      %s95 = int_to_ptr.vmem [resolvable:$true] %s94
      %100 = dma.hbm_to_vmem [thread:$0]  %s93, 2048, %s95, [#allocation8], 128, 128, 8
    $region33: #{_forward_jit.1} parent=1 // pred_fallthru
      _
    // Predicated region
    $region34: #{_forward_jit.1} parent=1 // pred_check
      _
    $region35: #{_forward_jit.1} parent=1 // pred_check_branch
      %102 = sbr.rel (0) target = $region37
    $region36: #{_forward_jit.1} parent=1 // pred_region
      %104 = vsyncadd [#allocation11], 0
      %s105 = sshll.u32 %s8, 4
      %s106 = int_to_ptr.hbm [resolvable:$true] %s105
      %s107 = sshll.u32 [#allocation10], 4
      %s108 = int_to_ptr.vmem [resolvable:$true] %s107
      %113 = dma.hbm_to_vmem [thread:$0]  %s106, 2048, %s108, [#allocation11], 128, 128, 8
    $region37: #{_forward_jit.1} parent=1 // pred_fallthru
      _
    // Predicated region
    $region38: #{_forward_jit.1} parent=1 // pred_check
      _
    $region39: #{_forward_jit.1} parent=1 // pred_check_branch
      %115 = sbr.rel (0) target = $region41
    $region40: #{_forward_jit.1} parent=1 // pred_region
      %117 = vsyncadd [#allocation11], 0
      %s118 = sshll.u32 %s9, 4
      %s119 = int_to_ptr.hbm [resolvable:$true] %s118
      %s120 = sshll.u32 [#allocation12], 4
      %s121 = int_to_ptr.vmem [resolvable:$true] %s120
      %126 = dma.hbm_to_vmem [thread:$0]  %s119, 2048, %s121, [#allocation11], 128, 128, 8
    $region41: #{_forward_jit.1} parent=1 // pred_fallthru
      _
    // Predicated region
    $region42: #{_forward_jit.1} parent=1 // pred_check
      _
    $region43: #{_forward_jit.1} parent=1 // pred_check_branch
      %128 = sbr.rel (0) target = $region45
    $region44: #{_forward_jit.1} parent=1 // pred_region
      %130 = vsyncadd [#allocation14], 0
      %s131 = sshll.u32 %s10, 4
      %s132 = int_to_ptr.hbm [resolvable:$true] %s131
      %s133 = sshll.u32 [#allocation13], 4
      %s134 = int_to_ptr.vmem [resolvable:$true] %s133
      %139 = dma.hbm_to_vmem [thread:$0]  %s132, 1024, %s134, [#allocation14], 64, 64, 4
    $region45: #{_forward_jit.1} parent=1 // pred_fallthru
      _
    // Predicated region
    $region46: #{_forward_jit.1} parent=1 // pred_check
      _
    $region47: #{_forward_jit.1} parent=1 // pred_check_branch
      %141 = sbr.rel (0) target = $region49
    $region48: #{_forward_jit.1} parent=1 // pred_region
      %143 = vsyncadd [#allocation14], 0
      %s144 = sshll.u32 %s11, 4
      %s145 = int_to_ptr.hbm [resolvable:$true] %s144
      %s146 = sshll.u32 [#allocation15], 4
      %s147 = int_to_ptr.vmem [resolvable:$true] %s146
      %152 = dma.hbm_to_vmem [thread:$0]  %s145, 1024, %s147, [#allocation14], 64, 64, 4
    $region49: #{_forward_jit.1} parent=1 // pred_fallthru
      _
    // Predicated region
    $region50: #{_forward_jit.1} parent=1 // pred_check
      _
    $region51: #{_forward_jit.1} parent=1 // pred_check_branch
      %154 = sbr.rel (0) target = $region53
    $region52: #{_forward_jit.1} parent=1 // pred_region
      %156 = vsyncadd [#allocation17], 0
      %s157 = sshll.u32 %s12, 4
      %s158 = int_to_ptr.hbm [resolvable:$true] %s157
      %s159 = sshll.u32 [#allocation16], 4
      %s160 = int_to_ptr.vmem [resolvable:$true] %s159
      %165 = dma.hbm_to_vmem [thread:$0]  %s158, 1024, %s160, [#allocation17], 64, 64, 4
    $region53: #{_forward_jit.1} parent=1 // pred_fallthru
      _
    // Predicated region
    $region54: #{_forward_jit.1} parent=1 // pred_check
      _
    $region55: #{_forward_jit.1} parent=1 // pred_check_branch
      %167 = sbr.rel (0) target = $region57
    $region56: #{_forward_jit.1} parent=1 // pred_region
      %169 = vsyncadd [#allocation17], 0
      %s170 = sshll.u32 %s13, 4
      %s171 = int_to_ptr.hbm [resolvable:$true] %s170
      %s172 = sshll.u32 [#allocation18], 4
      %s173 = int_to_ptr.vmem [resolvable:$true] %s172
      %178 = dma.hbm_to_vmem [thread:$0]  %s171, 1024, %s173, [#allocation17], 64, 64, 4
    $region57: #{_forward_jit.1} parent=1 // pred_fallthru
      _
    // Predicated region
    $region58: #{_forward_jit.1} parent=1 // pred_check
      _
    $region59: #{_forward_jit.1} parent=1 // pred_check_branch
      %180 = sbr.rel (0) target = $region61
    $region60: #{_forward_jit.1} parent=1 // pred_region
      %182 = vsyncadd [#allocation20], 0
      %s183 = sshll.u32 %s14, 4
      %s184 = int_to_ptr.hbm [resolvable:$true] %s183
      %s185 = sshll.u32 [#allocation19], 4
      %s186 = int_to_ptr.vmem [resolvable:$true] %s185
      %191 = dma.hbm_to_vmem [thread:$0]  %s184, 512, %s186, [#allocation20], 256, 256, 16
    $region61: #{_forward_jit.1} parent=1 // pred_fallthru
      _
    // Predicated region
    $region62: #{_forward_jit.1} parent=1 // pred_check
      _
    $region63: #{_forward_jit.1} parent=1 // pred_check_branch
      %193 = sbr.rel (0) target = $region65
    $region64: #{_forward_jit.1} parent=1 // pred_region
      %195 = dma.done [#allocation3], 1024
    $region65: #{_forward_jit.1} parent=1 // pred_fallthru
      _
    // Predicated region
    $region66: #{_forward_jit.1} parent=1 // pred_check
      _
    $region67: #{_forward_jit.1} parent=1 // pred_check_branch
      %197 = sbr.rel (0) target = $region69
    $region68: #{_forward_jit.1} parent=1 // pred_region
      %199 = dma.done [#allocation5], 1024
    $region69: #{_forward_jit.1} parent=1 // pred_fallthru
      _
    // Predicated region
    $region70: #{_forward_jit.1} parent=1 // pred_check
      _
    $region71: #{_forward_jit.1} parent=1 // pred_check_branch
      %201 = sbr.rel (0) target = $region73
    $region72: #{_forward_jit.1} parent=1 // pred_region
      %203 = dma.done [#allocation5], 1024
    $region73: #{_forward_jit.1} parent=1 // pred_fallthru
      _
    // Predicated region
    $region74: #{_forward_jit.1} parent=1 // pred_check
      _
    $region75: #{_forward_jit.1} parent=1 // pred_check_branch
      %205 = sbr.rel (0) target = $region77
    $region76: #{_forward_jit.1} parent=1 // pred_region
      %207 = dma.done [#allocation8], 1024
    $region77: #{_forward_jit.1} parent=1 // pred_fallthru
      _
    // Predicated region
    $region78: #{_forward_jit.1} parent=1 // pred_check
      _
    $region79: #{_forward_jit.1} parent=1 // pred_check_branch
      %209 = sbr.rel (0) target = $region81
    $region80: #{_forward_jit.1} parent=1 // pred_region
      %211 = dma.done [#allocation8], 2048
    $region81: #{_forward_jit.1} parent=1 // pred_fallthru
      _
    // Predicated region
    $region82: #{_forward_jit.1} parent=1 // pred_check
      _
    $region83: #{_forward_jit.1} parent=1 // pred_check_branch
      %213 = sbr.rel (0) target = $region85
    $region84: #{_forward_jit.1} parent=1 // pred_region
      %215 = dma.done [#allocation11], 2048
    $region85: #{_forward_jit.1} parent=1 // pred_fallthru
      _
    // Predicated region
    $region86: #{_forward_jit.1} parent=1 // pred_check
      _
    $region87: #{_forward_jit.1} parent=1 // pred_check_branch
      %217 = sbr.rel (0) target = $region89
    $region88: #{_forward_jit.1} parent=1 // pred_region
      %219 = dma.done [#allocation11], 2048
    $region89: #{_forward_jit.1} parent=1 // pred_fallthru
      _
    // Predicated region
    $region90: #{_forward_jit.1} parent=1 // pred_check
      _
    $region91: #{_forward_jit.1} parent=1 // pred_check_branch
      %221 = sbr.rel (0) target = $region93
    $region92: #{_forward_jit.1} parent=1 // pred_region
      %223 = dma.done [#allocation14], 1024
    $region93: #{_forward_jit.1} parent=1 // pred_fallthru
      _
    // Predicated region
    $region94: #{_forward_jit.1} parent=1 // pred_check
      _
    $region95: #{_forward_jit.1} parent=1 // pred_check_branch
      %225 = sbr.rel (0) target = $region97
    $region96: #{_forward_jit.1} parent=1 // pred_region
      %227 = dma.done [#allocation14], 1024
    $region97: #{_forward_jit.1} parent=1 // pred_fallthru
      _
    // Predicated region
    $region98: #{_forward_jit.1} parent=1 // pred_check
      _
    $region99: #{_forward_jit.1} parent=1 // pred_check_branch
      %229 = sbr.rel (0) target = $region101
    $region100: #{_forward_jit.1} parent=1 // pred_region
      %231 = dma.done [#allocation17], 1024
    $region101: #{_forward_jit.1} parent=1 // pred_fallthru
      _
    // Predicated region
    $region102: #{_forward_jit.1} parent=1 // pred_check
      _
    $region103: #{_forward_jit.1} parent=1 // pred_check_branch
      %233 = sbr.rel (0) target = $region105
    $region104: #{_forward_jit.1} parent=1 // pred_region
      %235 = dma.done [#allocation17], 1024
    $region105: #{_forward_jit.1} parent=1 // pred_fallthru
      _
    // Predicated region
    $region106: #{_forward_jit.1} parent=1 // pred_check
      _
    $region107: #{_forward_jit.1} parent=1 // pred_check_branch
      %237 = sbr.rel (0) target = $region109
    $region108: #{_forward_jit.1} parent=1 // pred_region
      %239 = dma.done [#allocation20], 512
    $region109: #{_forward_jit.1} parent=1 // pred_fallthru
      _
    %v240 = vld [vmem:[%s0] sm:$0xf]
    %v241 = vld [vmem:[%s0 + $0x4] sm:$0xf]
    %v242 = vld [vmem:[#allocation2] sm:$0xf]
    %v243 = vld [vmem:[#allocation2 + $0x4] sm:$0xf]
    %v244 = vld [vmem:[#allocation2 + $0x8] sm:$0xf]
    %v245 = vld [vmem:[#allocation2 + $0xc] sm:$0xf]
    %v246 = vld [vmem:[#allocation2 + $0x10] sm:$0xf]
    %v247 = vld [vmem:[#allocation2 + $0x14] sm:$0xf]
    %v248 = vld [vmem:[#allocation2 + $0x18] sm:$0xf]
    %v249 = vld [vmem:[#allocation2 + $0x1c] sm:$0xf]
    %v250 = vld [vmem:[#allocation2 + $0x20] sm:$0xf]
    %v251 = vld [vmem:[#allocation2 + $0x24] sm:$0xf]
    %v252 = vld [vmem:[#allocation2 + $0x28] sm:$0xf]
    %v253 = vld [vmem:[#allocation2 + $0x2c] sm:$0xf]
    %v254 = vld [vmem:[#allocation2 + $0x30] sm:$0xf]
    %v255 = vld [vmem:[#allocation2 + $0x34] sm:$0xf]
    %v256 = vld [vmem:[#allocation2 + $0x38] sm:$0xf]
    %v257 = vld [vmem:[#allocation2 + $0x3c] sm:$0xf]
    %v258 = vld [vmem:[#allocation19] ss:$0 sm:$0xff]
    %v261 = vunpack.c.l.b16 %v240
    %v262 = vunpack.c.l.b16 %v241
    %v263 = vpack.c.b16 %v262, %v261
    %v281 = vunpack.c.l.b16 %v242
    %v282 = vunpack.c.l.b16 %v243
    %v283 = vunpack.c.l.b16 %v244
    %v284 = vunpack.c.l.b16 %v245
    %v285 = vunpack.c.l.b16 %v246
    %v286 = vunpack.c.l.b16 %v247
    %v287 = vunpack.c.l.b16 %v248
    %v288 = vunpack.c.l.b16 %v249
    %v289 = vunpack.c.l.b16 %v250
    %v290 = vunpack.c.l.b16 %v251
    %v291 = vunpack.c.l.b16 %v252
    %v292 = vunpack.c.l.b16 %v253
    %v293 = vunpack.c.l.b16 %v254
    %v294 = vunpack.c.l.b16 %v255
    %v295 = vunpack.c.l.b16 %v256
    %v296 = vunpack.c.l.b16 %v257
    %v297 = vpack.c.b16 %v282, %v281
    %v298 = vpack.c.b16 %v284, %v283
    %v299 = vpack.c.b16 %v286, %v285
    %v300 = vpack.c.b16 %v288, %v287
    %v301 = vpack.c.b16 %v290, %v289
    %v302 = vpack.c.b16 %v292, %v291
    %v303 = vpack.c.b16 %v294, %v293
    %v304 = vpack.c.b16 %v296, %v295
    %313 = vmatpush.bf16.msra.mxu0 %v304
    %314 = vmatpush.bf16.msra.mxu0 %v303
    %315 = vmatpush.bf16.msra.mxu0 %v302
    %316 = vmatpush.bf16.msra.mxu0 %v301
    %317 = vmatpush.bf16.msra.mxu0 %v300
    %318 = vmatpush.bf16.msra.mxu0 %v299
    %319 = vmatpush.bf16.msra.mxu0 %v298
    %320 = vmatpush.bf16.msra.mxu0 %v297
    %321 = vmatmul.bf16.gmra.mxu0 %v263
    %v322 = vpop.f32.mrf.mxu0
    %v323 = vadd.f32 %v258, %v322
    %v324 = vpop.f32.mrf.mxu0
    %v325 = vadd.f32 %v258, %v324
    %326 = vdwg.mxu0
    %v327 = vmax.f32 %v323, 0.0
    %v328 = vmax.f32 %v325, 0.0
    %v329 = vpack.c.bf16 %v328, %v327
    %v330 = vld [vmem:[#allocation4] sm:$0xf]
    %v331 = vld [vmem:[#allocation4 + $0x4] sm:$0xf]
    %v332 = vld [vmem:[#allocation4 + $0x8] sm:$0xf]
    %v333 = vld [vmem:[#allocation4 + $0xc] sm:$0xf]
    %v334 = vld [vmem:[#allocation4 + $0x10] sm:$0xf]
    %v335 = vld [vmem:[#allocation4 + $0x14] sm:$0xf]
    %v336 = vld [vmem:[#allocation4 + $0x18] sm:$0xf]
    %v337 = vld [vmem:[#allocation4 + $0x1c] sm:$0xf]
    %v338 = vld [vmem:[#allocation4 + $0x20] sm:$0xf]
    %v339 = vld [vmem:[#allocation4 + $0x24] sm:$0xf]
    %v340 = vld [vmem:[#allocation4 + $0x28] sm:$0xf]
    %v341 = vld [vmem:[#allocation4 + $0x2c] sm:$0xf]
    %v342 = vld [vmem:[#allocation4 + $0x30] sm:$0xf]
    %v343 = vld [vmem:[#allocation4 + $0x34] sm:$0xf]
    %v344 = vld [vmem:[#allocation4 + $0x38] sm:$0xf]
    %v345 = vld [vmem:[#allocation4 + $0x3c] sm:$0xf]
    %v346 = vld [vmem:[#allocation19 + $0x1] ss:$0 sm:$0xff]
    %v363 = vunpack.c.l.b16 %v330
    %v364 = vunpack.c.l.b16 %v331
    %v365 = vunpack.c.l.b16 %v332
    %v366 = vunpack.c.l.b16 %v333
    %v367 = vunpack.c.l.b16 %v334
    %v368 = vunpack.c.l.b16 %v335
    %v369 = vunpack.c.l.b16 %v336
    %v370 = vunpack.c.l.b16 %v337
    %v371 = vunpack.c.l.b16 %v338
    %v372 = vunpack.c.l.b16 %v339
    %v373 = vunpack.c.l.b16 %v340
    %v374 = vunpack.c.l.b16 %v341
    %v375 = vunpack.c.l.b16 %v342
    %v376 = vunpack.c.l.b16 %v343
    %v377 = vunpack.c.l.b16 %v344
    %v378 = vunpack.c.l.b16 %v345
    %v379 = vpack.c.b16 %v364, %v363
    %v380 = vpack.c.b16 %v366, %v365
    %v381 = vpack.c.b16 %v368, %v367
    %v382 = vpack.c.b16 %v370, %v369
    %v383 = vpack.c.b16 %v372, %v371
    %v384 = vpack.c.b16 %v374, %v373
    %v385 = vpack.c.b16 %v376, %v375
    %v386 = vpack.c.b16 %v378, %v377
    %395 = vmatpush.bf16.msra.mxu0 %v386
    %396 = vmatpush.bf16.msra.mxu0 %v385
    %397 = vmatpush.bf16.msra.mxu0 %v384
    %398 = vmatpush.bf16.msra.mxu0 %v383
    %399 = vmatpush.bf16.msra.mxu0 %v382
    %400 = vmatpush.bf16.msra.mxu0 %v381
    %401 = vmatpush.bf16.msra.mxu0 %v380
    %402 = vmatpush.bf16.msra.mxu0 %v379
    %403 = vmatmul.bf16.gmra.mxu0 %v329
    %v404 = vpop.f32.mrf.mxu0
    %v405 = vadd.f32 %v346, %v404
    %v406 = vpop.f32.mrf.mxu0
    %v407 = vadd.f32 %v346, %v406
    %408 = vdwg.mxu0
    %v409 = vmax.f32 %v405, 0.0
    %v410 = vmax.f32 %v407, 0.0
    %v411 = vpack.c.bf16 %v410, %v409
    %v412 = vld [vmem:[%s1] sm:$0xf]
    %v413 = vld [vmem:[%s1 + $0x4] sm:$0xf]
    %v414 = vld [vmem:[#allocation6] sm:$0xf]
    %v415 = vld [vmem:[#allocation6 + $0x4] sm:$0xf]
    %v416 = vld [vmem:[#allocation6 + $0x8] sm:$0xf]
    %v417 = vld [vmem:[#allocation6 + $0xc] sm:$0xf]
    %v418 = vld [vmem:[#allocation6 + $0x10] sm:$0xf]
    %v419 = vld [vmem:[#allocation6 + $0x14] sm:$0xf]
    %v420 = vld [vmem:[#allocation6 + $0x18] sm:$0xf]
    %v421 = vld [vmem:[#allocation6 + $0x1c] sm:$0xf]
    %v422 = vld [vmem:[#allocation6 + $0x20] sm:$0xf]
    %v423 = vld [vmem:[#allocation6 + $0x24] sm:$0xf]
    %v424 = vld [vmem:[#allocation6 + $0x28] sm:$0xf]
    %v425 = vld [vmem:[#allocation6 + $0x2c] sm:$0xf]
    %v426 = vld [vmem:[#allocation6 + $0x30] sm:$0xf]
    %v427 = vld [vmem:[#allocation6 + $0x34] sm:$0xf]
    %v428 = vld [vmem:[#allocation6 + $0x38] sm:$0xf]
    %v429 = vld [vmem:[#allocation6 + $0x3c] sm:$0xf]
    %v430 = vld [vmem:[#allocation19 + $0x2] ss:$0 sm:$0xff]
    %v433 = vunpack.c.l.b16 %v412
    %v434 = vunpack.c.l.b16 %v413
    %v435 = vpack.c.b16 %v434, %v433
    %v453 = vunpack.c.l.b16 %v414
    %v454 = vunpack.c.l.b16 %v415
    %v455 = vunpack.c.l.b16 %v416
    %v456 = vunpack.c.l.b16 %v417
    %v457 = vunpack.c.l.b16 %v418
    %v458 = vunpack.c.l.b16 %v419
    %v459 = vunpack.c.l.b16 %v420
    %v460 = vunpack.c.l.b16 %v421
    %v461 = vunpack.c.l.b16 %v422
    %v462 = vunpack.c.l.b16 %v423
    %v463 = vunpack.c.l.b16 %v424
    %v464 = vunpack.c.l.b16 %v425
    %v465 = vunpack.c.l.b16 %v426
    %v466 = vunpack.c.l.b16 %v427
    %v467 = vunpack.c.l.b16 %v428
    %v468 = vunpack.c.l.b16 %v429
    %v469 = vpack.c.b16 %v454, %v453
    %v470 = vpack.c.b16 %v456, %v455
    %v471 = vpack.c.b16 %v458, %v457
    %v472 = vpack.c.b16 %v460, %v459
    %v473 = vpack.c.b16 %v462, %v461
    %v474 = vpack.c.b16 %v464, %v463
    %v475 = vpack.c.b16 %v466, %v465
    %v476 = vpack.c.b16 %v468, %v467
    %485 = vmatpush.bf16.msra.mxu0 %v476
    %486 = vmatpush.bf16.msra.mxu0 %v475
    %487 = vmatpush.bf16.msra.mxu0 %v474
    %488 = vmatpush.bf16.msra.mxu0 %v473
    %489 = vmatpush.bf16.msra.mxu0 %v472
    %490 = vmatpush.bf16.msra.mxu0 %v471
    %491 = vmatpush.bf16.msra.mxu0 %v470
    %492 = vmatpush.bf16.msra.mxu0 %v469
    %493 = vmatmul.bf16.gmra.mxu0 %v435
    %v494 = vpop.f32.mrf.mxu0
    %v495 = vadd.f32 %v430, %v494
    %v496 = vpop.f32.mrf.mxu0
    %v497 = vadd.f32 %v430, %v496
    %498 = vdwg.mxu0
    %v499 = vmax.f32 %v495, 0.0
    %v500 = vmax.f32 %v497, 0.0
    %v501 = vpack.c.bf16 %v500, %v499
    %v502 = vld [vmem:[#allocation7] sm:$0xf]
    %v503 = vld [vmem:[#allocation7 + $0x4] sm:$0xf]
    %v504 = vld [vmem:[#allocation7 + $0x8] sm:$0xf]
    %v505 = vld [vmem:[#allocation7 + $0xc] sm:$0xf]
    %v506 = vld [vmem:[#allocation7 + $0x10] sm:$0xf]
    %v507 = vld [vmem:[#allocation7 + $0x14] sm:$0xf]
    %v508 = vld [vmem:[#allocation7 + $0x18] sm:$0xf]
    %v509 = vld [vmem:[#allocation7 + $0x1c] sm:$0xf]
    %v510 = vld [vmem:[#allocation7 + $0x20] sm:$0xf]
    %v511 = vld [vmem:[#allocation7 + $0x24] sm:$0xf]
    %v512 = vld [vmem:[#allocation7 + $0x28] sm:$0xf]
    %v513 = vld [vmem:[#allocation7 + $0x2c] sm:$0xf]
    %v514 = vld [vmem:[#allocation7 + $0x30] sm:$0xf]
    %v515 = vld [vmem:[#allocation7 + $0x34] sm:$0xf]
    %v516 = vld [vmem:[#allocation7 + $0x38] sm:$0xf]
    %v517 = vld [vmem:[#allocation7 + $0x3c] sm:$0xf]
    %v518 = vld [vmem:[#allocation19 + $0x3] ss:$0 sm:$0xff]
    %v535 = vunpack.c.l.b16 %v502
    %v536 = vunpack.c.l.b16 %v503
    %v537 = vunpack.c.l.b16 %v504
    %v538 = vunpack.c.l.b16 %v505
    %v539 = vunpack.c.l.b16 %v506
    %v540 = vunpack.c.l.b16 %v507
    %v541 = vunpack.c.l.b16 %v508
    %v542 = vunpack.c.l.b16 %v509
    %v543 = vunpack.c.l.b16 %v510
    %v544 = vunpack.c.l.b16 %v511
    %v545 = vunpack.c.l.b16 %v512
    %v546 = vunpack.c.l.b16 %v513
    %v547 = vunpack.c.l.b16 %v514
    %v548 = vunpack.c.l.b16 %v515
    %v549 = vunpack.c.l.b16 %v516
    %v550 = vunpack.c.l.b16 %v517
    %v551 = vpack.c.b16 %v536, %v535
    %v552 = vpack.c.b16 %v538, %v537
    %v553 = vpack.c.b16 %v540, %v539
    %v554 = vpack.c.b16 %v542, %v541
    %v555 = vpack.c.b16 %v544, %v543
    %v556 = vpack.c.b16 %v546, %v545
    %v557 = vpack.c.b16 %v548, %v547
    %v558 = vpack.c.b16 %v550, %v549
    %567 = vmatpush.bf16.msra.mxu0 %v558
    %568 = vmatpush.bf16.msra.mxu0 %v557
    %569 = vmatpush.bf16.msra.mxu0 %v556
    %570 = vmatpush.bf16.msra.mxu0 %v555
    %571 = vmatpush.bf16.msra.mxu0 %v554
    %572 = vmatpush.bf16.msra.mxu0 %v553
    %573 = vmatpush.bf16.msra.mxu0 %v552
    %574 = vmatpush.bf16.msra.mxu0 %v551
    %575 = vmatmul.bf16.gmra.mxu0 %v501
    %v576 = vpop.f32.mrf.mxu0
    %v577 = vadd.f32 %v518, %v576
    %v578 = vpop.f32.mrf.mxu0
    %v579 = vadd.f32 %v518, %v578
    %580 = vdwg.mxu0
    %v581 = vmax.f32 %v577, 0.0
    %v582 = vmax.f32 %v579, 0.0
    %v583 = vpack.c.bf16 %v582, %v581
    %v584 = vld [vmem:[#allocation9] sm:$0xff]
    %v585 = vld [vmem:[#allocation9 + $0x8] sm:$0xff]
    %v586 = vld [vmem:[#allocation9 + $0x10] sm:$0xff]
    %v587 = vld [vmem:[#allocation9 + $0x18] sm:$0xff]
    %v588 = vld [vmem:[#allocation9 + $0x20] sm:$0xff]
    %v589 = vld [vmem:[#allocation9 + $0x28] sm:$0xff]
    %v590 = vld [vmem:[#allocation9 + $0x30] sm:$0xff]
    %v591 = vld [vmem:[#allocation9 + $0x38] sm:$0xff]
    %v592 = vld [vmem:[#allocation9 + $0x40] sm:$0xff]
    %v593 = vld [vmem:[#allocation9 + $0x48] sm:$0xff]
    %v594 = vld [vmem:[#allocation9 + $0x50] sm:$0xff]
    %v595 = vld [vmem:[#allocation9 + $0x58] sm:$0xff]
    %v596 = vld [vmem:[#allocation9 + $0x60] sm:$0xff]
    %v597 = vld [vmem:[#allocation9 + $0x68] sm:$0xff]
    %v598 = vld [vmem:[#allocation9 + $0x70] sm:$0xff]
    %v599 = vld [vmem:[#allocation9 + $0x78] sm:$0xff]
    %v600 = vld [vmem:[#allocation10] sm:$0xff]
    %v601 = vld [vmem:[#allocation10 + $0x8] sm:$0xff]
    %v602 = vld [vmem:[#allocation10 + $0x10] sm:$0xff]
    %v603 = vld [vmem:[#allocation10 + $0x18] sm:$0xff]
    %v604 = vld [vmem:[#allocation10 + $0x20] sm:$0xff]
    %v605 = vld [vmem:[#allocation10 + $0x28] sm:$0xff]
    %v606 = vld [vmem:[#allocation10 + $0x30] sm:$0xff]
    %v607 = vld [vmem:[#allocation10 + $0x38] sm:$0xff]
    %v608 = vld [vmem:[#allocation10 + $0x40] sm:$0xff]
    %v609 = vld [vmem:[#allocation10 + $0x48] sm:$0xff]
    %v610 = vld [vmem:[#allocation10 + $0x50] sm:$0xff]
    %v611 = vld [vmem:[#allocation10 + $0x58] sm:$0xff]
    %v612 = vld [vmem:[#allocation10 + $0x60] sm:$0xff]
    %v613 = vld [vmem:[#allocation10 + $0x68] sm:$0xff]
    %v614 = vld [vmem:[#allocation10 + $0x70] sm:$0xff]
    %v615 = vld [vmem:[#allocation10 + $0x78] sm:$0xff]
    %v632 = vunpack.c.l.b16 %v600
    %v633 = vunpack.c.h.b16 %v600
    %v634 = vunpack.c.l.b16 %v601
    %v635 = vunpack.c.h.b16 %v601
    %v636 = vunpack.c.l.b16 %v602
    %v637 = vunpack.c.h.b16 %v602
    %v638 = vunpack.c.l.b16 %v603
    %v639 = vunpack.c.h.b16 %v603
    %v640 = vunpack.c.l.b16 %v604
    %v641 = vunpack.c.h.b16 %v604
    %v642 = vunpack.c.l.b16 %v605
    %v643 = vunpack.c.h.b16 %v605
    %v644 = vunpack.c.l.b16 %v606
    %v645 = vunpack.c.h.b16 %v606
    %v646 = vunpack.c.l.b16 %v607
    %v647 = vunpack.c.h.b16 %v607
    %v648 = vunpack.c.l.b16 %v608
    %v649 = vunpack.c.h.b16 %v608
    %v650 = vunpack.c.l.b16 %v609
    %v651 = vunpack.c.h.b16 %v609
    %v652 = vunpack.c.l.b16 %v610
    %v653 = vunpack.c.h.b16 %v610
    %v654 = vunpack.c.l.b16 %v611
    %v655 = vunpack.c.h.b16 %v611
    %v656 = vunpack.c.l.b16 %v612
    %v657 = vunpack.c.h.b16 %v612
    %v658 = vunpack.c.l.b16 %v613
    %v659 = vunpack.c.h.b16 %v613
    %v660 = vunpack.c.l.b16 %v614
    %v661 = vunpack.c.h.b16 %v614
    %v662 = vunpack.c.l.b16 %v615
    %v663 = vunpack.c.h.b16 %v615
    %v664 = vpack.c.b16 %v634, %v632
    %v665 = vpack.c.b16 %v635, %v633
    %v666 = vpack.c.b16 %v638, %v636
    %v667 = vpack.c.b16 %v639, %v637
    %v668 = vpack.c.b16 %v642, %v640
    %v669 = vpack.c.b16 %v643, %v641
    %v670 = vpack.c.b16 %v646, %v644
    %v671 = vpack.c.b16 %v647, %v645
    %v672 = vpack.c.b16 %v650, %v648
    %v673 = vpack.c.b16 %v651, %v649
    %v674 = vpack.c.b16 %v654, %v652
    %v675 = vpack.c.b16 %v655, %v653
    %v676 = vpack.c.b16 %v658, %v656
    %v677 = vpack.c.b16 %v659, %v657
    %v678 = vpack.c.b16 %v662, %v660
    %v679 = vpack.c.b16 %v663, %v661
    %696 = vmatpush.bf16.msra.mxu0 %v678
    %697 = vmatpush.bf16.msra.mxu0 %v676
    %698 = vmatpush.bf16.msra.mxu0 %v674
    %699 = vmatpush.bf16.msra.mxu0 %v672
    %700 = vmatpush.bf16.msra.mxu0 %v670
    %701 = vmatpush.bf16.msra.mxu0 %v668
    %702 = vmatpush.bf16.msra.mxu0 %v666
    %703 = vmatpush.bf16.msra.mxu0 %v664
    %704 = vmatmul.bf16.gmra.mxu0 %v583
    %v705 = vpop.f32.mrf.mxu0
    %v706 = vadd.f32 0.0, %v705
    %v707 = vpop.f32.mrf.mxu0
    %v708 = vadd.f32 0.0, %v707
    %709 = vdwg.mxu0
    %710 = vmatpush.bf16.msra.mxu0 %v679
    %711 = vmatpush.bf16.msra.mxu0 %v677
    %712 = vmatpush.bf16.msra.mxu0 %v675
    %713 = vmatpush.bf16.msra.mxu0 %v673
    %714 = vmatpush.bf16.msra.mxu0 %v671
    %715 = vmatpush.bf16.msra.mxu0 %v669
    %716 = vmatpush.bf16.msra.mxu0 %v667
    %717 = vmatpush.bf16.msra.mxu0 %v665
    %718 = vmatmul.bf16.gmra.mxu0 %v583
    %v719 = vpop.f32.mrf.mxu0
    %v720 = vadd.f32 0.0, %v719
    %v721 = vpop.f32.mrf.mxu0
    %v722 = vadd.f32 0.0, %v721
    %723 = vdwg.mxu0
    %v740 = vunpack.c.l.b16 %v584
    %v741 = vunpack.c.h.b16 %v584
    %v742 = vunpack.c.l.b16 %v585
    %v743 = vunpack.c.h.b16 %v585
    %v744 = vunpack.c.l.b16 %v586
    %v745 = vunpack.c.h.b16 %v586
    %v746 = vunpack.c.l.b16 %v587
    %v747 = vunpack.c.h.b16 %v587
    %v748 = vunpack.c.l.b16 %v588
    %v749 = vunpack.c.h.b16 %v588
    %v750 = vunpack.c.l.b16 %v589
    %v751 = vunpack.c.h.b16 %v589
    %v752 = vunpack.c.l.b16 %v590
    %v753 = vunpack.c.h.b16 %v590
    %v754 = vunpack.c.l.b16 %v591
    %v755 = vunpack.c.h.b16 %v591
    %v756 = vunpack.c.l.b16 %v592
    %v757 = vunpack.c.h.b16 %v592
    %v758 = vunpack.c.l.b16 %v593
    %v759 = vunpack.c.h.b16 %v593
    %v760 = vunpack.c.l.b16 %v594
    %v761 = vunpack.c.h.b16 %v594
    %v762 = vunpack.c.l.b16 %v595
    %v763 = vunpack.c.h.b16 %v595
    %v764 = vunpack.c.l.b16 %v596
    %v765 = vunpack.c.h.b16 %v596
    %v766 = vunpack.c.l.b16 %v597
    %v767 = vunpack.c.h.b16 %v597
    %v768 = vunpack.c.l.b16 %v598
    %v769 = vunpack.c.h.b16 %v598
    %v770 = vunpack.c.l.b16 %v599
    %v771 = vunpack.c.h.b16 %v599
    %v772 = vpack.c.b16 %v742, %v740
    %v773 = vpack.c.b16 %v743, %v741
    %v774 = vpack.c.b16 %v746, %v744
    %v775 = vpack.c.b16 %v747, %v745
    %v776 = vpack.c.b16 %v750, %v748
    %v777 = vpack.c.b16 %v751, %v749
    %v778 = vpack.c.b16 %v754, %v752
    %v779 = vpack.c.b16 %v755, %v753
    %v780 = vpack.c.b16 %v758, %v756
    %v781 = vpack.c.b16 %v759, %v757
    %v782 = vpack.c.b16 %v762, %v760
    %v783 = vpack.c.b16 %v763, %v761
    %v784 = vpack.c.b16 %v766, %v764
    %v785 = vpack.c.b16 %v767, %v765
    %v786 = vpack.c.b16 %v770, %v768
    %v787 = vpack.c.b16 %v771, %v769
    %804 = vmatpush.bf16.msra.mxu0 %v786
    %805 = vmatpush.bf16.msra.mxu0 %v784
    %806 = vmatpush.bf16.msra.mxu0 %v782
    %807 = vmatpush.bf16.msra.mxu0 %v780
    %808 = vmatpush.bf16.msra.mxu0 %v778
    %809 = vmatpush.bf16.msra.mxu0 %v776
    %810 = vmatpush.bf16.msra.mxu0 %v774
    %811 = vmatpush.bf16.msra.mxu0 %v772
    %812 = vmatmul.bf16.gmra.mxu0 %v411
    %v813 = vpop.f32.mrf.mxu0
    %v814 = vadd.f32 %v706, %v813
    %v815 = vpop.f32.mrf.mxu0
    %v816 = vadd.f32 %v708, %v815
    %817 = vdwg.mxu0
    %818 = vmatpush.bf16.msra.mxu0 %v787
    %819 = vmatpush.bf16.msra.mxu0 %v785
    %820 = vmatpush.bf16.msra.mxu0 %v783
    %821 = vmatpush.bf16.msra.mxu0 %v781
    %822 = vmatpush.bf16.msra.mxu0 %v779
    %823 = vmatpush.bf16.msra.mxu0 %v777
    %824 = vmatpush.bf16.msra.mxu0 %v775
    %825 = vmatpush.bf16.msra.mxu0 %v773
    %826 = vmatmul.bf16.gmra.mxu0 %v411
    %v827 = vpop.f32.mrf.mxu0
    %v828 = vadd.f32 %v720, %v827
    %v829 = vpop.f32.mrf.mxu0
    %v830 = vadd.f32 %v722, %v829
    %831 = vdwg.mxu0
    %s832 = scalar_lea.vmem [#allocation19], 4
    %v833 = vld [vmem:[%s832] ss:$8 sm:$0x3]
    %v835 = vperm.slane %v833, 0
    %v836 = vperm.slane %v833, 1
    %v839 = vadd.f32 %v814, %v835
    %v840 = vadd.f32 %v828, %v836
    %v841 = vadd.f32 %v816, %v835
    %v842 = vadd.f32 %v830, %v836
    %v843 = vld [vmem:[%s2] sm:$0xff]
    %v844 = vld [vmem:[%s2 + $0x8] sm:$0xff]
    %v845 = vmul.f32 %v840, 0.5
    %v846 = vmul.f32 %v842, 0.5
    %v847 = vmul.f32 %v845, 1.442695
    %v848 = vpow.pop %v847
    %v849 = vmul.f32 %v846, 1.442695
    %v850 = vpow.pop %v849
    %v851 = vmul.f32 %v843, %v848
    %v852 = vmul.f32 %v844, %v850
    %v853 = vadd.f32 %v839, %v851
    %v854 = vadd.f32 %v841, %v852
    %v855 = vpack.c.bf16 %v854, %v853
    %v856 = vld [vmem:[#allocation12] sm:$0xff]
    %v857 = vld [vmem:[#allocation12 + $0x8] sm:$0xff]
    %v858 = vld [vmem:[#allocation12 + $0x10] sm:$0xff]
    %v859 = vld [vmem:[#allocation12 + $0x18] sm:$0xff]
    %v860 = vld [vmem:[#allocation12 + $0x20] sm:$0xff]
    %v861 = vld [vmem:[#allocation12 + $0x28] sm:$0xff]
    %v862 = vld [vmem:[#allocation12 + $0x30] sm:$0xff]
    %v863 = vld [vmem:[#allocation12 + $0x38] sm:$0xff]
    %v864 = vld [vmem:[#allocation12 + $0x40] sm:$0xff]
    %v865 = vld [vmem:[#allocation12 + $0x48] sm:$0xff]
    %v866 = vld [vmem:[#allocation12 + $0x50] sm:$0xff]
    %v867 = vld [vmem:[#allocation12 + $0x58] sm:$0xff]
    %v868 = vld [vmem:[#allocation12 + $0x60] sm:$0xff]
    %v869 = vld [vmem:[#allocation12 + $0x68] sm:$0xff]
    %v870 = vld [vmem:[#allocation12 + $0x70] sm:$0xff]
    %v871 = vld [vmem:[#allocation12 + $0x78] sm:$0xff]
    %s872 = scalar_lea.vmem [#allocation19], 5
    %v873 = vld [vmem:[%s872] ss:$8 sm:$0x3]
    %v875 = vperm.slane %v873, 0
    %v876 = vperm.slane %v873, 1
    %v895 = vunpack.c.l.b16 %v856
    %v896 = vunpack.c.h.b16 %v856
    %v897 = vunpack.c.l.b16 %v857
    %v898 = vunpack.c.h.b16 %v857
    %v899 = vunpack.c.l.b16 %v858
    %v900 = vunpack.c.h.b16 %v858
    %v901 = vunpack.c.l.b16 %v859
    %v902 = vunpack.c.h.b16 %v859
    %v903 = vunpack.c.l.b16 %v860
    %v904 = vunpack.c.h.b16 %v860
    %v905 = vunpack.c.l.b16 %v861
    %v906 = vunpack.c.h.b16 %v861
    %v907 = vunpack.c.l.b16 %v862
    %v908 = vunpack.c.h.b16 %v862
    %v909 = vunpack.c.l.b16 %v863
    %v910 = vunpack.c.h.b16 %v863
    %v911 = vunpack.c.l.b16 %v864
    %v912 = vunpack.c.h.b16 %v864
    %v913 = vunpack.c.l.b16 %v865
    %v914 = vunpack.c.h.b16 %v865
    %v915 = vunpack.c.l.b16 %v866
    %v916 = vunpack.c.h.b16 %v866
    %v917 = vunpack.c.l.b16 %v867
    %v918 = vunpack.c.h.b16 %v867
    %v919 = vunpack.c.l.b16 %v868
    %v920 = vunpack.c.h.b16 %v868
    %v921 = vunpack.c.l.b16 %v869
    %v922 = vunpack.c.h.b16 %v869
    %v923 = vunpack.c.l.b16 %v870
    %v924 = vunpack.c.h.b16 %v870
    %v925 = vunpack.c.l.b16 %v871
    %v926 = vunpack.c.h.b16 %v871
    %v927 = vpack.c.b16 %v897, %v895
    %v928 = vpack.c.b16 %v898, %v896
    %v929 = vpack.c.b16 %v901, %v899
    %v930 = vpack.c.b16 %v902, %v900
    %v931 = vpack.c.b16 %v905, %v903
    %v932 = vpack.c.b16 %v906, %v904
    %v933 = vpack.c.b16 %v909, %v907
    %v934 = vpack.c.b16 %v910, %v908
    %v935 = vpack.c.b16 %v913, %v911
    %v936 = vpack.c.b16 %v914, %v912
    %v937 = vpack.c.b16 %v917, %v915
    %v938 = vpack.c.b16 %v918, %v916
    %v939 = vpack.c.b16 %v921, %v919
    %v940 = vpack.c.b16 %v922, %v920
    %v941 = vpack.c.b16 %v925, %v923
    %v942 = vpack.c.b16 %v926, %v924
    %959 = vmatpush.bf16.msra.mxu0 %v941
    %960 = vmatpush.bf16.msra.mxu0 %v939
    %961 = vmatpush.bf16.msra.mxu0 %v937
    %962 = vmatpush.bf16.msra.mxu0 %v935
    %963 = vmatpush.bf16.msra.mxu0 %v933
    %964 = vmatpush.bf16.msra.mxu0 %v931
    %965 = vmatpush.bf16.msra.mxu0 %v929
    %966 = vmatpush.bf16.msra.mxu0 %v927
    %967 = vmatmul.bf16.gmra.mxu0 %v855
    %v968 = vpop.f32.mrf.mxu0
    %v969 = vadd.f32 %v875, %v968
    %v970 = vpop.f32.mrf.mxu0
    %v971 = vadd.f32 %v875, %v970
    %972 = vdwg.mxu0
    %973 = vmatpush.bf16.msra.mxu0 %v942
    %974 = vmatpush.bf16.msra.mxu0 %v940
    %975 = vmatpush.bf16.msra.mxu0 %v938
    %976 = vmatpush.bf16.msra.mxu0 %v936
    %977 = vmatpush.bf16.msra.mxu0 %v934
    %978 = vmatpush.bf16.msra.mxu0 %v932
    %979 = vmatpush.bf16.msra.mxu0 %v930
    %980 = vmatpush.bf16.msra.mxu0 %v928
    %981 = vmatmul.bf16.gmra.mxu0 %v855
    %v982 = vpop.f32.mrf.mxu0
    %v983 = vadd.f32 %v876, %v982
    %v984 = vpop.f32.mrf.mxu0
    %v985 = vadd.f32 %v876, %v984
    %986 = vdwg.mxu0
    %v987 = vmax.f32 %v969, 0.0
    %v988 = vmax.f32 %v983, 0.0
    %v989 = vmax.f32 %v971, 0.0
    %v990 = vmax.f32 %v985, 0.0
    %v991 = vpack.c.bf16 %v988, %v987
    %v992 = vpack.c.bf16 %v990, %v989
    %v993 = vld [vmem:[#allocation13] sm:$0xf]
    %v994 = vld [vmem:[#allocation13 + $0x4] sm:$0xf]
    %v995 = vld [vmem:[#allocation13 + $0x8] sm:$0xf]
    %v996 = vld [vmem:[#allocation13 + $0xc] sm:$0xf]
    %v997 = vld [vmem:[#allocation13 + $0x10] sm:$0xf]
    %v998 = vld [vmem:[#allocation13 + $0x14] sm:$0xf]
    %v999 = vld [vmem:[#allocation13 + $0x18] sm:$0xf]
    %v1000 = vld [vmem:[#allocation13 + $0x1c] sm:$0xf]
    %v1001 = vld [vmem:[#allocation13 + $0x20] sm:$0xf]
    %v1002 = vld [vmem:[#allocation13 + $0x24] sm:$0xf]
    %v1003 = vld [vmem:[#allocation13 + $0x28] sm:$0xf]
    %v1004 = vld [vmem:[#allocation13 + $0x2c] sm:$0xf]
    %v1005 = vld [vmem:[#allocation13 + $0x30] sm:$0xf]
    %v1006 = vld [vmem:[#allocation13 + $0x34] sm:$0xf]
    %v1007 = vld [vmem:[#allocation13 + $0x38] sm:$0xf]
    %v1008 = vld [vmem:[#allocation13 + $0x3c] sm:$0xf]
    %v1009 = vld [vmem:[#allocation19 + $0x6] ss:$0 sm:$0xff]
    %v1012 = vunpack.c.l.b16 %v991
    %v1013 = vunpack.c.l.b16 %v992
    %v1014 = vpack.c.b16 %v1013, %v1012
    %v1032 = vunpack.c.l.b16 %v993
    %v1033 = vunpack.c.l.b16 %v994
    %v1034 = vunpack.c.l.b16 %v995
    %v1035 = vunpack.c.l.b16 %v996
    %v1036 = vunpack.c.l.b16 %v997
    %v1037 = vunpack.c.l.b16 %v998
    %v1038 = vunpack.c.l.b16 %v999
    %v1039 = vunpack.c.l.b16 %v1000
    %v1040 = vunpack.c.l.b16 %v1001
    %v1041 = vunpack.c.l.b16 %v1002
    %v1042 = vunpack.c.l.b16 %v1003
    %v1043 = vunpack.c.l.b16 %v1004
    %v1044 = vunpack.c.l.b16 %v1005
    %v1045 = vunpack.c.l.b16 %v1006
    %v1046 = vunpack.c.l.b16 %v1007
    %v1047 = vunpack.c.l.b16 %v1008
    %v1048 = vpack.c.b16 %v1033, %v1032
    %v1049 = vpack.c.b16 %v1035, %v1034
    %v1050 = vpack.c.b16 %v1037, %v1036
    %v1051 = vpack.c.b16 %v1039, %v1038
    %v1052 = vpack.c.b16 %v1041, %v1040
    %v1053 = vpack.c.b16 %v1043, %v1042
    %v1054 = vpack.c.b16 %v1045, %v1044
    %v1055 = vpack.c.b16 %v1047, %v1046
    %1064 = vmatpush.bf16.msra.mxu0 %v1055
    %1065 = vmatpush.bf16.msra.mxu0 %v1054
    %1066 = vmatpush.bf16.msra.mxu0 %v1053
    %1067 = vmatpush.bf16.msra.mxu0 %v1052
    %1068 = vmatpush.bf16.msra.mxu0 %v1051
    %1069 = vmatpush.bf16.msra.mxu0 %v1050
    %1070 = vmatpush.bf16.msra.mxu0 %v1049
    %1071 = vmatpush.bf16.msra.mxu0 %v1048
    %1072 = vmatmul.bf16.gmra.mxu0 %v1014
    %v1073 = vpop.f32.mrf.mxu0
    %v1074 = vadd.f32 %v1009, %v1073
    %v1075 = vpop.f32.mrf.mxu0
    %v1076 = vadd.f32 %v1009, %v1075
    %1077 = vdwg.mxu0
    %v1078 = vmax.f32 %v1074, 0.0
    %v1079 = vmax.f32 %v1076, 0.0
    %v1080 = vpack.c.bf16 %v1079, %v1078
    %v1081 = vld [vmem:[#allocation16] sm:$0xf]
    %v1082 = vld [vmem:[#allocation16 + $0x4] sm:$0xf]
    %v1083 = vld [vmem:[#allocation16 + $0x8] sm:$0xf]
    %v1084 = vld [vmem:[#allocation16 + $0xc] sm:$0xf]
    %v1085 = vld [vmem:[#allocation16 + $0x10] sm:$0xf]
    %v1086 = vld [vmem:[#allocation16 + $0x14] sm:$0xf]
    %v1087 = vld [vmem:[#allocation16 + $0x18] sm:$0xf]
    %v1088 = vld [vmem:[#allocation16 + $0x1c] sm:$0xf]
    %v1089 = vld [vmem:[#allocation16 + $0x20] sm:$0xf]
    %v1090 = vld [vmem:[#allocation16 + $0x24] sm:$0xf]
    %v1091 = vld [vmem:[#allocation16 + $0x28] sm:$0xf]
    %v1092 = vld [vmem:[#allocation16 + $0x2c] sm:$0xf]
    %v1093 = vld [vmem:[#allocation16 + $0x30] sm:$0xf]
    %v1094 = vld [vmem:[#allocation16 + $0x34] sm:$0xf]
    %v1095 = vld [vmem:[#allocation16 + $0x38] sm:$0xf]
    %v1096 = vld [vmem:[#allocation16 + $0x3c] sm:$0xf]
    %v1097 = vld [vmem:[#allocation19 + $0x10] ss:$0 sm:$0xff]
    %v1114 = vunpack.c.l.b16 %v1081
    %v1115 = vunpack.c.l.b16 %v1082
    %v1116 = vunpack.c.l.b16 %v1083
    %v1117 = vunpack.c.l.b16 %v1084
    %v1118 = vunpack.c.l.b16 %v1085
    %v1119 = vunpack.c.l.b16 %v1086
    %v1120 = vunpack.c.l.b16 %v1087
    %v1121 = vunpack.c.l.b16 %v1088
    %v1122 = vunpack.c.l.b16 %v1089
    %v1123 = vunpack.c.l.b16 %v1090
    %v1124 = vunpack.c.l.b16 %v1091
    %v1125 = vunpack.c.l.b16 %v1092
    %v1126 = vunpack.c.l.b16 %v1093
    %v1127 = vunpack.c.l.b16 %v1094
    %v1128 = vunpack.c.l.b16 %v1095
    %v1129 = vunpack.c.l.b16 %v1096
    %v1130 = vpack.c.b16 %v1115, %v1114
    %v1131 = vpack.c.b16 %v1117, %v1116
    %v1132 = vpack.c.b16 %v1119, %v1118
    %v1133 = vpack.c.b16 %v1121, %v1120
    %v1134 = vpack.c.b16 %v1123, %v1122
    %v1135 = vpack.c.b16 %v1125, %v1124
    %v1136 = vpack.c.b16 %v1127, %v1126
    %v1137 = vpack.c.b16 %v1129, %v1128
    %1146 = vmatpush.bf16.msra.mxu0 %v1137
    %1147 = vmatpush.bf16.msra.mxu0 %v1136
    %1148 = vmatpush.bf16.msra.mxu0 %v1135
    %1149 = vmatpush.bf16.msra.mxu0 %v1134
    %1150 = vmatpush.bf16.msra.mxu0 %v1133
    %1151 = vmatpush.bf16.msra.mxu0 %v1132
    %1152 = vmatpush.bf16.msra.mxu0 %v1131
    %1153 = vmatpush.bf16.msra.mxu0 %v1130
    %1154 = vmatmul.bf16.gmra.mxu0 %v1080
    %v1155 = vpop.f32.mrf.mxu0
    %v1156 = vadd.f32 %v1097, %v1155
    %v1157 = vpop.f32.mrf.mxu0
    %v1158 = vadd.f32 %v1097, %v1157
    %1159 = vdwg.mxu0
    %v1160 = vpack.c.bf16 %v1156, %v1156
    %v1161 = vpack.c.bf16 %v1158, %v1158
    %1162 = vst [vmem:[%s15] sm:$0xf] %v1160
    %1163 = vst [vmem:[%s15 + $0x4] sm:$0xf] %v1161
    %v1164 = vld [vmem:[#allocation15] sm:$0xf]
    %v1165 = vld [vmem:[#allocation15 + $0x4] sm:$0xf]
    %v1166 = vld [vmem:[#allocation15 + $0x8] sm:$0xf]
    %v1167 = vld [vmem:[#allocation15 + $0xc] sm:$0xf]
    %v1168 = vld [vmem:[#allocation15 + $0x10] sm:$0xf]
    %v1169 = vld [vmem:[#allocation15 + $0x14] sm:$0xf]
    %v1170 = vld [vmem:[#allocation15 + $0x18] sm:$0xf]
    %v1171 = vld [vmem:[#allocation15 + $0x1c] sm:$0xf]
    %v1172 = vld [vmem:[#allocation15 + $0x20] sm:$0xf]
    %v1173 = vld [vmem:[#allocation15 + $0x24] sm:$0xf]
    %v1174 = vld [vmem:[#allocation15 + $0x28] sm:$0xf]
    %v1175 = vld [vmem:[#allocation15 + $0x2c] sm:$0xf]
    %v1176 = vld [vmem:[#allocation15 + $0x30] sm:$0xf]
    %v1177 = vld [vmem:[#allocation15 + $0x34] sm:$0xf]
    %v1178 = vld [vmem:[#allocation15 + $0x38] sm:$0xf]
    %v1179 = vld [vmem:[#allocation15 + $0x3c] sm:$0xf]
    %v1180 = vld [vmem:[#allocation19 + $0x7] ss:$0 sm:$0xff]
    %v1181 = vunpack.c.h.b16 %v991
    %v1182 = vunpack.c.h.b16 %v992
    %v1183 = vpack.c.b16 %v1182, %v1181
    %v1201 = vunpack.c.l.b16 %v1164
    %v1202 = vunpack.c.l.b16 %v1165
    %v1203 = vunpack.c.l.b16 %v1166
    %v1204 = vunpack.c.l.b16 %v1167
    %v1205 = vunpack.c.l.b16 %v1168
    %v1206 = vunpack.c.l.b16 %v1169
    %v1207 = vunpack.c.l.b16 %v1170
    %v1208 = vunpack.c.l.b16 %v1171
    %v1209 = vunpack.c.l.b16 %v1172
    %v1210 = vunpack.c.l.b16 %v1173
    %v1211 = vunpack.c.l.b16 %v1174
    %v1212 = vunpack.c.l.b16 %v1175
    %v1213 = vunpack.c.l.b16 %v1176
    %v1214 = vunpack.c.l.b16 %v1177
    %v1215 = vunpack.c.l.b16 %v1178
    %v1216 = vunpack.c.l.b16 %v1179
    %v1217 = vpack.c.b16 %v1202, %v1201
    %v1218 = vpack.c.b16 %v1204, %v1203
    %v1219 = vpack.c.b16 %v1206, %v1205
    %v1220 = vpack.c.b16 %v1208, %v1207
    %v1221 = vpack.c.b16 %v1210, %v1209
    %v1222 = vpack.c.b16 %v1212, %v1211
    %v1223 = vpack.c.b16 %v1214, %v1213
    %v1224 = vpack.c.b16 %v1216, %v1215
    %1233 = vmatpush.bf16.msra.mxu0 %v1224
    %1234 = vmatpush.bf16.msra.mxu0 %v1223
    %1235 = vmatpush.bf16.msra.mxu0 %v1222
    %1236 = vmatpush.bf16.msra.mxu0 %v1221
    %1237 = vmatpush.bf16.msra.mxu0 %v1220
    %1238 = vmatpush.bf16.msra.mxu0 %v1219
    %1239 = vmatpush.bf16.msra.mxu0 %v1218
    %1240 = vmatpush.bf16.msra.mxu0 %v1217
    %1241 = vmatmul.bf16.gmra.mxu0 %v1183
    %v1242 = vpop.f32.mrf.mxu0
    %v1243 = vadd.f32 %v1180, %v1242
    %v1244 = vpop.f32.mrf.mxu0
    %v1245 = vadd.f32 %v1180, %v1244
    %1246 = vdwg.mxu0
    %v1247 = vmax.f32 %v1243, 0.0
    %v1248 = vmax.f32 %v1245, 0.0
    %v1249 = vpack.c.bf16 %v1248, %v1247
    %v1250 = vld [vmem:[#allocation18] sm:$0xf]
    %v1251 = vld [vmem:[#allocation18 + $0x4] sm:$0xf]
    %v1252 = vld [vmem:[#allocation18 + $0x8] sm:$0xf]
    %v1253 = vld [vmem:[#allocation18 + $0xc] sm:$0xf]
    %v1254 = vld [vmem:[#allocation18 + $0x10] sm:$0xf]
    %v1255 = vld [vmem:[#allocation18 + $0x14] sm:$0xf]
    %v1256 = vld [vmem:[#allocation18 + $0x18] sm:$0xf]
    %v1257 = vld [vmem:[#allocation18 + $0x1c] sm:$0xf]
    %v1258 = vld [vmem:[#allocation18 + $0x20] sm:$0xf]
    %v1259 = vld [vmem:[#allocation18 + $0x24] sm:$0xf]
    %v1260 = vld [vmem:[#allocation18 + $0x28] sm:$0xf]
    %v1261 = vld [vmem:[#allocation18 + $0x2c] sm:$0xf]
    %v1262 = vld [vmem:[#allocation18 + $0x30] sm:$0xf]
    %v1263 = vld [vmem:[#allocation18 + $0x34] sm:$0xf]
    %v1264 = vld [vmem:[#allocation18 + $0x38] sm:$0xf]
    %v1265 = vld [vmem:[#allocation18 + $0x3c] sm:$0xf]
    %v1266 = vld [vmem:[#allocation19 + $0x11] ss:$0 sm:$0xff]
    %v1283 = vunpack.c.l.b16 %v1250
    %v1284 = vunpack.c.l.b16 %v1251
    %v1285 = vunpack.c.l.b16 %v1252
    %v1286 = vunpack.c.l.b16 %v1253
    %v1287 = vunpack.c.l.b16 %v1254
    %v1288 = vunpack.c.l.b16 %v1255
    %v1289 = vunpack.c.l.b16 %v1256
    %v1290 = vunpack.c.l.b16 %v1257
    %v1291 = vunpack.c.l.b16 %v1258
    %v1292 = vunpack.c.l.b16 %v1259
    %v1293 = vunpack.c.l.b16 %v1260
    %v1294 = vunpack.c.l.b16 %v1261
    %v1295 = vunpack.c.l.b16 %v1262
    %v1296 = vunpack.c.l.b16 %v1263
    %v1297 = vunpack.c.l.b16 %v1264
    %v1298 = vunpack.c.l.b16 %v1265
    %v1299 = vpack.c.b16 %v1284, %v1283
    %v1300 = vpack.c.b16 %v1286, %v1285
    %v1301 = vpack.c.b16 %v1288, %v1287
    %v1302 = vpack.c.b16 %v1290, %v1289
    %v1303 = vpack.c.b16 %v1292, %v1291
    %v1304 = vpack.c.b16 %v1294, %v1293
    %v1305 = vpack.c.b16 %v1296, %v1295
    %v1306 = vpack.c.b16 %v1298, %v1297
    %1315 = vmatpush.bf16.msra.mxu0 %v1306
    %1316 = vmatpush.bf16.msra.mxu0 %v1305
    %1317 = vmatpush.bf16.msra.mxu0 %v1304
    %1318 = vmatpush.bf16.msra.mxu0 %v1303
    %1319 = vmatpush.bf16.msra.mxu0 %v1302
    %1320 = vmatpush.bf16.msra.mxu0 %v1301
    %1321 = vmatpush.bf16.msra.mxu0 %v1300
    %1322 = vmatpush.bf16.msra.mxu0 %v1299
    %1323 = vmatmul.bf16.gmra.mxu0 %v1249
    %v1324 = vpop.f32.mrf.mxu0
    %v1325 = vadd.f32 %v1266, %v1324
    %v1326 = vpop.f32.mrf.mxu0
    %v1327 = vadd.f32 %v1266, %v1326
    %1328 = vdwg.mxu0
    %v1329 = vpack.c.bf16 %v1325, %v1325
    %v1330 = vpack.c.bf16 %v1327, %v1327
    %1331 = vst [vmem:[%s16] sm:$0xf] %v1329
    %1332 = vst [vmem:[%s16 + $0x4] sm:$0xf] %v1330
    %1333 = vst [vmem:[%s17] sm:$0xff] %v839
    %1334 = vst [vmem:[%s17 + $0x8] sm:$0xff] %v840
    %1335 = vst [vmem:[%s17 + $0x10] sm:$0xff] %v841
    %1336 = vst [vmem:[%s17 + $0x18] sm:$0xff] %v842
    // Predicated region
    $region110: #{_forward_jit.1} parent=1 // pred_check
      _
    $region111: #{_forward_jit.1} parent=1 // pred_check_branch
      %1338 = sbr.rel (0) target = $region113
    $region112: #{_forward_jit.1} parent=1 // pred_region
      _
    $region113: #{_forward_jit.1} parent=1 // pred_fallthru
      _
    // Predicated region
    $region114: #{_forward_jit.1} parent=1 // pred_check
      _
    $region115: #{_forward_jit.1} parent=1 // pred_check_branch
      %1340 = sbr.rel (0) target = $region117
    $region116: #{_forward_jit.1} parent=1 // pred_region
      _
    $region117: #{_forward_jit.1} parent=1 // pred_fallthru
      _
    // Predicated region
    $region118: #{_forward_jit.1} parent=1 // pred_check
      _
    $region119: #{_forward_jit.1} parent=1 // pred_check_branch
      %1342 = sbr.rel (0) target = $region121
    $region120: #{_forward_jit.1} parent=1 // pred_region
      _
    $region121: #{_forward_jit.1} parent=1 // pred_fallthru
      _
    // Predicated region
    $region122: #{_forward_jit.1} parent=1 // pred_check
      _
    $region123: #{_forward_jit.1} parent=1 // pred_check_branch
      %1344 = sbr.rel (0) target = $region125
    $region124: #{_forward_jit.1} parent=1 // pred_region
      _
    $region125: #{_forward_jit.1} parent=1 // pred_fallthru
      _
    // Predicated region
    $region126: #{_forward_jit.1} parent=1 // pred_check
      _
    $region127: #{_forward_jit.1} parent=1 // pred_check_branch
      %1346 = sbr.rel (0) target = $region129
    $region128: #{_forward_jit.1} parent=1 // pred_region
      _
    $region129: #{_forward_jit.1} parent=1 // pred_fallthru
      _
    // Predicated region
    $region130: #{_forward_jit.1} parent=1 // pred_check
      _
    $region131: #{_forward_jit.1} parent=1 // pred_check_branch
      %1348 = sbr.rel (0) target = $region133
    $region132: #{_forward_jit.1} parent=1 // pred_region
      _
    $region133: #{_forward_jit.1} parent=1 // pred_fallthru
      _
    %1349 = vsyncpa [#allocation3], 1
    %1350 = vsyncpa [#allocation5], 1
    %1351 = vsyncpa [#allocation8], 1
    %1352 = vsyncpa [#allocation11], 1
    %1353 = vsyncpa [#allocation14], 1
    %1354 = vsyncpa [#allocation17], 1
    %1355 = vsyncpa [#allocation20], 1

// kernel: _forward_jit.1
$region0: #{_forward_jit.1}
  #allocation0 [shape = 'u32[]', space=smem, size = 0x4, offset = 0x4, fixed_abs, tag = 'smem constant byte address 0x4 - core index']
  #allocation1 [shape = 'u32[72,128]{1,0:T(1,128)}', space=vmem, size = 0x9000, scoped, tag = 'internal scratch']
  %s0 = inlined_call_operand.vmem [shape: bf16[16,128], index: 0, kind: input, shape index: {}]
  %s1 = inlined_call_operand.vmem [shape: bf16[16,128], index: 1, kind: input, shape index: {}]
  %s2 = inlined_call_operand.vmem [shape: f32[16,128], index: 2, kind: input, shape index: {}]
  %s3 = inlined_call_operand.hbm [shape: bf16[128,128], index: 3, kind: input, shape index: {}]
  %s4 = inlined_call_operand.hbm [shape: bf16[128,128], index: 4, kind: input, shape index: {}]
  %s5 = inlined_call_operand.hbm [shape: bf16[128,128], index: 5, kind: input, shape index: {}]
  %s6 = inlined_call_operand.hbm [shape: bf16[128,128], index: 6, kind: input, shape index: {}]
  %s7 = inlined_call_operand.hbm [shape: bf16[128,256], index: 7, kind: input, shape index: {}]
  %s8 = inlined_call_operand.hbm [shape: bf16[128,256], index: 8, kind: input, shape index: {}]
  %s9 = inlined_call_operand.hbm [shape: bf16[128,256], index: 9, kind: input, shape index: {}]
  %s10 = inlined_call_operand.hbm [shape: bf16[128,128], index: 10, kind: input, shape index: {}]
  %s11 = inlined_call_operand.hbm [shape: bf16[128,128], index: 11, kind: input, shape index: {}]
  %s12 = inlined_call_operand.hbm [shape: bf16[128,128], index: 12, kind: input, shape index: {}]
  %s13 = inlined_call_operand.hbm [shape: bf16[128,128], index: 13, kind: input, shape index: {}]
  %s14 = inlined_call_operand.hbm [shape: f32[10,256], index: 14, kind: input, shape index: {}]
  %s15 = inlined_call_operand.vmem [shape: bf16[16,128], index: 15, kind: output, shape index: {0}]
  %s16 = inlined_call_operand.vmem [shape: bf16[16,128], index: 16, kind: output, shape index: {1}]
  %s17 = inlined_call_operand.vmem [shape: f32[16,256], index: 17, kind: output, shape index: {2}]
  %18 = xla_tuple %s15, %s16, %s17
  %s19 = sld [smem:[#allocation0]]
  $region134: #{_forward_jit.1} parent=0
    _
  %s21 = ssub.s32 1, %s19
  %s22 = scalar_select 0, %s21, %s19
  $region1: #{_forward_jit.1} parent=0
    #allocation2 [shape = 'u8[32768]{0}', space=vmem, size = 0x8000, scoped, tag = 'input window, operand 3, single buffered']
    #allocation3 [shape = 's32[1]{0}', space=sflag, size = 0x4, scoped, tag = 'scoped memory for _forward_jit.1']
    #allocation4 [shape = 'u8[32768]{0}', space=vmem, size = 0x8000, scoped, tag = 'input window, operand 4, single buffered']
    #allocation5 [shape = 's32[1]{0}', space=sflag, size = 0x4, scoped, tag = 'scoped memory for _forward_jit.1']
    #allocation6 [shape = 'u8[32768]{0}', space=vmem, size = 0x8000, scoped, tag = 'input window, operand 5, single buffered']
    #allocation7 [shape = 'u8[32768]{0}', space=vmem, size = 0x8000, scoped, tag = 'input window, operand 6, single buffered']
    #allocation8 [shape = 's32[1]{0}', space=sflag, size = 0x4, scoped, tag = 'scoped memory for _forward_jit.1']
    #allocation9 [shape = 'u8[65536]{0}', space=vmem, size = 0x10000, scoped, tag = 'input window, operand 7, single buffered']
    #allocation10 [shape = 'u8[65536]{0}', space=vmem, size = 0x10000, scoped, tag = 'input window, operand 8, single buffered']
    #allocation11 [shape = 's32[1]{0}', space=sflag, size = 0x4, scoped, tag = 'scoped memory for _forward_jit.1']
    #allocation12 [shape = 'u8[65536]{0}', space=vmem, size = 0x10000, scoped, tag = 'input window, operand 9, single buffered']
    #allocation13 [shape = 'u8[32768]{0}', space=vmem, size = 0x8000, scoped, tag = 'input window, operand 10, single buffered']
    #allocation14 [shape = 's32[1]{0}', space=sflag, size = 0x4, scoped, tag = 'scoped memory for _forward_jit.1']
    #allocation15 [shape = 'u8[32768]{0}', space=vmem, size = 0x8000, scoped, tag = 'input window, operand 11, single buffered']
    #allocation16 [shape = 'u8[32768]{0}', space=vmem, size = 0x8000, scoped, tag = 'input window, operand 12, single buffered']
    #allocation17 [shape = 's32[1]{0}', space=sflag, size = 0x4, scoped, tag = 'scoped memory for _forward_jit.1']
    #allocation18 [shape = 'u8[32768]{0}', space=vmem, size = 0x8000, scoped, tag = 'input window, operand 13, single buffered']
    #allocation19 [shape = 'u8[16384]{0}', space=vmem, size = 0x4000, scoped, tag = 'input window, operand 14, single buffered']
    #allocation20 [shape = 's32[1]{0}', space=sflag, size = 0x4, scoped, tag = 'scoped memory for _forward_jit.1']
    %23 = vsyncpa [#allocation3], 0
    %24 = vsyncpa [#allocation5], 0
    %25 = vsyncpa [#allocation8], 0
    %26 = vsyncpa [#allocation11], 0
    %27 = vsyncpa [#allocation14], 0
    %28 = vsyncpa [#allocation17], 0
    %29 = vsyncpa [#allocation20], 0
    // Predicated region
    $region2: #{_forward_jit.1} parent=1 // pred_check
      _
    $region3: #{_forward_jit.1} parent=1 // pred_check_branch
      %31 = sbr.rel (0) target = $region5
    $region4: #{_forward_jit.1} parent=1 // pred_region
      _
    $region5: #{_forward_jit.1} parent=1 // pred_fallthru
      _
    // Predicated region
    $region6: #{_forward_jit.1} parent=1 // pred_check
      _
    $region7: #{_forward_jit.1} parent=1 // pred_check_branch
      %33 = sbr.rel (0) target = $region9
    $region8: #{_forward_jit.1} parent=1 // pred_region
      _
    $region9: #{_forward_jit.1} parent=1 // pred_fallthru
      _
    // Predicated region
    $region10: #{_forward_jit.1} parent=1 // pred_check
      _
    $region11: #{_forward_jit.1} parent=1 // pred_check_branch
      %35 = sbr.rel (0) target = $region13
    $region12: #{_forward_jit.1} parent=1 // pred_region
      _
    $region13: #{_forward_jit.1} parent=1 // pred_fallthru
      _
    // Predicated region
    $region14: #{_forward_jit.1} parent=1 // pred_check
      _
    $region15: #{_forward_jit.1} parent=1 // pred_check_branch
      %37 = sbr.rel (0) target = $region17
    $region16: #{_forward_jit.1} parent=1 // pred_region
      %39 = vsyncadd [#allocation3], 0
      %s40 = sshll.u32 %s3, 4
      %s41 = int_to_ptr.hbm [resolvable:$true] %s40
      %s42 = sshll.u32 [#allocation2], 4
      %s43 = int_to_ptr.vmem [resolvable:$true] %s42
      %48 = dma.hbm_to_vmem [thread:$0]  %s41, 1024, %s43, [#allocation3], 64, 64, 4
    $region17: #{_forward_jit.1} parent=1 // pred_fallthru
      _
    // Predicated region
    $region18: #{_forward_jit.1} parent=1 // pred_check
      _
    $region19: #{_forward_jit.1} parent=1 // pred_check_branch
      %50 = sbr.rel (0) target = $region21
    $region20: #{_forward_jit.1} parent=1 // pred_region
      %52 = vsyncadd [#allocation5], 0
      %s53 = sshll.u32 %s4, 4
      %s54 = int_to_ptr.hbm [resolvable:$true] %s53
      %s55 = sshll.u32 [#allocation4], 4
      %s56 = int_to_ptr.vmem [resolvable:$true] %s55
      %61 = dma.hbm_to_vmem [thread:$0]  %s54, 1024, %s56, [#allocation5], 64, 64, 4
    $region21: #{_forward_jit.1} parent=1 // pred_fallthru
      _
    // Predicated region
    $region22: #{_forward_jit.1} parent=1 // pred_check
      _
    $region23: #{_forward_jit.1} parent=1 // pred_check_branch
      %63 = sbr.rel (0) target = $region25
    $region24: #{_forward_jit.1} parent=1 // pred_region
      %65 = vsyncadd [#allocation5], 0
      %s66 = sshll.u32 %s5, 4
      %s67 = int_to_ptr.hbm [resolvable:$true] %s66
      %s68 = sshll.u32 [#allocation6], 4
      %s69 = int_to_ptr.vmem [resolvable:$true] %s68
      %74 = dma.hbm_to_vmem [thread:$0]  %s67, 1024, %s69, [#allocation5], 64, 64, 4
    $region25: #{_forward_jit.1} parent=1 // pred_fallthru
      _
    // Predicated region
    $region26: #{_forward_jit.1} parent=1 // pred_check
      _
    $region27: #{_forward_jit.1} parent=1 // pred_check_branch
      %76 = sbr.rel (0) target = $region29
    $region28: #{_forward_jit.1} parent=1 // pred_region
      %78 = vsyncadd [#allocation8], 0
      %s79 = sshll.u32 %s6, 4
      %s80 = int_to_ptr.hbm [resolvable:$true] %s79
      %s81 = sshll.u32 [#allocation7], 4
      %s82 = int_to_ptr.vmem [resolvable:$true] %s81
      %87 = dma.hbm_to_vmem [thread:$0]  %s80, 1024, %s82, [#allocation8], 64, 64, 4
    $region29: #{_forward_jit.1} parent=1 // pred_fallthru
      _
    // Predicated region
    $region30: #{_forward_jit.1} parent=1 // pred_check
      _
    $region31: #{_forward_jit.1} parent=1 // pred_check_branch
      %89 = sbr.rel (0) target = $region33
    $region32: #{_forward_jit.1} parent=1 // pred_region
      %91 = vsyncadd [#allocation8], 0
      %s92 = sshll.u32 %s7, 4
      %s93 = int_to_ptr.hbm [resolvable:$true] %s92
      %s94 = sshll.u32 [#allocation9], 4
      %s95 = int_to_ptr.vmem [resolvable:$true] %s94
      %100 = dma.hbm_to_vmem [thread:$0]  %s93, 2048, %s95, [#allocation8], 128, 128, 8
    $region33: #{_forward_jit.1} parent=1 // pred_fallthru
      _
    // Predicated region
    $region34: #{_forward_jit.1} parent=1 // pred_check
      _
    $region35: #{_forward_jit.1} parent=1 // pred_check_branch
      %102 = sbr.rel (0) target = $region37
    $region36: #{_forward_jit.1} parent=1 // pred_region
      %104 = vsyncadd [#allocation11], 0
      %s105 = sshll.u32 %s8, 4
      %s106 = int_to_ptr.hbm [resolvable:$true] %s105
      %s107 = sshll.u32 [#allocation10], 4
      %s108 = int_to_ptr.vmem [resolvable:$true] %s107
      %113 = dma.hbm_to_vmem [thread:$0]  %s106, 2048, %s108, [#allocation11], 128, 128, 8
    $region37: #{_forward_jit.1} parent=1 // pred_fallthru
      _
    // Predicated region
    $region38: #{_forward_jit.1} parent=1 // pred_check
      _
    $region39: #{_forward_jit.1} parent=1 // pred_check_branch
      %115 = sbr.rel (0) target = $region41
    $region40: #{_forward_jit.1} parent=1 // pred_region
      %117 = vsyncadd [#allocation11], 0
      %s118 = sshll.u32 %s9, 4
      %s119 = int_to_ptr.hbm [resolvable:$true] %s118
      %s120 = sshll.u32 [#allocation12], 4
      %s121 = int_to_ptr.vmem [resolvable:$true] %s120
      %126 = dma.hbm_to_vmem [thread:$0]  %s119, 2048, %s121, [#allocation11], 128, 128, 8
    $region41: #{_forward_jit.1} parent=1 // pred_fallthru
      _
    // Predicated region
    $region42: #{_forward_jit.1} parent=1 // pred_check
      _
    $region43: #{_forward_jit.1} parent=1 // pred_check_branch
      %128 = sbr.rel (0) target = $region45
    $region44: #{_forward_jit.1} parent=1 // pred_region
      %130 = vsyncadd [#allocation14], 0
      %s131 = sshll.u32 %s10, 4
      %s132 = int_to_ptr.hbm [resolvable:$true] %s131
      %s133 = sshll.u32 [#allocation13], 4
      %s134 = int_to_ptr.vmem [resolvable:$true] %s133
      %139 = dma.hbm_to_vmem [thread:$0]  %s132, 1024, %s134, [#allocation14], 64, 64, 4
    $region45: #{_forward_jit.1} parent=1 // pred_fallthru
      _
    // Predicated region
    $region46: #{_forward_jit.1} parent=1 // pred_check
      _
    $region47: #{_forward_jit.1} parent=1 // pred_check_branch
      %141 = sbr.rel (0) target = $region49
    $region48: #{_forward_jit.1} parent=1 // pred_region
      %143 = vsyncadd [#allocation14], 0
      %s144 = sshll.u32 %s11, 4
      %s145 = int_to_ptr.hbm [resolvable:$true] %s144
      %s146 = sshll.u32 [#allocation15], 4
      %s147 = int_to_ptr.vmem [resolvable:$true] %s146
      %152 = dma.hbm_to_vmem [thread:$0]  %s145, 1024, %s147, [#allocation14], 64, 64, 4
    $region49: #{_forward_jit.1} parent=1 // pred_fallthru
      _
    // Predicated region
    $region50: #{_forward_jit.1} parent=1 // pred_check
      _
    $region51: #{_forward_jit.1} parent=1 // pred_check_branch
      %154 = sbr.rel (0) target = $region53
    $region52: #{_forward_jit.1} parent=1 // pred_region
      %156 = vsyncadd [#allocation17], 0
      %s157 = sshll.u32 %s12, 4
      %s158 = int_to_ptr.hbm [resolvable:$true] %s157
      %s159 = sshll.u32 [#allocation16], 4
      %s160 = int_to_ptr.vmem [resolvable:$true] %s159
      %165 = dma.hbm_to_vmem [thread:$0]  %s158, 1024, %s160, [#allocation17], 64, 64, 4
    $region53: #{_forward_jit.1} parent=1 // pred_fallthru
      _
    // Predicated region
    $region54: #{_forward_jit.1} parent=1 // pred_check
      _
    $region55: #{_forward_jit.1} parent=1 // pred_check_branch
      %167 = sbr.rel (0) target = $region57
    $region56: #{_forward_jit.1} parent=1 // pred_region
      %169 = vsyncadd [#allocation17], 0
      %s170 = sshll.u32 %s13, 4
      %s171 = int_to_ptr.hbm [resolvable:$true] %s170
      %s172 = sshll.u32 [#allocation18], 4
      %s173 = int_to_ptr.vmem [resolvable:$true] %s172
      %178 = dma.hbm_to_vmem [thread:$0]  %s171, 1024, %s173, [#allocation17], 64, 64, 4
    $region57: #{_forward_jit.1} parent=1 // pred_fallthru
      _
    // Predicated region
    $region58: #{_forward_jit.1} parent=1 // pred_check
      _
    $region59: #{_forward_jit.1} parent=1 // pred_check_branch
      %180 = sbr.rel (0) target = $region61
    $region60: #{_forward_jit.1} parent=1 // pred_region
      %182 = vsyncadd [#allocation20], 0
      %s183 = sshll.u32 %s14, 4
      %s184 = int_to_ptr.hbm [resolvable:$true] %s183
      %s185 = sshll.u32 [#allocation19], 4
      %s186 = int_to_ptr.vmem [resolvable:$true] %s185
      %191 = dma.hbm_to_vmem [thread:$0]  %s184, 512, %s186, [#allocation20], 256, 256, 16
    $region61: #{_forward_jit.1} parent=1 // pred_fallthru
      _
    // Predicated region
    $region62: #{_forward_jit.1} parent=1 // pred_check
      _
    $region63: #{_forward_jit.1} parent=1 // pred_check_branch
      %193 = sbr.rel (0) target = $region65
    $region64: #{_forward_jit.1} parent=1 // pred_region
      %195 = dma.done [#allocation3], 1024
    $region65: #{_forward_jit.1} parent=1 // pred_fallthru
      _
    // Predicated region
    $region66: #{_forward_jit.1} parent=1 // pred_check
      _
    $region67: #{_forward_jit.1} parent=1 // pred_check_branch
      %197 = sbr.rel (0) target = $region69
    $region68: #{_forward_jit.1} parent=1 // pred_region
      %199 = dma.done [#allocation5], 1024
    $region69: #{_forward_jit.1} parent=1 // pred_fallthru
      _
    // Predicated region
    $region70: #{_forward_jit.1} parent=1 // pred_check
      _
    $region71: #{_forward_jit.1} parent=1 // pred_check_branch
      %201 = sbr.rel (0) target = $region73
    $region72: #{_forward_jit.1} parent=1 // pred_region
      %203 = dma.done [#allocation5], 1024
    $region73: #{_forward_jit.1} parent=1 // pred_fallthru
      _
    // Predicated region
    $region74: #{_forward_jit.1} parent=1 // pred_check
      _
    $region75: #{_forward_jit.1} parent=1 // pred_check_branch
      %205 = sbr.rel (0) target = $region77
    $region76: #{_forward_jit.1} parent=1 // pred_region
      %207 = dma.done [#allocation8], 1024
    $region77: #{_forward_jit.1} parent=1 // pred_fallthru
      _
    // Predicated region
    $region78: #{_forward_jit.1} parent=1 // pred_check
      _
    $region79: #{_forward_jit.1} parent=1 // pred_check_branch
      %209 = sbr.rel (0) target = $region81
    $region80: #{_forward_jit.1} parent=1 // pred_region
      %211 = dma.done [#allocation8], 2048
    $region81: #{_forward_jit.1} parent=1 // pred_fallthru
      _
    // Predicated region
    $region82: #{_forward_jit.1} parent=1 // pred_check
      _
    $region83: #{_forward_jit.1} parent=1 // pred_check_branch
      %213 = sbr.rel (0) target = $region85
    $region84: #{_forward_jit.1} parent=1 // pred_region
      %215 = dma.done [#allocation11], 2048
    $region85: #{_forward_jit.1} parent=1 // pred_fallthru
      _
    // Predicated region
    $region86: #{_forward_jit.1} parent=1 // pred_check
      _
    $region87: #{_forward_jit.1} parent=1 // pred_check_branch
      %217 = sbr.rel (0) target = $region89
    $region88: #{_forward_jit.1} parent=1 // pred_region
      %219 = dma.done [#allocation11], 2048
    $region89: #{_forward_jit.1} parent=1 // pred_fallthru
      _
    // Predicated region
    $region90: #{_forward_jit.1} parent=1 // pred_check
      _
    $region91: #{_forward_jit.1} parent=1 // pred_check_branch
      %221 = sbr.rel (0) target = $region93
    $region92: #{_forward_jit.1} parent=1 // pred_region
      %223 = dma.done [#allocation14], 1024
    $region93: #{_forward_jit.1} parent=1 // pred_fallthru
      _
    // Predicated region
    $region94: #{_forward_jit.1} parent=1 // pred_check
      _
    $region95: #{_forward_jit.1} parent=1 // pred_check_branch
      %225 = sbr.rel (0) target = $region97
    $region96: #{_forward_jit.1} parent=1 // pred_region
      %227 = dma.done [#allocation14], 1024
    $region97: #{_forward_jit.1} parent=1 // pred_fallthru
      _
    // Predicated region
    $region98: #{_forward_jit.1} parent=1 // pred_check
      _
    $region99: #{_forward_jit.1} parent=1 // pred_check_branch
      %229 = sbr.rel (0) target = $region101
    $region100: #{_forward_jit.1} parent=1 // pred_region
      %231 = dma.done [#allocation17], 1024
    $region101: #{_forward_jit.1} parent=1 // pred_fallthru
      _
    // Predicated region
    $region102: #{_forward_jit.1} parent=1 // pred_check
      _
    $region103: #{_forward_jit.1} parent=1 // pred_check_branch
      %233 = sbr.rel (0) target = $region105
    $region104: #{_forward_jit.1} parent=1 // pred_region
      %235 = dma.done [#allocation17], 1024
    $region105: #{_forward_jit.1} parent=1 // pred_fallthru
      _
    // Predicated region
    $region106: #{_forward_jit.1} parent=1 // pred_check
      _
    $region107: #{_forward_jit.1} parent=1 // pred_check_branch
      %237 = sbr.rel (0) target = $region109
    $region108: #{_forward_jit.1} parent=1 // pred_region
      %239 = dma.done [#allocation20], 512
    $region109: #{_forward_jit.1} parent=1 // pred_fallthru
      _
    %v240 = vld [vmem:[%s0] sm:$0xf]
    %v241 = vld [vmem:[%s0 + $0x4] sm:$0xf]
    %v242 = vld [vmem:[#allocation2] sm:$0xf]
    %v243 = vld [vmem:[#allocation2 + $0x4] sm:$0xf]
    %v244 = vld [vmem:[#allocation2 + $0x8] sm:$0xf]
    %v245 = vld [vmem:[#allocation2 + $0xc] sm:$0xf]
    %v246 = vld [vmem:[#allocation2 + $0x10] sm:$0xf]
    %v247 = vld [vmem:[#allocation2 + $0x14] sm:$0xf]
    %v248 = vld [vmem:[#allocation2 + $0x18] sm:$0xf]
    %v249 = vld [vmem:[#allocation2 + $0x1c] sm:$0xf]
    %v250 = vld [vmem:[#allocation2 + $0x20] sm:$0xf]
    %v251 = vld [vmem:[#allocation2 + $0x24] sm:$0xf]
    %v252 = vld [vmem:[#allocation2 + $0x28] sm:$0xf]
    %v253 = vld [vmem:[#allocation2 + $0x2c] sm:$0xf]
    %v254 = vld [vmem:[#allocation2 + $0x30] sm:$0xf]
    %v255 = vld [vmem:[#allocation2 + $0x34] sm:$0xf]
    %v256 = vld [vmem:[#allocation2 + $0x38] sm:$0xf]
    %v257 = vld [vmem:[#allocation2 + $0x3c] sm:$0xf]
    %v258 = vld [vmem:[#allocation19] ss:$0 sm:$0xff]
    %v261 = vunpack.c.l.b16 %v240
    %v262 = vunpack.c.l.b16 %v241
    %v263 = vpack.c.b16 %v262, %v261
    %v281 = vunpack.c.l.b16 %v242
    %v282 = vunpack.c.l.b16 %v243
    %v283 = vunpack.c.l.b16 %v244
    %v284 = vunpack.c.l.b16 %v245
    %v285 = vunpack.c.l.b16 %v246
    %v286 = vunpack.c.l.b16 %v247
    %v287 = vunpack.c.l.b16 %v248
    %v288 = vunpack.c.l.b16 %v249
    %v289 = vunpack.c.l.b16 %v250
    %v290 = vunpack.c.l.b16 %v251
    %v291 = vunpack.c.l.b16 %v252
    %v292 = vunpack.c.l.b16 %v253
    %v293 = vunpack.c.l.b16 %v254
    %v294 = vunpack.c.l.b16 %v255
    %v295 = vunpack.c.l.b16 %v256
    %v296 = vunpack.c.l.b16 %v257
    %v297 = vpack.c.b16 %v282, %v281
    %v298 = vpack.c.b16 %v284, %v283
    %v299 = vpack.c.b16 %v286, %v285
    %v300 = vpack.c.b16 %v288, %v287
    %v301 = vpack.c.b16 %v290, %v289
    %v302 = vpack.c.b16 %v292, %v291
    %v303 = vpack.c.b16 %v294, %v293
    %v304 = vpack.c.b16 %v296, %v295
    %313 = vmatpush.bf16.msra.mxu0 %v304
    %314 = vmatpush.bf16.msra.mxu0 %v303
    %315 = vmatpush.bf16.msra.mxu0 %v302
    %316 = vmatpush.bf16.msra.mxu0 %v301
    %317 = vmatpush.bf16.msra.mxu0 %v300
    %318 = vmatpush.bf16.msra.mxu0 %v299
    %319 = vmatpush.bf16.msra.mxu0 %v298
    %320 = vmatpush.bf16.msra.mxu0 %v297
    %321 = vmatmul.bf16.gmra.mxu0 %v263
    %v322 = vpop.f32.mrf.mxu0
    %v323 = vadd.f32 %v258, %v322
    %v324 = vpop.f32.mrf.mxu0
    %v325 = vadd.f32 %v258, %v324
    %326 = vdwg.mxu0
    %v327 = vmax.f32 %v323, 0.0
    %v328 = vmax.f32 %v325, 0.0
    %v329 = vpack.c.bf16 %v328, %v327
    %v330 = vld [vmem:[#allocation4] sm:$0xf]
    %v331 = vld [vmem:[#allocation4 + $0x4] sm:$0xf]
    %v332 = vld [vmem:[#allocation4 + $0x8] sm:$0xf]
    %v333 = vld [vmem:[#allocation4 + $0xc] sm:$0xf]
    %v334 = vld [vmem:[#allocation4 + $0x10] sm:$0xf]
    %v335 = vld [vmem:[#allocation4 + $0x14] sm:$0xf]
    %v336 = vld [vmem:[#allocation4 + $0x18] sm:$0xf]
    %v337 = vld [vmem:[#allocation4 + $0x1c] sm:$0xf]
    %v338 = vld [vmem:[#allocation4 + $0x20] sm:$0xf]
    %v339 = vld [vmem:[#allocation4 + $0x24] sm:$0xf]
    %v340 = vld [vmem:[#allocation4 + $0x28] sm:$0xf]
    %v341 = vld [vmem:[#allocation4 + $0x2c] sm:$0xf]
    %v342 = vld [vmem:[#allocation4 + $0x30] sm:$0xf]
    %v343 = vld [vmem:[#allocation4 + $0x34] sm:$0xf]
    %v344 = vld [vmem:[#allocation4 + $0x38] sm:$0xf]
    %v345 = vld [vmem:[#allocation4 + $0x3c] sm:$0xf]
    %v346 = vld [vmem:[#allocation19 + $0x1] ss:$0 sm:$0xff]
    %v363 = vunpack.c.l.b16 %v330
    %v364 = vunpack.c.l.b16 %v331
    %v365 = vunpack.c.l.b16 %v332
    %v366 = vunpack.c.l.b16 %v333
    %v367 = vunpack.c.l.b16 %v334
    %v368 = vunpack.c.l.b16 %v335
    %v369 = vunpack.c.l.b16 %v336
    %v370 = vunpack.c.l.b16 %v337
    %v371 = vunpack.c.l.b16 %v338
    %v372 = vunpack.c.l.b16 %v339
    %v373 = vunpack.c.l.b16 %v340
    %v374 = vunpack.c.l.b16 %v341
    %v375 = vunpack.c.l.b16 %v342
    %v376 = vunpack.c.l.b16 %v343
    %v377 = vunpack.c.l.b16 %v344
    %v378 = vunpack.c.l.b16 %v345
    %v379 = vpack.c.b16 %v364, %v363
    %v380 = vpack.c.b16 %v366, %v365
    %v381 = vpack.c.b16 %v368, %v367
    %v382 = vpack.c.b16 %v370, %v369
    %v383 = vpack.c.b16 %v372, %v371
    %v384 = vpack.c.b16 %v374, %v373
    %v385 = vpack.c.b16 %v376, %v375
    %v386 = vpack.c.b16 %v378, %v377
    %395 = vmatpush.bf16.msra.mxu0 %v386
    %396 = vmatpush.bf16.msra.mxu0 %v385
    %397 = vmatpush.bf16.msra.mxu0 %v384
    %398 = vmatpush.bf16.msra.mxu0 %v383
    %399 = vmatpush.bf16.msra.mxu0 %v382
    %400 = vmatpush.bf16.msra.mxu0 %v381
    %401 = vmatpush.bf16.msra.mxu0 %v380
    %402 = vmatpush.bf16.msra.mxu0 %v379
    %403 = vmatmul.bf16.gmra.mxu0 %v329
    %v404 = vpop.f32.mrf.mxu0
    %v405 = vadd.f32 %v346, %v404
    %v406 = vpop.f32.mrf.mxu0
    %v407 = vadd.f32 %v346, %v406
    %408 = vdwg.mxu0
    %v409 = vmax.f32 %v405, 0.0
    %v410 = vmax.f32 %v407, 0.0
    %v411 = vpack.c.bf16 %v410, %v409
    %v412 = vld [vmem:[%s1] sm:$0xf]
    %v413 = vld [vmem:[%s1 + $0x4] sm:$0xf]
    %v414 = vld [vmem:[#allocation6] sm:$0xf]
    %v415 = vld [vmem:[#allocation6 + $0x4] sm:$0xf]
    %v416 = vld [vmem:[#allocation6 + $0x8] sm:$0xf]
    %v417 = vld [vmem:[#allocation6 + $0xc] sm:$0xf]
    %v418 = vld [vmem:[#allocation6 + $0x10] sm:$0xf]
    %v419 = vld [vmem:[#allocation6 + $0x14] sm:$0xf]
    %v420 = vld [vmem:[#allocation6 + $0x18] sm:$0xf]
    %v421 = vld [vmem:[#allocation6 + $0x1c] sm:$0xf]
    %v422 = vld [vmem:[#allocation6 + $0x20] sm:$0xf]
    %v423 = vld [vmem:[#allocation6 + $0x24] sm:$0xf]
    %v424 = vld [vmem:[#allocation6 + $0x28] sm:$0xf]
    %v425 = vld [vmem:[#allocation6 + $0x2c] sm:$0xf]
    %v426 = vld [vmem:[#allocation6 + $0x30] sm:$0xf]
    %v427 = vld [vmem:[#allocation6 + $0x34] sm:$0xf]
    %v428 = vld [vmem:[#allocation6 + $0x38] sm:$0xf]
    %v429 = vld [vmem:[#allocation6 + $0x3c] sm:$0xf]
    %v430 = vld [vmem:[#allocation19 + $0x2] ss:$0 sm:$0xff]
    %v433 = vunpack.c.l.b16 %v412
    %v434 = vunpack.c.l.b16 %v413
    %v435 = vpack.c.b16 %v434, %v433
    %v453 = vunpack.c.l.b16 %v414
    %v454 = vunpack.c.l.b16 %v415
    %v455 = vunpack.c.l.b16 %v416
    %v456 = vunpack.c.l.b16 %v417
    %v457 = vunpack.c.l.b16 %v418
    %v458 = vunpack.c.l.b16 %v419
    %v459 = vunpack.c.l.b16 %v420
    %v460 = vunpack.c.l.b16 %v421
    %v461 = vunpack.c.l.b16 %v422
    %v462 = vunpack.c.l.b16 %v423
    %v463 = vunpack.c.l.b16 %v424
    %v464 = vunpack.c.l.b16 %v425
    %v465 = vunpack.c.l.b16 %v426
    %v466 = vunpack.c.l.b16 %v427
    %v467 = vunpack.c.l.b16 %v428
    %v468 = vunpack.c.l.b16 %v429
    %v469 = vpack.c.b16 %v454, %v453
    %v470 = vpack.c.b16 %v456, %v455
    %v471 = vpack.c.b16 %v458, %v457
    %v472 = vpack.c.b16 %v460, %v459
    %v473 = vpack.c.b16 %v462, %v461
    %v474 = vpack.c.b16 %v464, %v463
    %v475 = vpack.c.b16 %v466, %v465
    %v476 = vpack.c.b16 %v468, %v467
    %485 = vmatpush.bf16.msra.mxu0 %v476
    %486 = vmatpush.bf16.msra.mxu0 %v475
    %487 = vmatpush.bf16.msra.mxu0 %v474
    %488 = vmatpush.bf16.msra.mxu0 %v473
    %489 = vmatpush.bf16.msra.mxu0 %v472
    %490 = vmatpush.bf16.msra.mxu0 %v471
    %491 = vmatpush.bf16.msra.mxu0 %v470
    %492 = vmatpush.bf16.msra.mxu0 %v469
    %493 = vmatmul.bf16.gmra.mxu0 %v435
    %v494 = vpop.f32.mrf.mxu0
    %v495 = vadd.f32 %v430, %v494
    %v496 = vpop.f32.mrf.mxu0
    %v497 = vadd.f32 %v430, %v496
    %498 = vdwg.mxu0
    %v499 = vmax.f32 %v495, 0.0
    %v500 = vmax.f32 %v497, 0.0
    %v501 = vpack.c.bf16 %v500, %v499
    %v502 = vld [vmem:[#allocation7] sm:$0xf]
    %v503 = vld [vmem:[#allocation7 + $0x4] sm:$0xf]
    %v504 = vld [vmem:[#allocation7 + $0x8] sm:$0xf]
    %v505 = vld [vmem:[#allocation7 + $0xc] sm:$0xf]
    %v506 = vld [vmem:[#allocation7 + $0x10] sm:$0xf]
    %v507 = vld [vmem:[#allocation7 + $0x14] sm:$0xf]
    %v508 = vld [vmem:[#allocation7 + $0x18] sm:$0xf]
    %v509 = vld [vmem:[#allocation7 + $0x1c] sm:$0xf]
    %v510 = vld [vmem:[#allocation7 + $0x20] sm:$0xf]
    %v511 = vld [vmem:[#allocation7 + $0x24] sm:$0xf]
    %v512 = vld [vmem:[#allocation7 + $0x28] sm:$0xf]
    %v513 = vld [vmem:[#allocation7 + $0x2c] sm:$0xf]
    %v514 = vld [vmem:[#allocation7 + $0x30] sm:$0xf]
    %v515 = vld [vmem:[#allocation7 + $0x34] sm:$0xf]
    %v516 = vld [vmem:[#allocation7 + $0x38] sm:$0xf]
    %v517 = vld [vmem:[#allocation7 + $0x3c] sm:$0xf]
    %v518 = vld [vmem:[#allocation19 + $0x3] ss:$0 sm:$0xff]
    %v535 = vunpack.c.l.b16 %v502
    %v536 = vunpack.c.l.b16 %v503
    %v537 = vunpack.c.l.b16 %v504
    %v538 = vunpack.c.l.b16 %v505
    %v539 = vunpack.c.l.b16 %v506
    %v540 = vunpack.c.l.b16 %v507
    %v541 = vunpack.c.l.b16 %v508
    %v542 = vunpack.c.l.b16 %v509
    %v543 = vunpack.c.l.b16 %v510
    %v544 = vunpack.c.l.b16 %v511
    %v545 = vunpack.c.l.b16 %v512
    %v546 = vunpack.c.l.b16 %v513
    %v547 = vunpack.c.l.b16 %v514
    %v548 = vunpack.c.l.b16 %v515
    %v549 = vunpack.c.l.b16 %v516
    %v550 = vunpack.c.l.b16 %v517
    %v551 = vpack.c.b16 %v536, %v535
    %v552 = vpack.c.b16 %v538, %v537
    %v553 = vpack.c.b16 %v540, %v539
    %v554 = vpack.c.b16 %v542, %v541
    %v555 = vpack.c.b16 %v544, %v543
    %v556 = vpack.c.b16 %v546, %v545
    %v557 = vpack.c.b16 %v548, %v547
    %v558 = vpack.c.b16 %v550, %v549
    %567 = vmatpush.bf16.msra.mxu0 %v558
    %568 = vmatpush.bf16.msra.mxu0 %v557
    %569 = vmatpush.bf16.msra.mxu0 %v556
    %570 = vmatpush.bf16.msra.mxu0 %v555
    %571 = vmatpush.bf16.msra.mxu0 %v554
    %572 = vmatpush.bf16.msra.mxu0 %v553
    %573 = vmatpush.bf16.msra.mxu0 %v552
    %574 = vmatpush.bf16.msra.mxu0 %v551
    %575 = vmatmul.bf16.gmra.mxu0 %v501
    %v576 = vpop.f32.mrf.mxu0
    %v577 = vadd.f32 %v518, %v576
    %v578 = vpop.f32.mrf.mxu0
    %v579 = vadd.f32 %v518, %v578
    %580 = vdwg.mxu0
    %v581 = vmax.f32 %v577, 0.0
    %v582 = vmax.f32 %v579, 0.0
    %v583 = vpack.c.bf16 %v582, %v581
    %v584 = vld [vmem:[#allocation9] sm:$0xff]
    %v585 = vld [vmem:[#allocation9 + $0x8] sm:$0xff]
    %v586 = vld [vmem:[#allocation9 + $0x10] sm:$0xff]
    %v587 = vld [vmem:[#allocation9 + $0x18] sm:$0xff]
    %v588 = vld [vmem:[#allocation9 + $0x20] sm:$0xff]
    %v589 = vld [vmem:[#allocation9 + $0x28] sm:$0xff]
    %v590 = vld [vmem:[#allocation9 + $0x30] sm:$0xff]
    %v591 = vld [vmem:[#allocation9 + $0x38] sm:$0xff]
    %v592 = vld [vmem:[#allocation9 + $0x40] sm:$0xff]
    %v593 = vld [vmem:[#allocation9 + $0x48] sm:$0xff]
    %v594 = vld [vmem:[#allocation9 + $0x50] sm:$0xff]
    %v595 = vld [vmem:[#allocation9 + $0x58] sm:$0xff]
    %v596 = vld [vmem:[#allocation9 + $0x60] sm:$0xff]
    %v597 = vld [vmem:[#allocation9 + $0x68] sm:$0xff]
    %v598 = vld [vmem:[#allocation9 + $0x70] sm:$0xff]
    %v599 = vld [vmem:[#allocation9 + $0x78] sm:$0xff]
    %v600 = vld [vmem:[#allocation10] sm:$0xff]
    %v601 = vld [vmem:[#allocation10 + $0x8] sm:$0xff]
    %v602 = vld [vmem:[#allocation10 + $0x10] sm:$0xff]
    %v603 = vld [vmem:[#allocation10 + $0x18] sm:$0xff]
    %v604 = vld [vmem:[#allocation10 + $0x20] sm:$0xff]
    %v605 = vld [vmem:[#allocation10 + $0x28] sm:$0xff]
    %v606 = vld [vmem:[#allocation10 + $0x30] sm:$0xff]
    %v607 = vld [vmem:[#allocation10 + $0x38] sm:$0xff]
    %v608 = vld [vmem:[#allocation10 + $0x40] sm:$0xff]
    %v609 = vld [vmem:[#allocation10 + $0x48] sm:$0xff]
    %v610 = vld [vmem:[#allocation10 + $0x50] sm:$0xff]
    %v611 = vld [vmem:[#allocation10 + $0x58] sm:$0xff]
    %v612 = vld [vmem:[#allocation10 + $0x60] sm:$0xff]
    %v613 = vld [vmem:[#allocation10 + $0x68] sm:$0xff]
    %v614 = vld [vmem:[#allocation10 + $0x70] sm:$0xff]
    %v615 = vld [vmem:[#allocation10 + $0x78] sm:$0xff]
    %v632 = vunpack.c.l.b16 %v600
    %v633 = vunpack.c.h.b16 %v600
    %v634 = vunpack.c.l.b16 %v601
    %v635 = vunpack.c.h.b16 %v601
    %v636 = vunpack.c.l.b16 %v602
    %v637 = vunpack.c.h.b16 %v602
    %v638 = vunpack.c.l.b16 %v603
    %v639 = vunpack.c.h.b16 %v603
    %v640 = vunpack.c.l.b16 %v604
    %v641 = vunpack.c.h.b16 %v604
    %v642 = vunpack.c.l.b16 %v605
    %v643 = vunpack.c.h.b16 %v605
    %v644 = vunpack.c.l.b16 %v606
    %v645 = vunpack.c.h.b16 %v606
    %v646 = vunpack.c.l.b16 %v607
    %v647 = vunpack.c.h.b16 %v607
    %v648 = vunpack.c.l.b16 %v608
    %v649 = vunpack.c.h.b16 %v608
    %v650 = vunpack.c.l.b16 %v609
    %v651 = vunpack.c.h.b16 %v609
    %v652 = vunpack.c.l.b16 %v610
    %v653 = vunpack.c.h.b16 %v610
    %v654 = vunpack.c.l.b16 %v611
    %v655 = vunpack.c.h.b16 %v611
    %v656 = vunpack.c.l.b16 %v612
    %v657 = vunpack.c.h.b16 %v612
    %v658 = vunpack.c.l.b16 %v613
    %v659 = vunpack.c.h.b16 %v613
    %v660 = vunpack.c.l.b16 %v614
    %v661 = vunpack.c.h.b16 %v614
    %v662 = vunpack.c.l.b16 %v615
    %v663 = vunpack.c.h.b16 %v615
    %v664 = vpack.c.b16 %v634, %v632
    %v665 = vpack.c.b16 %v635, %v633
    %v666 = vpack.c.b16 %v638, %v636
    %v667 = vpack.c.b16 %v639, %v637
    %v668 = vpack.c.b16 %v642, %v640
    %v669 = vpack.c.b16 %v643, %v641
    %v670 = vpack.c.b16 %v646, %v644
    %v671 = vpack.c.b16 %v647, %v645
    %v672 = vpack.c.b16 %v650, %v648
    %v673 = vpack.c.b16 %v651, %v649
    %v674 = vpack.c.b16 %v654, %v652
    %v675 = vpack.c.b16 %v655, %v653
    %v676 = vpack.c.b16 %v658, %v656
    %v677 = vpack.c.b16 %v659, %v657
    %v678 = vpack.c.b16 %v662, %v660
    %v679 = vpack.c.b16 %v663, %v661
    %696 = vmatpush.bf16.msra.mxu0 %v678
    %697 = vmatpush.bf16.msra.mxu0 %v676
    %698 = vmatpush.bf16.msra.mxu0 %v674
    %699 = vmatpush.bf16.msra.mxu0 %v672
    %700 = vmatpush.bf16.msra.mxu0 %v670
    %701 = vmatpush.bf16.msra.mxu0 %v668
    %702 = vmatpush.bf16.msra.mxu0 %v666
    %703 = vmatpush.bf16.msra.mxu0 %v664
    %704 = vmatmul.bf16.gmra.mxu0 %v583
    %v705 = vpop.f32.mrf.mxu0
    %v706 = vadd.f32 0.0, %v705
    %v707 = vpop.f32.mrf.mxu0
    %v708 = vadd.f32 0.0, %v707
    %709 = vdwg.mxu0
    %710 = vmatpush.bf16.msra.mxu0 %v679
    %711 = vmatpush.bf16.msra.mxu0 %v677
    %712 = vmatpush.bf16.msra.mxu0 %v675
    %713 = vmatpush.bf16.msra.mxu0 %v673
    %714 = vmatpush.bf16.msra.mxu0 %v671
    %715 = vmatpush.bf16.msra.mxu0 %v669
    %716 = vmatpush.bf16.msra.mxu0 %v667
    %717 = vmatpush.bf16.msra.mxu0 %v665
    %718 = vmatmul.bf16.gmra.mxu0 %v583
    %v719 = vpop.f32.mrf.mxu0
    %v720 = vadd.f32 0.0, %v719
    %v721 = vpop.f32.mrf.mxu0
    %v722 = vadd.f32 0.0, %v721
    %723 = vdwg.mxu0
    %v740 = vunpack.c.l.b16 %v584
    %v741 = vunpack.c.h.b16 %v584
    %v742 = vunpack.c.l.b16 %v585
    %v743 = vunpack.c.h.b16 %v585
    %v744 = vunpack.c.l.b16 %v586
    %v745 = vunpack.c.h.b16 %v586
    %v746 = vunpack.c.l.b16 %v587
    %v747 = vunpack.c.h.b16 %v587
    %v748 = vunpack.c.l.b16 %v588
    %v749 = vunpack.c.h.b16 %v588
    %v750 = vunpack.c.l.b16 %v589
    %v751 = vunpack.c.h.b16 %v589
    %v752 = vunpack.c.l.b16 %v590
    %v753 = vunpack.c.h.b16 %v590
    %v754 = vunpack.c.l.b16 %v591
    %v755 = vunpack.c.h.b16 %v591
    %v756 = vunpack.c.l.b16 %v592
    %v757 = vunpack.c.h.b16 %v592
    %v758 = vunpack.c.l.b16 %v593
    %v759 = vunpack.c.h.b16 %v593
    %v760 = vunpack.c.l.b16 %v594
    %v761 = vunpack.c.h.b16 %v594
    %v762 = vunpack.c.l.b16 %v595
    %v763 = vunpack.c.h.b16 %v595
    %v764 = vunpack.c.l.b16 %v596
    %v765 = vunpack.c.h.b16 %v596
    %v766 = vunpack.c.l.b16 %v597
    %v767 = vunpack.c.h.b16 %v597
    %v768 = vunpack.c.l.b16 %v598
    %v769 = vunpack.c.h.b16 %v598
    %v770 = vunpack.c.l.b16 %v599
    %v771 = vunpack.c.h.b16 %v599
    %v772 = vpack.c.b16 %v742, %v740
    %v773 = vpack.c.b16 %v743, %v741
    %v774 = vpack.c.b16 %v746, %v744
    %v775 = vpack.c.b16 %v747, %v745
    %v776 = vpack.c.b16 %v750, %v748
    %v777 = vpack.c.b16 %v751, %v749
    %v778 = vpack.c.b16 %v754, %v752
    %v779 = vpack.c.b16 %v755, %v753
    %v780 = vpack.c.b16 %v758, %v756
    %v781 = vpack.c.b16 %v759, %v757
    %v782 = vpack.c.b16 %v762, %v760
    %v783 = vpack.c.b16 %v763, %v761
    %v784 = vpack.c.b16 %v766, %v764
    %v785 = vpack.c.b16 %v767, %v765
    %v786 = vpack.c.b16 %v770, %v768
    %v787 = vpack.c.b16 %v771, %v769
    %804 = vmatpush.bf16.msra.mxu0 %v786
    %805 = vmatpush.bf16.msra.mxu0 %v784
    %806 = vmatpush.bf16.msra.mxu0 %v782
    %807 = vmatpush.bf16.msra.mxu0 %v780
    %808 = vmatpush.bf16.msra.mxu0 %v778
    %809 = vmatpush.bf16.msra.mxu0 %v776
    %810 = vmatpush.bf16.msra.mxu0 %v774
    %811 = vmatpush.bf16.msra.mxu0 %v772
    %812 = vmatmul.bf16.gmra.mxu0 %v411
    %v813 = vpop.f32.mrf.mxu0
    %v814 = vadd.f32 %v706, %v813
    %v815 = vpop.f32.mrf.mxu0
    %v816 = vadd.f32 %v708, %v815
    %817 = vdwg.mxu0
    %818 = vmatpush.bf16.msra.mxu0 %v787
    %819 = vmatpush.bf16.msra.mxu0 %v785
    %820 = vmatpush.bf16.msra.mxu0 %v783
    %821 = vmatpush.bf16.msra.mxu0 %v781
    %822 = vmatpush.bf16.msra.mxu0 %v779
    %823 = vmatpush.bf16.msra.mxu0 %v777
    %824 = vmatpush.bf16.msra.mxu0 %v775
    %825 = vmatpush.bf16.msra.mxu0 %v773
    %826 = vmatmul.bf16.gmra.mxu0 %v411
    %v827 = vpop.f32.mrf.mxu0
    %v828 = vadd.f32 %v720, %v827
    %v829 = vpop.f32.mrf.mxu0
    %v830 = vadd.f32 %v722, %v829
    %831 = vdwg.mxu0
    %s832 = scalar_lea.vmem [#allocation19], 4
    %v833 = vld [vmem:[%s832] ss:$8 sm:$0x3]
    %v835 = vperm.slane %v833, 0
    %v836 = vperm.slane %v833, 1
    %v839 = vadd.f32 %v814, %v835
    %v840 = vadd.f32 %v828, %v836
    %v841 = vadd.f32 %v816, %v835
    %v842 = vadd.f32 %v830, %v836
    %v843 = vld [vmem:[%s2] sm:$0xff]
    %v844 = vld [vmem:[%s2 + $0x8] sm:$0xff]
    %v845 = vmul.f32 %v840, 0.5
    %v846 = vmul.f32 %v842, 0.5
    %v847 = vmul.f32 %v845, 1.442695
    %v848 = vpow.pop %v847
    %v849 = vmul.f32 %v846, 1.442695
    %v850 = vpow.pop %v849
    %v851 = vmul.f32 %v843, %v848
    %v852 = vmul.f32 %v844, %v850
    %v853 = vadd.f32 %v839, %v851
    %v854 = vadd.f32 %v841, %v852
    %v855 = vpack.c.bf16 %v854, %v853
    %v856 = vld [vmem:[#allocation12] sm:$0xff]
    %v857 = vld [vmem:[#allocation12 + $0x8] sm:$0xff]
    %v858 = vld [vmem:[#allocation12 + $0x10] sm:$0xff]
    %v859 = vld [vmem:[#allocation12 + $0x18] sm:$0xff]
    %v860 = vld [vmem:[#allocation12 + $0x20] sm:$0xff]
    %v861 = vld [vmem:[#allocation12 + $0x28] sm:$0xff]
    %v862 = vld [vmem:[#allocation12 + $0x30] sm:$0xff]
    %v863 = vld [vmem:[#allocation12 + $0x38] sm:$0xff]
    %v864 = vld [vmem:[#allocation12 + $0x40] sm:$0xff]
    %v865 = vld [vmem:[#allocation12 + $0x48] sm:$0xff]
    %v866 = vld [vmem:[#allocation12 + $0x50] sm:$0xff]
    %v867 = vld [vmem:[#allocation12 + $0x58] sm:$0xff]
    %v868 = vld [vmem:[#allocation12 + $0x60] sm:$0xff]
    %v869 = vld [vmem:[#allocation12 + $0x68] sm:$0xff]
    %v870 = vld [vmem:[#allocation12 + $0x70] sm:$0xff]
    %v871 = vld [vmem:[#allocation12 + $0x78] sm:$0xff]
    %s872 = scalar_lea.vmem [#allocation19], 5
    %v873 = vld [vmem:[%s872] ss:$8 sm:$0x3]
    %v875 = vperm.slane %v873, 0
    %v876 = vperm.slane %v873, 1
    %v895 = vunpack.c.l.b16 %v856
    %v896 = vunpack.c.h.b16 %v856
    %v897 = vunpack.c.l.b16 %v857
    %v898 = vunpack.c.h.b16 %v857
    %v899 = vunpack.c.l.b16 %v858
    %v900 = vunpack.c.h.b16 %v858
    %v901 = vunpack.c.l.b16 %v859
    %v902 = vunpack.c.h.b16 %v859
    %v903 = vunpack.c.l.b16 %v860
    %v904 = vunpack.c.h.b16 %v860
    %v905 = vunpack.c.l.b16 %v861
    %v906 = vunpack.c.h.b16 %v861
    %v907 = vunpack.c.l.b16 %v862
    %v908 = vunpack.c.h.b16 %v862
    %v909 = vunpack.c.l.b16 %v863
    %v910 = vunpack.c.h.b16 %v863
    %v911 = vunpack.c.l.b16 %v864
    %v912 = vunpack.c.h.b16 %v864
    %v913 = vunpack.c.l.b16 %v865
    %v914 = vunpack.c.h.b16 %v865
    %v915 = vunpack.c.l.b16 %v866
    %v916 = vunpack.c.h.b16 %v866
    %v917 = vunpack.c.l.b16 %v867
    %v918 = vunpack.c.h.b16 %v867
    %v919 = vunpack.c.l.b16 %v868
    %v920 = vunpack.c.h.b16 %v868
    %v921 = vunpack.c.l.b16 %v869
    %v922 = vunpack.c.h.b16 %v869
    %v923 = vunpack.c.l.b16 %v870
    %v924 = vunpack.c.h.b16 %v870
    %v925 = vunpack.c.l.b16 %v871
    %v926 = vunpack.c.h.b16 %v871
    %v927 = vpack.c.b16 %v897, %v895
    %v928 = vpack.c.b16 %v898, %v896
    %v929 = vpack.c.b16 %v901, %v899
    %v930 = vpack.c.b16 %v902, %v900
    %v931 = vpack.c.b16 %v905, %v903
    %v932 = vpack.c.b16 %v906, %v904
    %v933 = vpack.c.b16 %v909, %v907
    %v934 = vpack.c.b16 %v910, %v908
    %v935 = vpack.c.b16 %v913, %v911
    %v936 = vpack.c.b16 %v914, %v912
    %v937 = vpack.c.b16 %v917, %v915
    %v938 = vpack.c.b16 %v918, %v916
    %v939 = vpack.c.b16 %v921, %v919
    %v940 = vpack.c.b16 %v922, %v920
    %v941 = vpack.c.b16 %v925, %v923
    %v942 = vpack.c.b16 %v926, %v924
    %959 = vmatpush.bf16.msra.mxu0 %v941
    %960 = vmatpush.bf16.msra.mxu0 %v939
    %961 = vmatpush.bf16.msra.mxu0 %v937
    %962 = vmatpush.bf16.msra.mxu0 %v935
    %963 = vmatpush.bf16.msra.mxu0 %v933
    %964 = vmatpush.bf16.msra.mxu0 %v931
    %965 = vmatpush.bf16.msra.mxu0 %v929
    %966 = vmatpush.bf16.msra.mxu0 %v927
    %967 = vmatmul.bf16.gmra.mxu0 %v855
    %v968 = vpop.f32.mrf.mxu0
    %v969 = vadd.f32 %v875, %v968
    %v970 = vpop.f32.mrf.mxu0
    %v971 = vadd.f32 %v875, %v970
    %972 = vdwg.mxu0
    %973 = vmatpush.bf16.msra.mxu0 %v942
    %974 = vmatpush.bf16.msra.mxu0 %v940
    %975 = vmatpush.bf16.msra.mxu0 %v938
    %976 = vmatpush.bf16.msra.mxu0 %v936
    %977 = vmatpush.bf16.msra.mxu0 %v934
    %978 = vmatpush.bf16.msra.mxu0 %v932
    %979 = vmatpush.bf16.msra.mxu0 %v930
    %980 = vmatpush.bf16.msra.mxu0 %v928
    %981 = vmatmul.bf16.gmra.mxu0 %v855
    %v982 = vpop.f32.mrf.mxu0
    %v983 = vadd.f32 %v876, %v982
    %v984 = vpop.f32.mrf.mxu0
    %v985 = vadd.f32 %v876, %v984
    %986 = vdwg.mxu0
    %v987 = vmax.f32 %v969, 0.0
    %v988 = vmax.f32 %v983, 0.0
    %v989 = vmax.f32 %v971, 0.0
    %v990 = vmax.f32 %v985, 0.0
    %v991 = vpack.c.bf16 %v988, %v987
    %v992 = vpack.c.bf16 %v990, %v989
    %v993 = vld [vmem:[#allocation13] sm:$0xf]
    %v994 = vld [vmem:[#allocation13 + $0x4] sm:$0xf]
    %v995 = vld [vmem:[#allocation13 + $0x8] sm:$0xf]
    %v996 = vld [vmem:[#allocation13 + $0xc] sm:$0xf]
    %v997 = vld [vmem:[#allocation13 + $0x10] sm:$0xf]
    %v998 = vld [vmem:[#allocation13 + $0x14] sm:$0xf]
    %v999 = vld [vmem:[#allocation13 + $0x18] sm:$0xf]
    %v1000 = vld [vmem:[#allocation13 + $0x1c] sm:$0xf]
    %v1001 = vld [vmem:[#allocation13 + $0x20] sm:$0xf]
    %v1002 = vld [vmem:[#allocation13 + $0x24] sm:$0xf]
    %v1003 = vld [vmem:[#allocation13 + $0x28] sm:$0xf]
    %v1004 = vld [vmem:[#allocation13 + $0x2c] sm:$0xf]
    %v1005 = vld [vmem:[#allocation13 + $0x30] sm:$0xf]
    %v1006 = vld [vmem:[#allocation13 + $0x34] sm:$0xf]
    %v1007 = vld [vmem:[#allocation13 + $0x38] sm:$0xf]
    %v1008 = vld [vmem:[#allocation13 + $0x3c] sm:$0xf]
    %v1009 = vld [vmem:[#allocation19 + $0x6] ss:$0 sm:$0xff]
    %v1012 = vunpack.c.l.b16 %v991
    %v1013 = vunpack.c.l.b16 %v992
    %v1014 = vpack.c.b16 %v1013, %v1012
    %v1032 = vunpack.c.l.b16 %v993
    %v1033 = vunpack.c.l.b16 %v994
    %v1034 = vunpack.c.l.b16 %v995
    %v1035 = vunpack.c.l.b16 %v996
    %v1036 = vunpack.c.l.b16 %v997
    %v1037 = vunpack.c.l.b16 %v998
    %v1038 = vunpack.c.l.b16 %v999
    %v1039 = vunpack.c.l.b16 %v1000
    %v1040 = vunpack.c.l.b16 %v1001
    %v1041 = vunpack.c.l.b16 %v1002
    %v1042 = vunpack.c.l.b16 %v1003
    %v1043 = vunpack.c.l.b16 %v1004
    %v1044 = vunpack.c.l.b16 %v1005
    %v1045 = vunpack.c.l.b16 %v1006
    %v1046 = vunpack.c.l.b16 %v1007
    %v1047 = vunpack.c.l.b16 %v1008
    %v1048 = vpack.c.b16 %v1033, %v1032
    %v1049 = vpack.c.b16 %v1035, %v1034
    %v1050 = vpack.c.b16 %v1037, %v1036
    %v1051 = vpack.c.b16 %v1039, %v1038
    %v1052 = vpack.c.b16 %v1041, %v1040
    %v1053 = vpack.c.b16 %v1043, %v1042
    %v1054 = vpack.c.b16 %v1045, %v1044
    %v1055 = vpack.c.b16 %v1047, %v1046
    %1064 = vmatpush.bf16.msra.mxu0 %v1055
    %1065 = vmatpush.bf16.msra.mxu0 %v1054
    %1066 = vmatpush.bf16.msra.mxu0 %v1053
    %1067 = vmatpush.bf16.msra.mxu0 %v1052
    %1068 = vmatpush.bf16.msra.mxu0 %v1051
    %1069 = vmatpush.bf16.msra.mxu0 %v1050
    %1070 = vmatpush.bf16.msra.mxu0 %v1049
    %1071 = vmatpush.bf16.msra.mxu0 %v1048
    %1072 = vmatmul.bf16.gmra.mxu0 %v1014
    %v1073 = vpop.f32.mrf.mxu0
    %v1074 = vadd.f32 %v1009, %v1073
    %v1075 = vpop.f32.mrf.mxu0
    %v1076 = vadd.f32 %v1009, %v1075
    %1077 = vdwg.mxu0
    %v1078 = vmax.f32 %v1074, 0.0
    %v1079 = vmax.f32 %v1076, 0.0
    %v1080 = vpack.c.bf16 %v1079, %v1078
    %v1081 = vld [vmem:[#allocation16] sm:$0xf]
    %v1082 = vld [vmem:[#allocation16 + $0x4] sm:$0xf]
    %v1083 = vld [vmem:[#allocation16 + $0x8] sm:$0xf]
    %v1084 = vld [vmem:[#allocation16 + $0xc] sm:$0xf]
    %v1085 = vld [vmem:[#allocation16 + $0x10] sm:$0xf]
    %v1086 = vld [vmem:[#allocation16 + $0x14] sm:$0xf]
    %v1087 = vld [vmem:[#allocation16 + $0x18] sm:$0xf]
    %v1088 = vld [vmem:[#allocation16 + $0x1c] sm:$0xf]
    %v1089 = vld [vmem:[#allocation16 + $0x20] sm:$0xf]
    %v1090 = vld [vmem:[#allocation16 + $0x24] sm:$0xf]
    %v1091 = vld [vmem:[#allocation16 + $0x28] sm:$0xf]
    %v1092 = vld [vmem:[#allocation16 + $0x2c] sm:$0xf]
    %v1093 = vld [vmem:[#allocation16 + $0x30] sm:$0xf]
    %v1094 = vld [vmem:[#allocation16 + $0x34] sm:$0xf]
    %v1095 = vld [vmem:[#allocation16 + $0x38] sm:$0xf]
    %v1096 = vld [vmem:[#allocation16 + $0x3c] sm:$0xf]
    %v1097 = vld [vmem:[#allocation19 + $0x10] ss:$0 sm:$0xff]
    %v1114 = vunpack.c.l.b16 %v1081
    %v1115 = vunpack.c.l.b16 %v1082
    %v1116 = vunpack.c.l.b16 %v1083
    %v1117 = vunpack.c.l.b16 %v1084
    %v1118 = vunpack.c.l.b16 %v1085
    %v1119 = vunpack.c.l.b16 %v1086
    %v1120 = vunpack.c.l.b16 %v1087
    %v1121 = vunpack.c.l.b16 %v1088
    %v1122 = vunpack.c.l.b16 %v1089
    %v1123 = vunpack.c.l.b16 %v1090
    %v1124 = vunpack.c.l.b16 %v1091
    %v1125 = vunpack.c.l.b16 %v1092
    %v1126 = vunpack.c.l.b16 %v1093
    %v1127 = vunpack.c.l.b16 %v1094
    %v1128 = vunpack.c.l.b16 %v1095
    %v1129 = vunpack.c.l.b16 %v1096
    %v1130 = vpack.c.b16 %v1115, %v1114
    %v1131 = vpack.c.b16 %v1117, %v1116
    %v1132 = vpack.c.b16 %v1119, %v1118
    %v1133 = vpack.c.b16 %v1121, %v1120
    %v1134 = vpack.c.b16 %v1123, %v1122
    %v1135 = vpack.c.b16 %v1125, %v1124
    %v1136 = vpack.c.b16 %v1127, %v1126
    %v1137 = vpack.c.b16 %v1129, %v1128
    %1146 = vmatpush.bf16.msra.mxu0 %v1137
    %1147 = vmatpush.bf16.msra.mxu0 %v1136
    %1148 = vmatpush.bf16.msra.mxu0 %v1135
    %1149 = vmatpush.bf16.msra.mxu0 %v1134
    %1150 = vmatpush.bf16.msra.mxu0 %v1133
    %1151 = vmatpush.bf16.msra.mxu0 %v1132
    %1152 = vmatpush.bf16.msra.mxu0 %v1131
    %1153 = vmatpush.bf16.msra.mxu0 %v1130
    %1154 = vmatmul.bf16.gmra.mxu0 %v1080
    %v1155 = vpop.f32.mrf.mxu0
    %v1156 = vadd.f32 %v1097, %v1155
    %v1157 = vpop.f32.mrf.mxu0
    %v1158 = vadd.f32 %v1097, %v1157
    %1159 = vdwg.mxu0
    %v1160 = vpack.c.bf16 %v1156, %v1156
    %v1161 = vpack.c.bf16 %v1158, %v1158
    %1162 = vst [vmem:[%s15] sm:$0xf] %v1160
    %1163 = vst [vmem:[%s15 + $0x4] sm:$0xf] %v1161
    %v1164 = vld [vmem:[#allocation15] sm:$0xf]
    %v1165 = vld [vmem:[#allocation15 + $0x4] sm:$0xf]
    %v1166 = vld [vmem:[#allocation15 + $0x8] sm:$0xf]
    %v1167 = vld [vmem:[#allocation15 + $0xc] sm:$0xf]
    %v1168 = vld [vmem:[#allocation15 + $0x10] sm:$0xf]
    %v1169 = vld [vmem:[#allocation15 + $0x14] sm:$0xf]
    %v1170 = vld [vmem:[#allocation15 + $0x18] sm:$0xf]
    %v1171 = vld [vmem:[#allocation15 + $0x1c] sm:$0xf]
    %v1172 = vld [vmem:[#allocation15 + $0x20] sm:$0xf]
    %v1173 = vld [vmem:[#allocation15 + $0x24] sm:$0xf]
    %v1174 = vld [vmem:[#allocation15 + $0x28] sm:$0xf]
    %v1175 = vld [vmem:[#allocation15 + $0x2c] sm:$0xf]
    %v1176 = vld [vmem:[#allocation15 + $0x30] sm:$0xf]
    %v1177 = vld [vmem:[#allocation15 + $0x34] sm:$0xf]
    %v1178 = vld [vmem:[#allocation15 + $0x38] sm:$0xf]
    %v1179 = vld [vmem:[#allocation15 + $0x3c] sm:$0xf]
    %v1180 = vld [vmem:[#allocation19 + $0x7] ss:$0 sm:$0xff]
    %v1181 = vunpack.c.h.b16 %v991
    %v1182 = vunpack.c.h.b16 %v992
    %v1183 = vpack.c.b16 %v1182, %v1181
    %v1201 = vunpack.c.l.b16 %v1164
    %v1202 = vunpack.c.l.b16 %v1165
    %v1203 = vunpack.c.l.b16 %v1166
    %v1204 = vunpack.c.l.b16 %v1167
    %v1205 = vunpack.c.l.b16 %v1168
    %v1206 = vunpack.c.l.b16 %v1169
    %v1207 = vunpack.c.l.b16 %v1170
    %v1208 = vunpack.c.l.b16 %v1171
    %v1209 = vunpack.c.l.b16 %v1172
    %v1210 = vunpack.c.l.b16 %v1173
    %v1211 = vunpack.c.l.b16 %v1174
    %v1212 = vunpack.c.l.b16 %v1175
    %v1213 = vunpack.c.l.b16 %v1176
    %v1214 = vunpack.c.l.b16 %v1177
    %v1215 = vunpack.c.l.b16 %v1178
    %v1216 = vunpack.c.l.b16 %v1179
    %v1217 = vpack.c.b16 %v1202, %v1201
    %v1218 = vpack.c.b16 %v1204, %v1203
    %v1219 = vpack.c.b16 %v1206, %v1205
    %v1220 = vpack.c.b16 %v1208, %v1207
    %v1221 = vpack.c.b16 %v1210, %v1209
    %v1222 = vpack.c.b16 %v1212, %v1211
    %v1223 = vpack.c.b16 %v1214, %v1213
    %v1224 = vpack.c.b16 %v1216, %v1215
    %1233 = vmatpush.bf16.msra.mxu0 %v1224
    %1234 = vmatpush.bf16.msra.mxu0 %v1223
    %1235 = vmatpush.bf16.msra.mxu0 %v1222
    %1236 = vmatpush.bf16.msra.mxu0 %v1221
    %1237 = vmatpush.bf16.msra.mxu0 %v1220
    %1238 = vmatpush.bf16.msra.mxu0 %v1219
    %1239 = vmatpush.bf16.msra.mxu0 %v1218
    %1240 = vmatpush.bf16.msra.mxu0 %v1217
    %1241 = vmatmul.bf16.gmra.mxu0 %v1183
    %v1242 = vpop.f32.mrf.mxu0
    %v1243 = vadd.f32 %v1180, %v1242
    %v1244 = vpop.f32.mrf.mxu0
    %v1245 = vadd.f32 %v1180, %v1244
    %1246 = vdwg.mxu0
    %v1247 = vmax.f32 %v1243, 0.0
    %v1248 = vmax.f32 %v1245, 0.0
    %v1249 = vpack.c.bf16 %v1248, %v1247
    %v1250 = vld [vmem:[#allocation18] sm:$0xf]
    %v1251 = vld [vmem:[#allocation18 + $0x4] sm:$0xf]
    %v1252 = vld [vmem:[#allocation18 + $0x8] sm:$0xf]
    %v1253 = vld [vmem:[#allocation18 + $0xc] sm:$0xf]
    %v1254 = vld [vmem:[#allocation18 + $0x10] sm:$0xf]
    %v1255 = vld [vmem:[#allocation18 + $0x14] sm:$0xf]
    %v1256 = vld [vmem:[#allocation18 + $0x18] sm:$0xf]
    %v1257 = vld [vmem:[#allocation18 + $0x1c] sm:$0xf]
    %v1258 = vld [vmem:[#allocation18 + $0x20] sm:$0xf]
    %v1259 = vld [vmem:[#allocation18 + $0x24] sm:$0xf]
    %v1260 = vld [vmem:[#allocation18 + $0x28] sm:$0xf]
    %v1261 = vld [vmem:[#allocation18 + $0x2c] sm:$0xf]
    %v1262 = vld [vmem:[#allocation18 + $0x30] sm:$0xf]
    %v1263 = vld [vmem:[#allocation18 + $0x34] sm:$0xf]
    %v1264 = vld [vmem:[#allocation18 + $0x38] sm:$0xf]
    %v1265 = vld [vmem:[#allocation18 + $0x3c] sm:$0xf]
    %v1266 = vld [vmem:[#allocation19 + $0x11] ss:$0 sm:$0xff]
    %v1283 = vunpack.c.l.b16 %v1250
    %v1284 = vunpack.c.l.b16 %v1251
    %v1285 = vunpack.c.l.b16 %v1252
    %v1286 = vunpack.c.l.b16 %v1253
    %v1287 = vunpack.c.l.b16 %v1254
    %v1288 = vunpack.c.l.b16 %v1255
    %v1289 = vunpack.c.l.b16 %v1256
    %v1290 = vunpack.c.l.b16 %v1257
    %v1291 = vunpack.c.l.b16 %v1258
    %v1292 = vunpack.c.l.b16 %v1259
    %v1293 = vunpack.c.l.b16 %v1260
    %v1294 = vunpack.c.l.b16 %v1261
    %v1295 = vunpack.c.l.b16 %v1262
    %v1296 = vunpack.c.l.b16 %v1263
    %v1297 = vunpack.c.l.b16 %v1264
    %v1298 = vunpack.c.l.b16 %v1265
    %v1299 = vpack.c.b16 %v1284, %v1283
    %v1300 = vpack.c.b16 %v1286, %v1285
    %v1301 = vpack.c.b16 %v1288, %v1287
    %v1302 = vpack.c.b16 %v1290, %v1289
    %v1303 = vpack.c.b16 %v1292, %v1291
    %v1304 = vpack.c.b16 %v1294, %v1293
    %v1305 = vpack.c.b16 %v1296, %v1295
    %v1306 = vpack.c.b16 %v1298, %v1297
    %1315 = vmatpush.bf16.msra.mxu0 %v1306
    %1316 = vmatpush.bf16.msra.mxu0 %v1305
    %1317 = vmatpush.bf16.msra.mxu0 %v1304
    %1318 = vmatpush.bf16.msra.mxu0 %v1303
    %1319 = vmatpush.bf16.msra.mxu0 %v1302
    %1320 = vmatpush.bf16.msra.mxu0 %v1301
    %1321 = vmatpush.bf16.msra.mxu0 %v1300
    %1322 = vmatpush.bf16.msra.mxu0 %v1299
    %1323 = vmatmul.bf16.gmra.mxu0 %v1249
    %v1324 = vpop.f32.mrf.mxu0
    %v1325 = vadd.f32 %v1266, %v1324
    %v1326 = vpop.f32.mrf.mxu0
    %v1327 = vadd.f32 %v1266, %v1326
    %1328 = vdwg.mxu0
    %v1329 = vpack.c.bf16 %v1325, %v1325
    %v1330 = vpack.c.bf16 %v1327, %v1327
    %1331 = vst [vmem:[%s16] sm:$0xf] %v1329
    %1332 = vst [vmem:[%s16 + $0x4] sm:$0xf] %v1330
    %1333 = vst [vmem:[%s17] sm:$0xff] %v839
    %1334 = vst [vmem:[%s17 + $0x8] sm:$0xff] %v840
    %1335 = vst [vmem:[%s17 + $0x10] sm:$0xff] %v841
    %1336 = vst [vmem:[%s17 + $0x18] sm:$0xff] %v842
    // Predicated region
    $region110: #{_forward_jit.1} parent=1 // pred_check
      _
    $region111: #{_forward_jit.1} parent=1 // pred_check_branch
      %1338 = sbr.rel (0) target = $region113
    $region112: #{_forward_jit.1} parent=1 // pred_region
      _
    $region113: #{_forward_jit.1} parent=1 // pred_fallthru
      _
    // Predicated region
    $region114: #{_forward_jit.1} parent=1 // pred_check
      _
    $region115: #{_forward_jit.1} parent=1 // pred_check_branch
      %1340 = sbr.rel (0) target = $region117
    $region116: #{_forward_jit.1} parent=1 // pred_region
      _
    $region117: #{_forward_jit.1} parent=1 // pred_fallthru
      _
    // Predicated region
    $region118: #{_forward_jit.1} parent=1 // pred_check
      _
    $region119: #{_forward_jit.1} parent=1 // pred_check_branch
      %1342 = sbr.rel (0) target = $region121
    $region120: #{_forward_jit.1} parent=1 // pred_region
      _
    $region121: #{_forward_jit.1} parent=1 // pred_fallthru
      _
    // Predicated region
    $region122: #{_forward_jit.1} parent=1 // pred_check
      _
    $region123: #{_forward_jit.1} parent=1 // pred_check_branch
      %1344 = sbr.rel (0) target = $region125
    $region124: #{_forward_jit.1} parent=1 // pred_region
      _
    $region125: #{_forward_jit.1} parent=1 // pred_fallthru
      _
    // Predicated region
    $region126: #{_forward_jit.1} parent=1 // pred_check
      _
    $region127: #{_forward_jit.1} parent=1 // pred_check_branch
      %1346 = sbr.rel (0) target = $region129
    $region128: #{_forward_jit.1} parent=1 // pred_region
      _
    $region129: #{_forward_jit.1} parent=1 // pred_fallthru
      _
    // Predicated region
    $region130: #{_forward_jit.1} parent=1 // pred_check
      _
    $region131: #{_forward_jit.1} parent=1 // pred_check_branch
      %1348 = sbr.rel (0) target = $region133
    $region132: #{_forward_jit.1} parent=1 // pred_region
      _
    $region133: #{_forward_jit.1} parent=1 // pred_fallthru
      _
    %1349 = vsyncpa [#allocation3], 1
    %1350 = vsyncpa [#allocation5], 1
    %1351 = vsyncpa [#allocation8], 1
    %1352 = vsyncpa [#allocation11], 1
    %1353 = vsyncpa [#allocation14], 1
    %1354 = vsyncpa [#allocation17], 1
    %1355 = vsyncpa [#allocation20], 1

</llo_original>
